<compile_context>
chip_gen: v7x
topology: tpu7x:2x2x1
jax: 0.10.0
libtpu: 0.0.40
codegen_flags: <defaults>
</compile_context>

<pallas_src>
import functools
import numpy as np
import jax
import jax.numpy as jnp
from jax.experimental import pallas as pl
from jax.experimental.pallas import tpu as pltpu


def _mha_kernel(h_ref, wqkv_ref, wfcp_ref, o_ref, *, n_heads, head_dim,
                approx_recip):
    """One block of `bn` flattened nodes.

    h_ref    : (bn, hidden)        rows of the flattened input
    wqkv_ref : (hidden, 3*hidden)  [Wq^T | Wk^T col-perm | Wv^T col-perm]
                                   (column l*D+d of the K/V part holds the
                                    torch-reshaped element [:, d, l])
    wfcp_ref : (hidden, hidden)    Wfc^T with rows permuted to consume the
                                   (i*D+d)-ordered head-concat output
    o_ref    : (bn, hidden)        f32 output block
    """
    H, D = n_heads, head_dim
    hidden = H * D
    scale = 0.5 / D  # torch: compat / (hidden // n_heads) * 0.5

    h = h_ref[...]
    # Fused Q/K/V projection: one MXU matmul, f32 accumulation.
    qkv = jnp.dot(h, wqkv_ref[...], preferred_element_type=jnp.float32)

    heads = []
    # H and D are small static ints -> fully unrolled; everything stays 2-D
    # and register resident (no VMEM scratch, no masked partial stores).
    for i in range(H):
        qi = qkv[:, i * D:(i + 1) * D]                                   # (bn, D)
        logits = [
            jnp.sum(qi * qkv[:, hidden + l * D: hidden + (l + 1) * D],
                    axis=1, keepdims=True) * scale                       # (bn, 1)
            for l in range(H)
        ]
        m = logits[0]
        for l in range(1, H):
            m = jnp.maximum(m, logits[l])
        exps = [jnp.exp(x - m) for x in logits]
        denom = exps[0]
        for l in range(1, H):
            denom = denom + exps[l]
        inv = pl.reciprocal(denom, approx=approx_recip)   # EUP slot
        oi = (exps[0] * inv) * qkv[:, 2 * hidden: 2 * hidden + D]
        for l in range(1, H):
            oi = oi + (exps[l] * inv) * qkv[:, 2 * hidden + l * D:
                                            2 * hidden + (l + 1) * D]
        heads.append(oi)                                                 # (bn, D)

    # Register-resident concat of per-head outputs, ordered as column i*D+d.
    attn = jnp.concatenate(heads, axis=1)                                # (bn, hidden) f32
    o_ref[...] = jnp.dot(attn.astype(wfcp_ref.dtype), wfcp_ref[...],
                         preferred_element_type=jnp.float32).astype(o_ref.dtype)


def _pick_block_n(n, requested):
    """MXU-sized row block; keep >=2 grid steps when possible (megacore)."""
    bn = max(128, int(requested))
    while bn > 128 and -(-n // bn) < 2:
        bn //= 2
    return bn


def mha_forward_pallas(x, wq, wk, wv, wfc, n_heads, *, block_n=512,
                       compute_dtype=jnp.bfloat16):
    """Pallas forward matching MultiHeadAttention.forward.

    Weights follow the nn.Linear (out_features, in_features) convention.
    """
    hidden = wq.shape[0]
    H = n_heads
    D = hidden // H

    h = x.reshape(-1, hidden)
    n = h.shape[0]

    # Permutation p[l*D + d] = d*H + l : implements torch's view(N,H,D) ->
    # reshape(N,D,H) memory reinterpretation on the weight side.
    p = np.arange(hidden).reshape(D, H).T.reshape(-1)

    # Fused, pre-transposed / pre-permuted weights (done once, outside kernel).
    w_qkv = jnp.concatenate([wq.T, wk.T[:, p], wv.T[:, p]], axis=1)  # (hidden, 3*hidden)
    wfcp = wfc.T[p, :]                                               # (hidden, hidden)

    w_qkv = w_qkv.astype(compute_dtype)
    wfcp = wfcp.astype(compute_dtype)
    h = h.astype(compute_dtype)

    bn = _pick_block_n(n, block_n)
    n_pad = ((n + bn - 1) // bn) * bn
    h_p = jnp.zeros((n_pad, hidden), h.dtype).at[:n].set(h)
    grid = (n_pad // bn,)

    # Explicit VMEM budget: double-buffered row blocks + weights + slack
    # (weights have a constant index_map so they are only DMA'd once).
    itm = np.dtype(compute_dtype).itemsize
    est = (2 * bn * hidden * itm                  # input rows (x2 buffers)
           + 2 * bn * hidden * 4                  # output rows (x2 buffers, f32)
           + 2 * 4 * hidden * hidden * itm        # qkv + fc weights (<=2 buffers)
           + 6 * bn * 3 * hidden * 4)             # in-kernel f32 temporaries
    vmem_limit = int(min(32 * 1024 * 1024, max(2 * est, 4 * 1024 * 1024)))

    kernel = functools.partial(
        _mha_kernel, n_heads=H, head_dim=D,
        approx_recip=(np.dtype(compute_dtype) != np.dtype(np.float32)))

    out = pl.pallas_call(
        kernel,
        out_shape=jax.ShapeDtypeStruct((n_pad, hidden), jnp.float32),
        grid=grid,
        in_specs=[
            pl.BlockSpec((bn, hidden), lambda i: (i, 0)),
            pl.BlockSpec((hidden, 3 * hidden), lambda i: (0, 0)),
            pl.BlockSpec((hidden, hidden), lambda i: (0, 0)),
        ],
        out_specs=pl.BlockSpec((bn, hidden), lambda i: (i, 0)),
        compiler_params=pltpu.CompilerParams(
            dimension_semantics=("parallel",),
            vmem_limit_bytes=vmem_limit),
    )(h_p, w_qkv, wfcp)

    # TODO(synk): for production hidden < 128, lane-packing several nodes per
    # vreg with block-diagonal weights would recover the unused lanes.
    return out[:n]


def mha_forward_reference(x, wq, wk, wv, wfc, n_heads):
    """Pure-JAX transcription of the torch forward (ground truth)."""
    hidden = wq.shape[0]
    H = n_heads
    D = hidden // H
    h = x.reshape(-1, hidden)
    n = h.shape[0]
    q = (h @ wq.T).reshape(n, H, D)
    k = (h @ wk.T).reshape(n, D, H)          # reshape (memory reinterpret), NOT transpose
    v = (h @ wv.T).reshape(n, D, H)
    compat = jnp.einsum('ijk,ikl->ijl', q, k) / D * 0.5
    scores = jax.nn.softmax(compat, axis=-1)
    out = jnp.einsum('blh,bdh->bld', scores, v)          # (n, H, D)
    out = jnp.transpose(out, (0, 2, 1)).reshape(n, hidden)
    return out @ wfc.T


if __name__ == "__main__":
    # Small deterministic config: hidden=32, n_heads=4 (head_dim=8),
    # input "h" of shape (2, 8, 32) -> 16 flattened nodes.
    hidden_dim = 32
    n_heads = 4
    x_shape = (2, 8, hidden_dim)

    key = jax.random.PRNGKey(0)
    kx, kq, kk, kv, kf = jax.random.split(key, 5)
    x = jax.random.normal(kx, x_shape, dtype=jnp.float32)
    wq = jax.random.normal(kq, (hidden_dim, hidden_dim), dtype=jnp.float32) * 0.1
    wk = jax.random.normal(kk, (hidden_dim, hidden_dim), dtype=jnp.float32) * 0.1
    wv = jax.random.normal(kv, (hidden_dim, hidden_dim), dtype=jnp.float32) * 0.1
    wfc = jax.random.normal(kf, (hidden_dim, hidden_dim), dtype=jnp.float32) * 0.1
    # TODO(synk): IniEmbed (nn.Linear(input_dim, hidden_dim)), dropout and
    # self.norm are defined in __init__ but never used in forward -> omitted.

    ref = jax.block_until_ready(mha_forward_reference(x, wq, wk, wv, wfc, n_heads))

    # Default bf16 compute path (MXU-native on v6e/v7x), f32 accumulation.
    out_bf16 = jax.block_until_ready(
        mha_forward_pallas(x, wq, wk, wv, wfc, n_heads,
                           compute_dtype=jnp.bfloat16))
    assert out_bf16.shape == (x_shape[0] * x_shape[1], hidden_dim)
    np.testing.assert_allclose(np.asarray(out_bf16), np.asarray(ref),
                               rtol=3e-2, atol=3e-2)

    # f32 compute path (exact reciprocal) for a tighter numerical check.
    out_f32 = jax.block_until_ready(
        mha_forward_pallas(x, wq, wk, wv, wfc, n_heads,
                           compute_dtype=jnp.float32))
    np.testing.assert_allclose(np.asarray(out_f32), np.asarray(ref),
                               rtol=5e-3, atol=5e-3)

    print("KERNEL_OK")
</pallas_src>

<mosaic_0001>
module attributes {stable_mosaic.version = 11 : i64} {
  func.func @_mha_kernel(%arg0: i32, %arg1: memref<128x32xbf16, #tpu.memory_space<vmem>>, %arg2: memref<32x96xbf16, #tpu.memory_space<vmem>>, %arg3: memref<32x32xbf16, #tpu.memory_space<vmem>>, %arg4: memref<128x32xf32, #tpu.memory_space<vmem>>) attributes {dimension_semantics = [#tpu.dimension_semantics<parallel>], iteration_bounds = array<i64: 1>, scalar_prefetch = 0 : i64, scratch_operands = 0 : i64, tpu.core_type = #tpu.core_type<tc>, window_params = [{transform_indices = @transform_0, window_bounds = array<i64: 128, 32>}, {pipeline_mode = #tpu.pipeline_mode<synchronous>, transform_indices = @transform_1, window_bounds = array<i64: 32, 96>}, {pipeline_mode = #tpu.pipeline_mode<synchronous>, transform_indices = @transform_2, window_bounds = array<i64: 32, 32>}, {transform_indices = @transform_3, window_bounds = array<i64: 128, 32>}]} {
    %c0 = arith.constant 0 : index
    %c0_0 = arith.constant 0 : index
    %0 = vector.load %arg1[%c0, %c0_0] : memref<128x32xbf16, #tpu.memory_space<vmem>>, vector<128x32xbf16>
    %c0_1 = arith.constant 0 : index
    %c0_2 = arith.constant 0 : index
    %1 = vector.load %arg2[%c0_1, %c0_2] : memref<32x96xbf16, #tpu.memory_space<vmem>>, vector<32x96xbf16>
    %cst = arith.constant dense<0.000000e+00> : vector<128x96xf32>
    %2 = tpu.matmul %0, %1, %cst {dimension_numbers = #tpu.dot_dimension_numbers<[1], [0], [0], [1], [0, 0, 1, 1], [], []>} : vector<128x32xbf16>, vector<32x96xbf16>, vector<128x96xf32> -> vector<128x96xf32>
    %3 = vector.extract_strided_slice %2 {offsets = [0, 0], sizes = [128, 8], strides = [1, 1]} : vector<128x96xf32> to vector<128x8xf32>
    %4 = vector.extract_strided_slice %2 {offsets = [0, 32], sizes = [128, 8], strides = [1, 1]} : vector<128x96xf32> to vector<128x8xf32>
    %5 = arith.mulf %3, %4 : vector<128x8xf32>
    %cst_3 = arith.constant dense<0.000000e+00> : vector<128xf32>
    %6 = vector.multi_reduction <add>, %5, %cst_3 [1] : vector<128x8xf32> to vector<128xf32>
    %7 = vector.shape_cast %6 : vector<128xf32> to vector<128x1xf32>
    %cst_4 = arith.constant 6.250000e-02 : f32
    %8 = vector.broadcast %cst_4 : f32 to vector<128x1xf32>
    %9 = arith.mulf %7, %8 : vector<128x1xf32>
    %10 = vector.extract_strided_slice %2 {offsets = [0, 40], sizes = [128, 8], strides = [1, 1]} : vector<128x96xf32> to vector<128x8xf32>
    %11 = arith.mulf %3, %10 : vector<128x8xf32>
    %cst_5 = arith.constant dense<0.000000e+00> : vector<128xf32>
    %12 = vector.multi_reduction <add>, %11, %cst_5 [1] : vector<128x8xf32> to vector<128xf32>
    %13 = vector.shape_cast %12 : vector<128xf32> to vector<128x1xf32>
    %cst_6 = arith.constant 6.250000e-02 : f32
    %14 = vector.broadcast %cst_6 : f32 to vector<128x1xf32>
    %15 = arith.mulf %13, %14 : vector<128x1xf32>
    %16 = vector.extract_strided_slice %2 {offsets = [0, 48], sizes = [128, 8], strides = [1, 1]} : vector<128x96xf32> to vector<128x8xf32>
    %17 = arith.mulf %3, %16 : vector<128x8xf32>
    %cst_7 = arith.constant dense<0.000000e+00> : vector<128xf32>
    %18 = vector.multi_reduction <add>, %17, %cst_7 [1] : vector<128x8xf32> to vector<128xf32>
    %19 = vector.shape_cast %18 : vector<128xf32> to vector<128x1xf32>
    %cst_8 = arith.constant 6.250000e-02 : f32
    %20 = vector.broadcast %cst_8 : f32 to vector<128x1xf32>
    %21 = arith.mulf %19, %20 : vector<128x1xf32>
    %22 = vector.extract_strided_slice %2 {offsets = [0, 56], sizes = [128, 8], strides = [1, 1]} : vector<128x96xf32> to vector<128x8xf32>
    %23 = arith.mulf %3, %22 : vector<128x8xf32>
    %cst_9 = arith.constant dense<0.000000e+00> : vector<128xf32>
    %24 = vector.multi_reduction <add>, %23, %cst_9 [1] : vector<128x8xf32> to vector<128xf32>
    %25 = vector.shape_cast %24 : vector<128xf32> to vector<128x1xf32>
    %cst_10 = arith.constant 6.250000e-02 : f32
    %26 = vector.broadcast %cst_10 : f32 to vector<128x1xf32>
    %27 = arith.mulf %25, %26 : vector<128x1xf32>
    %28 = arith.maximumf %9, %15 : vector<128x1xf32>
    %29 = arith.maximumf %28, %21 : vector<128x1xf32>
    %30 = arith.maximumf %29, %27 : vector<128x1xf32>
    %31 = arith.subf %9, %30 : vector<128x1xf32>
    %32 = math.exp %31 : vector<128x1xf32>
    %33 = arith.subf %15, %30 : vector<128x1xf32>
    %34 = math.exp %33 : vector<128x1xf32>
    %35 = arith.subf %21, %30 : vector<128x1xf32>
    %36 = math.exp %35 : vector<128x1xf32>
    %37 = arith.subf %27, %30 : vector<128x1xf32>
    %38 = math.exp %37 : vector<128x1xf32>
    %39 = arith.addf %32, %34 : vector<128x1xf32>
    %40 = arith.addf %39, %36 : vector<128x1xf32>
    %41 = arith.addf %40, %38 : vector<128x1xf32>
    %42 = tpu.reciprocal %41 {approx = true} : vector<128x1xf32> -> vector<128x1xf32>
    %43 = arith.mulf %32, %42 : vector<128x1xf32>
    %44 = vector.extract_strided_slice %2 {offsets = [0, 64], sizes = [128, 8], strides = [1, 1]} : vector<128x96xf32> to vector<128x8xf32>
    %45 = vector.broadcast %43 : vector<128x1xf32> to vector<128x8xf32>
    %46 = arith.mulf %45, %44 : vector<128x8xf32>
    %47 = arith.mulf %34, %42 : vector<128x1xf32>
    %48 = vector.extract_strided_slice %2 {offsets = [0, 72], sizes = [128, 8], strides = [1, 1]} : vector<128x96xf32> to vector<128x8xf32>
    %49 = vector.broadcast %47 : vector<128x1xf32> to vector<128x8xf32>
    %50 = arith.mulf %49, %48 : vector<128x8xf32>
    %51 = arith.addf %46, %50 : vector<128x8xf32>
    %52 = arith.mulf %36, %42 : vector<128x1xf32>
    %53 = vector.extract_strided_slice %2 {offsets = [0, 80], sizes = [128, 8], strides = [1, 1]} : vector<128x96xf32> to vector<128x8xf32>
    %54 = vector.broadcast %52 : vector<128x1xf32> to vector<128x8xf32>
    %55 = arith.mulf %54, %53 : vector<128x8xf32>
    %56 = arith.addf %51, %55 : vector<128x8xf32>
    %57 = arith.mulf %38, %42 : vector<128x1xf32>
    %58 = vector.extract_strided_slice %2 {offsets = [0, 88], sizes = [128, 8], strides = [1, 1]} : vector<128x96xf32> to vector<128x8xf32>
    %59 = vector.broadcast %57 : vector<128x1xf32> to vector<128x8xf32>
    %60 = arith.mulf %59, %58 : vector<128x8xf32>
    %61 = arith.addf %56, %60 : vector<128x8xf32>
    %62 = vector.extract_strided_slice %2 {offsets = [0, 8], sizes = [128, 8], strides = [1, 1]} : vector<128x96xf32> to vector<128x8xf32>
    %63 = vector.extract_strided_slice %2 {offsets = [0, 32], sizes = [128, 8], strides = [1, 1]} : vector<128x96xf32> to vector<128x8xf32>
    %64 = arith.mulf %62, %63 : vector<128x8xf32>
    %cst_11 = arith.constant dense<0.000000e+00> : vector<128xf32>
    %65 = vector.multi_reduction <add>, %64, %cst_11 [1] : vector<128x8xf32> to vector<128xf32>
    %66 = vector.shape_cast %65 : vector<128xf32> to vector<128x1xf32>
    %cst_12 = arith.constant 6.250000e-02 : f32
    %67 = vector.broadcast %cst_12 : f32 to vector<128x1xf32>
    %68 = arith.mulf %66, %67 : vector<128x1xf32>
    %69 = vector.extract_strided_slice %2 {offsets = [0, 40], sizes = [128, 8], strides = [1, 1]} : vector<128x96xf32> to vector<128x8xf32>
    %70 = arith.mulf %62, %69 : vector<128x8xf32>
    %cst_13 = arith.constant dense<0.000000e+00> : vector<128xf32>
    %71 = vector.multi_reduction <add>, %70, %cst_13 [1] : vector<128x8xf32> to vector<128xf32>
    %72 = vector.shape_cast %71 : vector<128xf32> to vector<128x1xf32>
    %cst_14 = arith.constant 6.250000e-02 : f32
    %73 = vector.broadcast %cst_14 : f32 to vector<128x1xf32>
    %74 = arith.mulf %72, %73 : vector<128x1xf32>
    %75 = vector.extract_strided_slice %2 {offsets = [0, 48], sizes = [128, 8], strides = [1, 1]} : vector<128x96xf32> to vector<128x8xf32>
    %76 = arith.mulf %62, %75 : vector<128x8xf32>
    %cst_15 = arith.constant dense<0.000000e+00> : vector<128xf32>
    %77 = vector.multi_reduction <add>, %76, %cst_15 [1] : vector<128x8xf32> to vector<128xf32>
    %78 = vector.shape_cast %77 : vector<128xf32> to vector<128x1xf32>
    %cst_16 = arith.constant 6.250000e-02 : f32
    %79 = vector.broadcast %cst_16 : f32 to vector<128x1xf32>
    %80 = arith.mulf %78, %79 : vector<128x1xf32>
    %81 = vector.extract_strided_slice %2 {offsets = [0, 56], sizes = [128, 8], strides = [1, 1]} : vector<128x96xf32> to vector<128x8xf32>
    %82 = arith.mulf %62, %81 : vector<128x8xf32>
    %cst_17 = arith.constant dense<0.000000e+00> : vector<128xf32>
    %83 = vector.multi_reduction <add>, %82, %cst_17 [1] : vector<128x8xf32> to vector<128xf32>
    %84 = vector.shape_cast %83 : vector<128xf32> to vector<128x1xf32>
    %cst_18 = arith.constant 6.250000e-02 : f32
    %85 = vector.broadcast %cst_18 : f32 to vector<128x1xf32>
    %86 = arith.mulf %84, %85 : vector<128x1xf32>
    %87 = arith.maximumf %68, %74 : vector<128x1xf32>
    %88 = arith.maximumf %87, %80 : vector<128x1xf32>
    %89 = arith.maximumf %88, %86 : vector<128x1xf32>
    %90 = arith.subf %68, %89 : vector<128x1xf32>
    %91 = math.exp %90 : vector<128x1xf32>
    %92 = arith.subf %74, %89 : vector<128x1xf32>
    %93 = math.exp %92 : vector<128x1xf32>
    %94 = arith.subf %80, %89 : vector<128x1xf32>
    %95 = math.exp %94 : vector<128x1xf32>
    %96 = arith.subf %86, %89 : vector<128x1xf32>
    %97 = math.exp %96 : vector<128x1xf32>
    %98 = arith.addf %91, %93 : vector<128x1xf32>
    %99 = arith.addf %98, %95 : vector<128x1xf32>
    %100 = arith.addf %99, %97 : vector<128x1xf32>
    %101 = tpu.reciprocal %100 {approx = true} : vector<128x1xf32> -> vector<128x1xf32>
    %102 = arith.mulf %91, %101 : vector<128x1xf32>
    %103 = vector.extract_strided_slice %2 {offsets = [0, 64], sizes = [128, 8], strides = [1, 1]} : vector<128x96xf32> to vector<128x8xf32>
    %104 = vector.broadcast %102 : vector<128x1xf32> to vector<128x8xf32>
    %105 = arith.mulf %104, %103 : vector<128x8xf32>
    %106 = arith.mulf %93, %101 : vector<128x1xf32>
    %107 = vector.extract_strided_slice %2 {offsets = [0, 72], sizes = [128, 8], strides = [1, 1]} : vector<128x96xf32> to vector<128x8xf32>
    %108 = vector.broadcast %106 : vector<128x1xf32> to vector<128x8xf32>
    %109 = arith.mulf %108, %107 : vector<128x8xf32>
    %110 = arith.addf %105, %109 : vector<128x8xf32>
    %111 = arith.mulf %95, %101 : vector<128x1xf32>
    %112 = vector.extract_strided_slice %2 {offsets = [0, 80], sizes = [128, 8], strides = [1, 1]} : vector<128x96xf32> to vector<128x8xf32>
    %113 = vector.broadcast %111 : vector<128x1xf32> to vector<128x8xf32>
    %114 = arith.mulf %113, %112 : vector<128x8xf32>
    %115 = arith.addf %110, %114 : vector<128x8xf32>
    %116 = arith.mulf %97, %101 : vector<128x1xf32>
    %117 = vector.extract_strided_slice %2 {offsets = [0, 88], sizes = [128, 8], strides = [1, 1]} : vector<128x96xf32> to vector<128x8xf32>
    %118 = vector.broadcast %116 : vector<128x1xf32> to vector<128x8xf32>
    %119 = arith.mulf %118, %117 : vector<128x8xf32>
    %120 = arith.addf %115, %119 : vector<128x8xf32>
    %121 = vector.extract_strided_slice %2 {offsets = [0, 16], sizes = [128, 8], strides = [1, 1]} : vector<128x96xf32> to vector<128x8xf32>
    %122 = vector.extract_strided_slice %2 {offsets = [0, 32], sizes = [128, 8], strides = [1, 1]} : vector<128x96xf32> to vector<128x8xf32>
    %123 = arith.mulf %121, %122 : vector<128x8xf32>
    %cst_19 = arith.constant dense<0.000000e+00> : vector<128xf32>
    %124 = vector.multi_reduction <add>, %123, %cst_19 [1] : vector<128x8xf32> to vector<128xf32>
    %125 = vector.shape_cast %124 : vector<128xf32> to vector<128x1xf32>
    %cst_20 = arith.constant 6.250000e-02 : f32
    %126 = vector.broadcast %cst_20 : f32 to vector<128x1xf32>
    %127 = arith.mulf %125, %126 : vector<128x1xf32>
    %128 = vector.extract_strided_slice %2 {offsets = [0, 40], sizes = [128, 8], strides = [1, 1]} : vector<128x96xf32> to vector<128x8xf32>
    %129 = arith.mulf %121, %128 : vector<128x8xf32>
    %cst_21 = arith.constant dense<0.000000e+00> : vector<128xf32>
    %130 = vector.multi_reduction <add>, %129, %cst_21 [1] : vector<128x8xf32> to vector<128xf32>
    %131 = vector.shape_cast %130 : vector<128xf32> to vector<128x1xf32>
    %cst_22 = arith.constant 6.250000e-02 : f32
    %132 = vector.broadcast %cst_22 : f32 to vector<128x1xf32>
    %133 = arith.mulf %131, %132 : vector<128x1xf32>
    %134 = vector.extract_strided_slice %2 {offsets = [0, 48], sizes = [128, 8], strides = [1, 1]} : vector<128x96xf32> to vector<128x8xf32>
    %135 = arith.mulf %121, %134 : vector<128x8xf32>
    %cst_23 = arith.constant dense<0.000000e+00> : vector<128xf32>
    %136 = vector.multi_reduction <add>, %135, %cst_23 [1] : vector<128x8xf32> to vector<128xf32>
    %137 = vector.shape_cast %136 : vector<128xf32> to vector<128x1xf32>
    %cst_24 = arith.constant 6.250000e-02 : f32
    %138 = vector.broadcast %cst_24 : f32 to vector<128x1xf32>
    %139 = arith.mulf %137, %138 : vector<128x1xf32>
    %140 = vector.extract_strided_slice %2 {offsets = [0, 56], sizes = [128, 8], strides = [1, 1]} : vector<128x96xf32> to vector<128x8xf32>
    %141 = arith.mulf %121, %140 : vector<128x8xf32>
    %cst_25 = arith.constant dense<0.000000e+00> : vector<128xf32>
    %142 = vector.multi_reduction <add>, %141, %cst_25 [1] : vector<128x8xf32> to vector<128xf32>
    %143 = vector.shape_cast %142 : vector<128xf32> to vector<128x1xf32>
    %cst_26 = arith.constant 6.250000e-02 : f32
    %144 = vector.broadcast %cst_26 : f32 to vector<128x1xf32>
    %145 = arith.mulf %143, %144 : vector<128x1xf32>
    %146 = arith.maximumf %127, %133 : vector<128x1xf32>
    %147 = arith.maximumf %146, %139 : vector<128x1xf32>
    %148 = arith.maximumf %147, %145 : vector<128x1xf32>
    %149 = arith.subf %127, %148 : vector<128x1xf32>
    %150 = math.exp %149 : vector<128x1xf32>
    %151 = arith.subf %133, %148 : vector<128x1xf32>
    %152 = math.exp %151 : vector<128x1xf32>
    %153 = arith.subf %139, %148 : vector<128x1xf32>
    %154 = math.exp %153 : vector<128x1xf32>
    %155 = arith.subf %145, %148 : vector<128x1xf32>
    %156 = math.exp %155 : vector<128x1xf32>
    %157 = arith.addf %150, %152 : vector<128x1xf32>
    %158 = arith.addf %157, %154 : vector<128x1xf32>
    %159 = arith.addf %158, %156 : vector<128x1xf32>
    %160 = tpu.reciprocal %159 {approx = true} : vector<128x1xf32> -> vector<128x1xf32>
    %161 = arith.mulf %150, %160 : vector<128x1xf32>
    %162 = vector.extract_strided_slice %2 {offsets = [0, 64], sizes = [128, 8], strides = [1, 1]} : vector<128x96xf32> to vector<128x8xf32>
    %163 = vector.broadcast %161 : vector<128x1xf32> to vector<128x8xf32>
    %164 = arith.mulf %163, %162 : vector<128x8xf32>
    %165 = arith.mulf %152, %160 : vector<128x1xf32>
    %166 = vector.extract_strided_slice %2 {offsets = [0, 72], sizes = [128, 8], strides = [1, 1]} : vector<128x96xf32> to vector<128x8xf32>
    %167 = vector.broadcast %165 : vector<128x1xf32> to vector<128x8xf32>
    %168 = arith.mulf %167, %166 : vector<128x8xf32>
    %169 = arith.addf %164, %168 : vector<128x8xf32>
    %170 = arith.mulf %154, %160 : vector<128x1xf32>
    %171 = vector.extract_strided_slice %2 {offsets = [0, 80], sizes = [128, 8], strides = [1, 1]} : vector<128x96xf32> to vector<128x8xf32>
    %172 = vector.broadcast %170 : vector<128x1xf32> to vector<128x8xf32>
    %173 = arith.mulf %172, %171 : vector<128x8xf32>
    %174 = arith.addf %169, %173 : vector<128x8xf32>
    %175 = arith.mulf %156, %160 : vector<128x1xf32>
    %176 = vector.extract_strided_slice %2 {offsets = [0, 88], sizes = [128, 8], strides = [1, 1]} : vector<128x96xf32> to vector<128x8xf32>
    %177 = vector.broadcast %175 : vector<128x1xf32> to vector<128x8xf32>
    %178 = arith.mulf %177, %176 : vector<128x8xf32>
    %179 = arith.addf %174, %178 : vector<128x8xf32>
    %180 = vector.extract_strided_slice %2 {offsets = [0, 24], sizes = [128, 8], strides = [1, 1]} : vector<128x96xf32> to vector<128x8xf32>
    %181 = vector.extract_strided_slice %2 {offsets = [0, 32], sizes = [128, 8], strides = [1, 1]} : vector<128x96xf32> to vector<128x8xf32>
    %182 = arith.mulf %180, %181 : vector<128x8xf32>
    %cst_27 = arith.constant dense<0.000000e+00> : vector<128xf32>
    %183 = vector.multi_reduction <add>, %182, %cst_27 [1] : vector<128x8xf32> to vector<128xf32>
    %184 = vector.shape_cast %183 : vector<128xf32> to vector<128x1xf32>
    %cst_28 = arith.constant 6.250000e-02 : f32
    %185 = vector.broadcast %cst_28 : f32 to vector<128x1xf32>
    %186 = arith.mulf %184, %185 : vector<128x1xf32>
    %187 = vector.extract_strided_slice %2 {offsets = [0, 40], sizes = [128, 8], strides = [1, 1]} : vector<128x96xf32> to vector<128x8xf32>
    %188 = arith.mulf %180, %187 : vector<128x8xf32>
    %cst_29 = arith.constant dense<0.000000e+00> : vector<128xf32>
    %189 = vector.multi_reduction <add>, %188, %cst_29 [1] : vector<128x8xf32> to vector<128xf32>
    %190 = vector.shape_cast %189 : vector<128xf32> to vector<128x1xf32>
    %cst_30 = arith.constant 6.250000e-02 : f32
    %191 = vector.broadcast %cst_30 : f32 to vector<128x1xf32>
    %192 = arith.mulf %190, %191 : vector<128x1xf32>
    %193 = vector.extract_strided_slice %2 {offsets = [0, 48], sizes = [128, 8], strides = [1, 1]} : vector<128x96xf32> to vector<128x8xf32>
    %194 = arith.mulf %180, %193 : vector<128x8xf32>
    %cst_31 = arith.constant dense<0.000000e+00> : vector<128xf32>
    %195 = vector.multi_reduction <add>, %194, %cst_31 [1] : vector<128x8xf32> to vector<128xf32>
    %196 = vector.shape_cast %195 : vector<128xf32> to vector<128x1xf32>
    %cst_32 = arith.constant 6.250000e-02 : f32
    %197 = vector.broadcast %cst_32 : f32 to vector<128x1xf32>
    %198 = arith.mulf %196, %197 : vector<128x1xf32>
    %199 = vector.extract_strided_slice %2 {offsets = [0, 56], sizes = [128, 8], strides = [1, 1]} : vector<128x96xf32> to vector<128x8xf32>
    %200 = arith.mulf %180, %199 : vector<128x8xf32>
    %cst_33 = arith.constant dense<0.000000e+00> : vector<128xf32>
    %201 = vector.multi_reduction <add>, %200, %cst_33 [1] : vector<128x8xf32> to vector<128xf32>
    %202 = vector.shape_cast %201 : vector<128xf32> to vector<128x1xf32>
    %cst_34 = arith.constant 6.250000e-02 : f32
    %203 = vector.broadcast %cst_34 : f32 to vector<128x1xf32>
    %204 = arith.mulf %202, %203 : vector<128x1xf32>
    %205 = arith.maximumf %186, %192 : vector<128x1xf32>
    %206 = arith.maximumf %205, %198 : vector<128x1xf32>
    %207 = arith.maximumf %206, %204 : vector<128x1xf32>
    %208 = arith.subf %186, %207 : vector<128x1xf32>
    %209 = math.exp %208 : vector<128x1xf32>
    %210 = arith.subf %192, %207 : vector<128x1xf32>
    %211 = math.exp %210 : vector<128x1xf32>
    %212 = arith.subf %198, %207 : vector<128x1xf32>
    %213 = math.exp %212 : vector<128x1xf32>
    %214 = arith.subf %204, %207 : vector<128x1xf32>
    %215 = math.exp %214 : vector<128x1xf32>
    %216 = arith.addf %209, %211 : vector<128x1xf32>
    %217 = arith.addf %216, %213 : vector<128x1xf32>
    %218 = arith.addf %217, %215 : vector<128x1xf32>
    %219 = tpu.reciprocal %218 {approx = true} : vector<128x1xf32> -> vector<128x1xf32>
    %220 = arith.mulf %209, %219 : vector<128x1xf32>
    %221 = vector.extract_strided_slice %2 {offsets = [0, 64], sizes = [128, 8], strides = [1, 1]} : vector<128x96xf32> to vector<128x8xf32>
    %222 = vector.broadcast %220 : vector<128x1xf32> to vector<128x8xf32>
    %223 = arith.mulf %222, %221 : vector<128x8xf32>
    %224 = arith.mulf %211, %219 : vector<128x1xf32>
    %225 = vector.extract_strided_slice %2 {offsets = [0, 72], sizes = [128, 8], strides = [1, 1]} : vector<128x96xf32> to vector<128x8xf32>
    %226 = vector.broadcast %224 : vector<128x1xf32> to vector<128x8xf32>
    %227 = arith.mulf %226, %225 : vector<128x8xf32>
    %228 = arith.addf %223, %227 : vector<128x8xf32>
    %229 = arith.mulf %213, %219 : vector<128x1xf32>
    %230 = vector.extract_strided_slice %2 {offsets = [0, 80], sizes = [128, 8], strides = [1, 1]} : vector<128x96xf32> to vector<128x8xf32>
    %231 = vector.broadcast %229 : vector<128x1xf32> to vector<128x8xf32>
    %232 = arith.mulf %231, %230 : vector<128x8xf32>
    %233 = arith.addf %228, %232 : vector<128x8xf32>
    %234 = arith.mulf %215, %219 : vector<128x1xf32>
    %235 = vector.extract_strided_slice %2 {offsets = [0, 88], sizes = [128, 8], strides = [1, 1]} : vector<128x96xf32> to vector<128x8xf32>
    %236 = vector.broadcast %234 : vector<128x1xf32> to vector<128x8xf32>
    %237 = arith.mulf %236, %235 : vector<128x8xf32>
    %238 = arith.addf %233, %237 : vector<128x8xf32>
    %239 = tpu.concatenate %61, %120, %179, %238 in 1 : vector<128x8xf32>, vector<128x8xf32>, vector<128x8xf32>, vector<128x8xf32> -> vector<128x32xf32>
    %240 = arith.truncf %239 : vector<128x32xf32> to vector<128x32xbf16>
    %c0_35 = arith.constant 0 : index
    %c0_36 = arith.constant 0 : index
    %241 = vector.load %arg3[%c0_35, %c0_36] : memref<32x32xbf16, #tpu.memory_space<vmem>>, vector<32x32xbf16>
    %cst_37 = arith.constant dense<0.000000e+00> : vector<128x32xf32>
    %242 = tpu.matmul %240, %241, %cst_37 {dimension_numbers = #tpu.dot_dimension_numbers<[1], [0], [0], [1], [0, 0, 1, 1], [], []>} : vector<128x32xbf16>, vector<32x32xbf16>, vector<128x32xf32> -> vector<128x32xf32>
    %c0_38 = arith.constant 0 : index
    %c0_39 = arith.constant 0 : index
    %243 = vector.load %arg4[%c0_38, %c0_39] : memref<128x32xf32, #tpu.memory_space<vmem>>, vector<128x32xf32>
    tpu.vector_store %arg4[%c0_38, %c0_39], %242 {strides = array<i32>} : memref<128x32xf32, #tpu.memory_space<vmem>>, vector<128x32xf32>,
    return
  }
  func.func @transform_0(%arg0: i32) -> (i32, i32) {
    %c0_i32 = arith.constant 0 : i32
    %c0_i32_0 = arith.constant 0 : i32
    return %arg0, %c0_i32 : i32, i32
  }
  func.func @transform_1(%arg0: i32) -> (i32, i32) {
    %c0_i32 = arith.constant 0 : i32
    %c0_i32_0 = arith.constant 0 : i32
    %c0_i32_1 = arith.constant 0 : i32
    return %c0_i32, %c0_i32_0 : i32, i32
  }
  func.func @transform_2(%arg0: i32) -> (i32, i32) {
    %c0_i32 = arith.constant 0 : i32
    %c0_i32_0 = arith.constant 0 : i32
    %c0_i32_1 = arith.constant 0 : i32
    return %c0_i32, %c0_i32_0 : i32, i32
  }
  func.func @transform_3(%arg0: i32) -> (i32, i32) {
    %c0_i32 = arith.constant 0 : i32
    %c0_i32_0 = arith.constant 0 : i32
    return %arg0, %c0_i32 : i32, i32
  }
}

</mosaic_0001>

<llo_original>
// kernel: tpu_custom_call.1
$region0: #{tpu_custom_call.1}
  #allocation0 [shape = 'u32[]', space=smem, size = 0x4, offset = 0x4, fixed_abs, tag = 'smem constant byte address 0x4 - core index']
  #allocation1 [shape = 'u32[144,128]{1,0:T(1,128)}', space=vmem, size = 0x12000, scoped, tag = 'internal scratch']
  %s0 = inlined_call_operand.vmem [shape: bf16[128,32], index: 0, kind: input, shape index: {}]
  %s1 = inlined_call_operand.vmem [shape: bf16[32,96], index: 1, kind: input, shape index: {}]
  %s2 = inlined_call_operand.vmem [shape: bf16[32,32], index: 2, kind: input, shape index: {}]
  %s3 = inlined_call_operand.vmem [shape: f32[128,32], index: 3, kind: output, shape index: {}]
  %s4 = sld [smem:[#allocation0]]
  $region22: #{tpu_custom_call.1} parent=0
    _
  %s6 = ssub.s32 1, %s4
  %s7 = scalar_select 0, %s6, %s4
  // Predicated region
  $region2: #{tpu_custom_call.1} parent=0 // pred_check
    _
  $region3: #{tpu_custom_call.1} parent=0 // pred_check_branch
    %9 = sbr.rel (0) target = $region5
  $region4: #{tpu_custom_call.1} parent=0 // pred_region
    _
  $region5: #{tpu_custom_call.1} parent=0 // pred_fallthru
    _
  // Predicated region
  $region6: #{tpu_custom_call.1} parent=0 // pred_check
    _
  $region7: #{tpu_custom_call.1} parent=0 // pred_check_branch
    %11 = sbr.rel (0) target = $region9
  $region8: #{tpu_custom_call.1} parent=0 // pred_region
    _
  $region9: #{tpu_custom_call.1} parent=0 // pred_fallthru
    _
  // Predicated region
  $region10: #{tpu_custom_call.1} parent=0 // pred_check
    _
  $region11: #{tpu_custom_call.1} parent=0 // pred_check_branch
    %13 = sbr.rel (0) target = $region13
  $region12: #{tpu_custom_call.1} parent=0 // pred_region
    _
  $region13: #{tpu_custom_call.1} parent=0 // pred_fallthru
    _
  %v15 = vld [vmem:[%s0] sm:$0xf]
  %v16 = vld [vmem:[%s0 + $0x4] sm:$0xf]
  %v17 = vld [vmem:[%s0 + $0x8] sm:$0xf]
  %v18 = vld [vmem:[%s0 + $0xc] sm:$0xf]
  %v19 = vld [vmem:[%s0 + $0x10] sm:$0xf]
  %v20 = vld [vmem:[%s0 + $0x14] sm:$0xf]
  %v21 = vld [vmem:[%s0 + $0x18] sm:$0xf]
  %v22 = vld [vmem:[%s0 + $0x1c] sm:$0xf]
  %v23 = vld [vmem:[%s0 + $0x20] sm:$0xf]
  %v24 = vld [vmem:[%s0 + $0x24] sm:$0xf]
  %v25 = vld [vmem:[%s0 + $0x28] sm:$0xf]
  %v26 = vld [vmem:[%s0 + $0x2c] sm:$0xf]
  %v27 = vld [vmem:[%s0 + $0x30] sm:$0xf]
  %v28 = vld [vmem:[%s0 + $0x34] sm:$0xf]
  %v29 = vld [vmem:[%s0 + $0x38] sm:$0xf]
  %v30 = vld [vmem:[%s0 + $0x3c] sm:$0xf]
  %v31 = vld [vmem:[%s1] sm:$0xf]
  %v32 = vld [vmem:[%s1 + $0x4] sm:$0xf]
  %v33 = vld [vmem:[%s1 + $0x8] sm:$0xf]
  %v34 = vld [vmem:[%s1 + $0xc] sm:$0xf]
  %v51 = vunpack.c.l.b16 %v15
  %v52 = vunpack.c.l.b16 %v16
  %v53 = vunpack.c.l.b16 %v17
  %v54 = vunpack.c.l.b16 %v18
  %v55 = vunpack.c.l.b16 %v19
  %v56 = vunpack.c.l.b16 %v20
  %v57 = vunpack.c.l.b16 %v21
  %v58 = vunpack.c.l.b16 %v22
  %v59 = vunpack.c.l.b16 %v23
  %v60 = vunpack.c.l.b16 %v24
  %v61 = vunpack.c.l.b16 %v25
  %v62 = vunpack.c.l.b16 %v26
  %v63 = vunpack.c.l.b16 %v27
  %v64 = vunpack.c.l.b16 %v28
  %v65 = vunpack.c.l.b16 %v29
  %v66 = vunpack.c.l.b16 %v30
  %v67 = vpack.c.b16 %v52, %v51
  %v68 = vpack.c.b16 %v54, %v53
  %v69 = vpack.c.b16 %v56, %v55
  %v70 = vpack.c.b16 %v58, %v57
  %v71 = vpack.c.b16 %v60, %v59
  %v72 = vpack.c.b16 %v62, %v61
  %v73 = vpack.c.b16 %v64, %v63
  %v74 = vpack.c.b16 %v66, %v65
  %v79 = vunpack.c.l.b16 %v31
  %v80 = vunpack.c.l.b16 %v32
  %v81 = vunpack.c.l.b16 %v33
  %v82 = vunpack.c.l.b16 %v34
  %v83 = vpack.c.b16 %v80, %v79
  %v84 = vpack.c.b16 %v82, %v81
  %vm87 = vcmask 261120
  %v89 = vsel %vm87, %v67, 0
  %v92 = vsel %vm87, %v68, 0
  %v95 = vsel %vm87, %v69, 0
  %v98 = vsel %vm87, %v70, 0
  %v101 = vsel %vm87, %v71, 0
  %v104 = vsel %vm87, %v72, 0
  %v107 = vsel %vm87, %v73, 0
  %v110 = vsel %vm87, %v74, 0
  %112 = vmatprep.subr.bf16.mxu0 0
  %113 = vmatpush1.bf16.msra.mxu0 %v83
  %114 = vmatprep.subr.bf16.mxu0 0
  %115 = vmatpush1.bf16.msra.mxu0 %v84
  %116 = vmatprep.subr.bf16.mxu0 0
  %117 = vmatpush1.bf16.msra.mxu0 0
  %118 = vmatprep.subr.bf16.mxu0 0
  %119 = vmatpush1.bf16.msra.mxu0 0
  %120 = vmatprep.subr.bf16.mxu0 0
  %121 = vmatpush1.bf16.msra.mxu0 0
  %122 = vmatprep.subr.bf16.mxu0 0
  %123 = vmatpush1.bf16.msra.mxu0 0
  %124 = vmatprep.subr.bf16.mxu0 0
  %125 = vmatpush1.bf16.msra.mxu0 0
  %126 = vmatprep.subr.bf16.mxu0 0
  %127 = vmatpush1.bf16.msra.mxu0 0
  %128 = vmatprep.subr.bf16.mxu0 0
  %129 = vmatpush1.bf16.msra.mxu0 0
  %130 = vmatprep.subr.bf16.mxu0 0
  %131 = vmatpush1.bf16.msra.mxu0 0
  %132 = vmatprep.subr.bf16.mxu0 0
  %133 = vmatpush1.bf16.msra.mxu0 0
  %134 = vmatprep.subr.bf16.mxu0 0
  %135 = vmatpush1.bf16.msra.mxu0 0
  %136 = vmatprep.subr.bf16.mxu0 0
  %137 = vmatpush1.bf16.msra.mxu0 0
  %138 = vmatprep.subr.bf16.mxu0 0
  %139 = vmatpush1.bf16.msra.mxu0 0
  %140 = vmatprep.subr.bf16.mxu0 0
  %141 = vmatpush1.bf16.msra.mxu0 0
  %142 = vmatprep.subr.bf16.mxu0 0
  %143 = vmatpush1.bf16.msra.mxu0 0
  %144 = vmatprep.mubr.bf16.mxu0 0
  %145 = vmatmul.mubr.bf16.gmra.mrb[0].mxu0 %v89
  %v146 = vpop.f32.mrb[0].mxu0
  %v147 = vadd.f32 0.0, %v146
  %v148 = vpop.f32.mrb[0].mxu0
  %v149 = vpop.f32.mrb[0].mxu0
  %v150 = vadd.f32 0.0, %v149
  %v151 = vpop.f32.mrb[0].mxu0
  %152 = vmatprep.mubr.bf16.mxu0 0
  %153 = vmatmul.mubr.bf16.gmra.mrb[0].mxu0 %v92
  %v154 = vpop.f32.mrb[0].mxu0
  %v155 = vadd.f32 0.0, %v154
  %v156 = vpop.f32.mrb[0].mxu0
  %v157 = vpop.f32.mrb[0].mxu0
  %v158 = vadd.f32 0.0, %v157
  %v159 = vpop.f32.mrb[0].mxu0
  %160 = vmatprep.mubr.bf16.mxu0 0
  %161 = vmatmul.mubr.bf16.gmra.mrb[0].mxu0 %v95
  %v162 = vpop.f32.mrb[0].mxu0
  %v163 = vadd.f32 0.0, %v162
  %v164 = vpop.f32.mrb[0].mxu0
  %v165 = vpop.f32.mrb[0].mxu0
  %v166 = vadd.f32 0.0, %v165
  %v167 = vpop.f32.mrb[0].mxu0
  %168 = vmatprep.mubr.bf16.mxu0 0
  %169 = vmatmul.mubr.bf16.gmra.mrb[0].mxu0 %v98
  %v170 = vpop.f32.mrb[0].mxu0
  %v171 = vadd.f32 0.0, %v170
  %v172 = vpop.f32.mrb[0].mxu0
  %v173 = vpop.f32.mrb[0].mxu0
  %v174 = vadd.f32 0.0, %v173
  %v175 = vpop.f32.mrb[0].mxu0
  %176 = vmatprep.mubr.bf16.mxu0 0
  %177 = vmatmul.mubr.bf16.gmra.mrb[0].mxu0 %v101
  %v178 = vpop.f32.mrb[0].mxu0
  %v179 = vadd.f32 0.0, %v178
  %v180 = vpop.f32.mrb[0].mxu0
  %v181 = vpop.f32.mrb[0].mxu0
  %v182 = vadd.f32 0.0, %v181
  %v183 = vpop.f32.mrb[0].mxu0
  %184 = vmatprep.mubr.bf16.mxu0 0
  %185 = vmatmul.mubr.bf16.gmra.mrb[0].mxu0 %v104
  %v186 = vpop.f32.mrb[0].mxu0
  %v187 = vadd.f32 0.0, %v186
  %v188 = vpop.f32.mrb[0].mxu0
  %v189 = vpop.f32.mrb[0].mxu0
  %v190 = vadd.f32 0.0, %v189
  %v191 = vpop.f32.mrb[0].mxu0
  %192 = vmatprep.mubr.bf16.mxu0 0
  %193 = vmatmul.mubr.bf16.gmra.mrb[0].mxu0 %v107
  %v194 = vpop.f32.mrb[0].mxu0
  %v195 = vadd.f32 0.0, %v194
  %v196 = vpop.f32.mrb[0].mxu0
  %v197 = vpop.f32.mrb[0].mxu0
  %v198 = vadd.f32 0.0, %v197
  %v199 = vpop.f32.mrb[0].mxu0
  %200 = vmatprep.mubr.bf16.mxu0 0
  %201 = vmatmul.mubr.bf16.gmra.mrb[0].mxu0 %v110
  %v202 = vpop.f32.mrb[0].mxu0
  %v203 = vadd.f32 0.0, %v202
  %v204 = vpop.f32.mrb[0].mxu0
  %v205 = vpop.f32.mrb[0].mxu0
  %v206 = vadd.f32 0.0, %v205
  %v207 = vpop.f32.mrb[0].mxu0
  %208 = vdwg.mxu0
  %225 = vrot.lane.b32.xlu0 %v147, 96
  %v226 = vpop.permute.xlu0 %225
  %227 = vrot.lane.b32.xlu0 %v150, 96
  %v228 = vpop.permute.xlu0 %227
  %229 = vrot.lane.b32.xlu0 %v155, 96
  %v230 = vpop.permute.xlu0 %229
  %231 = vrot.lane.b32.xlu0 %v158, 96
  %v232 = vpop.permute.xlu0 %231
  %233 = vrot.lane.b32.xlu0 %v163, 96
  %v234 = vpop.permute.xlu0 %233
  %235 = vrot.lane.b32.xlu0 %v166, 96
  %v236 = vpop.permute.xlu0 %235
  %237 = vrot.lane.b32.xlu0 %v171, 96
  %v238 = vpop.permute.xlu0 %237
  %239 = vrot.lane.b32.xlu0 %v174, 96
  %v240 = vpop.permute.xlu0 %239
  %241 = vrot.lane.b32.xlu0 %v179, 96
  %v242 = vpop.permute.xlu0 %241
  %243 = vrot.lane.b32.xlu0 %v182, 96
  %v244 = vpop.permute.xlu0 %243
  %245 = vrot.lane.b32.xlu0 %v187, 96
  %v246 = vpop.permute.xlu0 %245
  %247 = vrot.lane.b32.xlu0 %v190, 96
  %v248 = vpop.permute.xlu0 %247
  %249 = vrot.lane.b32.xlu0 %v195, 96
  %v250 = vpop.permute.xlu0 %249
  %251 = vrot.lane.b32.xlu0 %v198, 96
  %v252 = vpop.permute.xlu0 %251
  %253 = vrot.lane.b32.xlu0 %v203, 96
  %v254 = vpop.permute.xlu0 %253
  %255 = vrot.lane.b32.xlu0 %v206, 96
  %v256 = vpop.permute.xlu0 %255
  %v273 = vmul.f32 %v147, %v226
  %v274 = vmul.f32 %v150, %v228
  %v275 = vmul.f32 %v155, %v230
  %v276 = vmul.f32 %v158, %v232
  %v277 = vmul.f32 %v163, %v234
  %v278 = vmul.f32 %v166, %v236
  %v279 = vmul.f32 %v171, %v238
  %v280 = vmul.f32 %v174, %v240
  %v281 = vmul.f32 %v179, %v242
  %v282 = vmul.f32 %v182, %v244
  %v283 = vmul.f32 %v187, %v246
  %v284 = vmul.f32 %v190, %v248
  %v285 = vmul.f32 %v195, %v250
  %v286 = vmul.f32 %v198, %v252
  %v287 = vmul.f32 %v203, %v254
  %v288 = vmul.f32 %v206, %v256
  %vm289 = vcmask 64512
  %v290 = vsel %vm289, %v273, 0.0
  %291 = vadd.xlane.f32.xlu0 %v290
  %v292 = vpop.xlane.xlu0 %291
  %v293 = vsel %vm289, %v274, 0.0
  %294 = vadd.xlane.f32.xlu0 %v293
  %v295 = vpop.xlane.xlu0 %294
  %v296 = vsel %vm289, %v275, 0.0
  %297 = vadd.xlane.f32.xlu0 %v296
  %v298 = vpop.xlane.xlu0 %297
  %v299 = vsel %vm289, %v276, 0.0
  %300 = vadd.xlane.f32.xlu0 %v299
  %v301 = vpop.xlane.xlu0 %300
  %v302 = vsel %vm289, %v277, 0.0
  %303 = vadd.xlane.f32.xlu0 %v302
  %v304 = vpop.xlane.xlu0 %303
  %v305 = vsel %vm289, %v278, 0.0
  %306 = vadd.xlane.f32.xlu0 %v305
  %v307 = vpop.xlane.xlu0 %306
  %v308 = vsel %vm289, %v279, 0.0
  %309 = vadd.xlane.f32.xlu0 %v308
  %v310 = vpop.xlane.xlu0 %309
  %v311 = vsel %vm289, %v280, 0.0
  %312 = vadd.xlane.f32.xlu0 %v311
  %v313 = vpop.xlane.xlu0 %312
  %v314 = vsel %vm289, %v281, 0.0
  %315 = vadd.xlane.f32.xlu0 %v314
  %v316 = vpop.xlane.xlu0 %315
  %v317 = vsel %vm289, %v282, 0.0
  %318 = vadd.xlane.f32.xlu0 %v317
  %v319 = vpop.xlane.xlu0 %318
  %v320 = vsel %vm289, %v283, 0.0
  %321 = vadd.xlane.f32.xlu0 %v320
  %v322 = vpop.xlane.xlu0 %321
  %v323 = vsel %vm289, %v284, 0.0
  %324 = vadd.xlane.f32.xlu0 %v323
  %v325 = vpop.xlane.xlu0 %324
  %v326 = vsel %vm289, %v285, 0.0
  %327 = vadd.xlane.f32.xlu0 %v326
  %v328 = vpop.xlane.xlu0 %327
  %v329 = vsel %vm289, %v286, 0.0
  %330 = vadd.xlane.f32.xlu0 %v329
  %v331 = vpop.xlane.xlu0 %330
  %v332 = vsel %vm289, %v287, 0.0
  %333 = vadd.xlane.f32.xlu0 %v332
  %v334 = vpop.xlane.xlu0 %333
  %v335 = vsel %vm289, %v288, 0.0
  %336 = vadd.xlane.f32.xlu0 %v335
  %v337 = vpop.xlane.xlu0 %336
  %v338 = vmul.f32 %v292, 0.0625
  %v339 = vmul.f32 %v295, 0.0625
  %v340 = vmul.f32 %v298, 0.0625
  %v341 = vmul.f32 %v301, 0.0625
  %v342 = vmul.f32 %v304, 0.0625
  %v343 = vmul.f32 %v307, 0.0625
  %v344 = vmul.f32 %v310, 0.0625
  %v345 = vmul.f32 %v313, 0.0625
  %v346 = vmul.f32 %v316, 0.0625
  %v347 = vmul.f32 %v319, 0.0625
  %v348 = vmul.f32 %v322, 0.0625
  %v349 = vmul.f32 %v325, 0.0625
  %v350 = vmul.f32 %v328, 0.0625
  %v351 = vmul.f32 %v331, 0.0625
  %v352 = vmul.f32 %v334, 0.0625
  %v353 = vmul.f32 %v337, 0.0625
  %354 = vrot.lane.b32.xlu0 %v147, 88
  %v355 = vpop.permute.xlu0 %354
  %356 = vrot.lane.b32.xlu0 %v150, 88
  %v357 = vpop.permute.xlu0 %356
  %358 = vrot.lane.b32.xlu0 %v155, 88
  %v359 = vpop.permute.xlu0 %358
  %360 = vrot.lane.b32.xlu0 %v158, 88
  %v361 = vpop.permute.xlu0 %360
  %362 = vrot.lane.b32.xlu0 %v163, 88
  %v363 = vpop.permute.xlu0 %362
  %364 = vrot.lane.b32.xlu0 %v166, 88
  %v365 = vpop.permute.xlu0 %364
  %366 = vrot.lane.b32.xlu0 %v171, 88
  %v367 = vpop.permute.xlu0 %366
  %368 = vrot.lane.b32.xlu0 %v174, 88
  %v369 = vpop.permute.xlu0 %368
  %370 = vrot.lane.b32.xlu0 %v179, 88
  %v371 = vpop.permute.xlu0 %370
  %372 = vrot.lane.b32.xlu0 %v182, 88
  %v373 = vpop.permute.xlu0 %372
  %374 = vrot.lane.b32.xlu0 %v187, 88
  %v375 = vpop.permute.xlu0 %374
  %376 = vrot.lane.b32.xlu0 %v190, 88
  %v377 = vpop.permute.xlu0 %376
  %378 = vrot.lane.b32.xlu0 %v195, 88
  %v379 = vpop.permute.xlu0 %378
  %380 = vrot.lane.b32.xlu0 %v198, 88
  %v381 = vpop.permute.xlu0 %380
  %382 = vrot.lane.b32.xlu0 %v203, 88
  %v383 = vpop.permute.xlu0 %382
  %384 = vrot.lane.b32.xlu0 %v206, 88
  %v385 = vpop.permute.xlu0 %384
  %v402 = vmul.f32 %v147, %v355
  %v403 = vmul.f32 %v150, %v357
  %v404 = vmul.f32 %v155, %v359
  %v405 = vmul.f32 %v158, %v361
  %v406 = vmul.f32 %v163, %v363
  %v407 = vmul.f32 %v166, %v365
  %v408 = vmul.f32 %v171, %v367
  %v409 = vmul.f32 %v174, %v369
  %v410 = vmul.f32 %v179, %v371
  %v411 = vmul.f32 %v182, %v373
  %v412 = vmul.f32 %v187, %v375
  %v413 = vmul.f32 %v190, %v377
  %v414 = vmul.f32 %v195, %v379
  %v415 = vmul.f32 %v198, %v381
  %v416 = vmul.f32 %v203, %v383
  %v417 = vmul.f32 %v206, %v385
  %v418 = vsel %vm289, %v402, 0.0
  %419 = vadd.xlane.f32.xlu0 %v418
  %v420 = vpop.xlane.xlu0 %419
  %v421 = vsel %vm289, %v403, 0.0
  %422 = vadd.xlane.f32.xlu0 %v421
  %v423 = vpop.xlane.xlu0 %422
  %v424 = vsel %vm289, %v404, 0.0
  %425 = vadd.xlane.f32.xlu0 %v424
  %v426 = vpop.xlane.xlu0 %425
  %v427 = vsel %vm289, %v405, 0.0
  %428 = vadd.xlane.f32.xlu0 %v427
  %v429 = vpop.xlane.xlu0 %428
  %v430 = vsel %vm289, %v406, 0.0
  %431 = vadd.xlane.f32.xlu0 %v430
  %v432 = vpop.xlane.xlu0 %431
  %v433 = vsel %vm289, %v407, 0.0
  %434 = vadd.xlane.f32.xlu0 %v433
  %v435 = vpop.xlane.xlu0 %434
  %v436 = vsel %vm289, %v408, 0.0
  %437 = vadd.xlane.f32.xlu0 %v436
  %v438 = vpop.xlane.xlu0 %437
  %v439 = vsel %vm289, %v409, 0.0
  %440 = vadd.xlane.f32.xlu0 %v439
  %v441 = vpop.xlane.xlu0 %440
  %v442 = vsel %vm289, %v410, 0.0
  %443 = vadd.xlane.f32.xlu0 %v442
  %v444 = vpop.xlane.xlu0 %443
  %v445 = vsel %vm289, %v411, 0.0
  %446 = vadd.xlane.f32.xlu0 %v445
  %v447 = vpop.xlane.xlu0 %446
  %v448 = vsel %vm289, %v412, 0.0
  %449 = vadd.xlane.f32.xlu0 %v448
  %v450 = vpop.xlane.xlu0 %449
  %v451 = vsel %vm289, %v413, 0.0
  %452 = vadd.xlane.f32.xlu0 %v451
  %v453 = vpop.xlane.xlu0 %452
  %v454 = vsel %vm289, %v414, 0.0
  %455 = vadd.xlane.f32.xlu0 %v454
  %v456 = vpop.xlane.xlu0 %455
  %v457 = vsel %vm289, %v415, 0.0
  %458 = vadd.xlane.f32.xlu0 %v457
  %v459 = vpop.xlane.xlu0 %458
  %v460 = vsel %vm289, %v416, 0.0
  %461 = vadd.xlane.f32.xlu0 %v460
  %v462 = vpop.xlane.xlu0 %461
  %v463 = vsel %vm289, %v417, 0.0
  %464 = vadd.xlane.f32.xlu0 %v463
  %v465 = vpop.xlane.xlu0 %464
  %v466 = vmul.f32 %v420, 0.0625
  %v467 = vmul.f32 %v423, 0.0625
  %v468 = vmul.f32 %v426, 0.0625
  %v469 = vmul.f32 %v429, 0.0625
  %v470 = vmul.f32 %v432, 0.0625
  %v471 = vmul.f32 %v435, 0.0625
  %v472 = vmul.f32 %v438, 0.0625
  %v473 = vmul.f32 %v441, 0.0625
  %v474 = vmul.f32 %v444, 0.0625
  %v475 = vmul.f32 %v447, 0.0625
  %v476 = vmul.f32 %v450, 0.0625
  %v477 = vmul.f32 %v453, 0.0625
  %v478 = vmul.f32 %v456, 0.0625
  %v479 = vmul.f32 %v459, 0.0625
  %v480 = vmul.f32 %v462, 0.0625
  %v481 = vmul.f32 %v465, 0.0625
  %482 = vrot.lane.b32.xlu0 %v147, 80
  %v483 = vpop.permute.xlu0 %482
  %484 = vrot.lane.b32.xlu0 %v150, 80
  %v485 = vpop.permute.xlu0 %484
  %486 = vrot.lane.b32.xlu0 %v155, 80
  %v487 = vpop.permute.xlu0 %486
  %488 = vrot.lane.b32.xlu0 %v158, 80
  %v489 = vpop.permute.xlu0 %488
  %490 = vrot.lane.b32.xlu0 %v163, 80
  %v491 = vpop.permute.xlu0 %490
  %492 = vrot.lane.b32.xlu0 %v166, 80
  %v493 = vpop.permute.xlu0 %492
  %494 = vrot.lane.b32.xlu0 %v171, 80
  %v495 = vpop.permute.xlu0 %494
  %496 = vrot.lane.b32.xlu0 %v174, 80
  %v497 = vpop.permute.xlu0 %496
  %498 = vrot.lane.b32.xlu0 %v179, 80
  %v499 = vpop.permute.xlu0 %498
  %500 = vrot.lane.b32.xlu0 %v182, 80
  %v501 = vpop.permute.xlu0 %500
  %502 = vrot.lane.b32.xlu0 %v187, 80
  %v503 = vpop.permute.xlu0 %502
  %504 = vrot.lane.b32.xlu0 %v190, 80
  %v505 = vpop.permute.xlu0 %504
  %506 = vrot.lane.b32.xlu0 %v195, 80
  %v507 = vpop.permute.xlu0 %506
  %508 = vrot.lane.b32.xlu0 %v198, 80
  %v509 = vpop.permute.xlu0 %508
  %510 = vrot.lane.b32.xlu0 %v203, 80
  %v511 = vpop.permute.xlu0 %510
  %512 = vrot.lane.b32.xlu0 %v206, 80
  %v513 = vpop.permute.xlu0 %512
  %v530 = vmul.f32 %v147, %v483
  %v531 = vmul.f32 %v150, %v485
  %v532 = vmul.f32 %v155, %v487
  %v533 = vmul.f32 %v158, %v489
  %v534 = vmul.f32 %v163, %v491
  %v535 = vmul.f32 %v166, %v493
  %v536 = vmul.f32 %v171, %v495
  %v537 = vmul.f32 %v174, %v497
  %v538 = vmul.f32 %v179, %v499
  %v539 = vmul.f32 %v182, %v501
  %v540 = vmul.f32 %v187, %v503
  %v541 = vmul.f32 %v190, %v505
  %v542 = vmul.f32 %v195, %v507
  %v543 = vmul.f32 %v198, %v509
  %v544 = vmul.f32 %v203, %v511
  %v545 = vmul.f32 %v206, %v513
  %v546 = vsel %vm289, %v530, 0.0
  %547 = vadd.xlane.f32.xlu0 %v546
  %v548 = vpop.xlane.xlu0 %547
  %v549 = vsel %vm289, %v531, 0.0
  %550 = vadd.xlane.f32.xlu0 %v549
  %v551 = vpop.xlane.xlu0 %550
  %v552 = vsel %vm289, %v532, 0.0
  %553 = vadd.xlane.f32.xlu0 %v552
  %v554 = vpop.xlane.xlu0 %553
  %v555 = vsel %vm289, %v533, 0.0
  %556 = vadd.xlane.f32.xlu0 %v555
  %v557 = vpop.xlane.xlu0 %556
  %v558 = vsel %vm289, %v534, 0.0
  %559 = vadd.xlane.f32.xlu0 %v558
  %v560 = vpop.xlane.xlu0 %559
  %v561 = vsel %vm289, %v535, 0.0
  %562 = vadd.xlane.f32.xlu0 %v561
  %v563 = vpop.xlane.xlu0 %562
  %v564 = vsel %vm289, %v536, 0.0
  %565 = vadd.xlane.f32.xlu0 %v564
  %v566 = vpop.xlane.xlu0 %565
  %v567 = vsel %vm289, %v537, 0.0
  %568 = vadd.xlane.f32.xlu0 %v567
  %v569 = vpop.xlane.xlu0 %568
  %v570 = vsel %vm289, %v538, 0.0
  %571 = vadd.xlane.f32.xlu0 %v570
  %v572 = vpop.xlane.xlu0 %571
  %v573 = vsel %vm289, %v539, 0.0
  %574 = vadd.xlane.f32.xlu0 %v573
  %v575 = vpop.xlane.xlu0 %574
  %v576 = vsel %vm289, %v540, 0.0
  %577 = vadd.xlane.f32.xlu0 %v576
  %v578 = vpop.xlane.xlu0 %577
  %v579 = vsel %vm289, %v541, 0.0
  %580 = vadd.xlane.f32.xlu0 %v579
  %v581 = vpop.xlane.xlu0 %580
  %v582 = vsel %vm289, %v542, 0.0
  %583 = vadd.xlane.f32.xlu0 %v582
  %v584 = vpop.xlane.xlu0 %583
  %v585 = vsel %vm289, %v543, 0.0
  %586 = vadd.xlane.f32.xlu0 %v585
  %v587 = vpop.xlane.xlu0 %586
  %v588 = vsel %vm289, %v544, 0.0
  %589 = vadd.xlane.f32.xlu0 %v588
  %v590 = vpop.xlane.xlu0 %589
  %v591 = vsel %vm289, %v545, 0.0
  %592 = vadd.xlane.f32.xlu0 %v591
  %v593 = vpop.xlane.xlu0 %592
  %v594 = vmul.f32 %v548, 0.0625
  %v595 = vmul.f32 %v551, 0.0625
  %v596 = vmul.f32 %v554, 0.0625
  %v597 = vmul.f32 %v557, 0.0625
  %v598 = vmul.f32 %v560, 0.0625
  %v599 = vmul.f32 %v563, 0.0625
  %v600 = vmul.f32 %v566, 0.0625
  %v601 = vmul.f32 %v569, 0.0625
  %v602 = vmul.f32 %v572, 0.0625
  %v603 = vmul.f32 %v575, 0.0625
  %v604 = vmul.f32 %v578, 0.0625
  %v605 = vmul.f32 %v581, 0.0625
  %v606 = vmul.f32 %v584, 0.0625
  %v607 = vmul.f32 %v587, 0.0625
  %v608 = vmul.f32 %v590, 0.0625
  %v609 = vmul.f32 %v593, 0.0625
  %610 = vrot.lane.b32.xlu0 %v147, 72
  %v611 = vpop.permute.xlu0 %610
  %612 = vrot.lane.b32.xlu0 %v150, 72
  %v613 = vpop.permute.xlu0 %612
  %614 = vrot.lane.b32.xlu0 %v155, 72
  %v615 = vpop.permute.xlu0 %614
  %616 = vrot.lane.b32.xlu0 %v158, 72
  %v617 = vpop.permute.xlu0 %616
  %618 = vrot.lane.b32.xlu0 %v163, 72
  %v619 = vpop.permute.xlu0 %618
  %620 = vrot.lane.b32.xlu0 %v166, 72
  %v621 = vpop.permute.xlu0 %620
  %622 = vrot.lane.b32.xlu0 %v171, 72
  %v623 = vpop.permute.xlu0 %622
  %624 = vrot.lane.b32.xlu0 %v174, 72
  %v625 = vpop.permute.xlu0 %624
  %626 = vrot.lane.b32.xlu0 %v179, 72
  %v627 = vpop.permute.xlu0 %626
  %628 = vrot.lane.b32.xlu0 %v182, 72
  %v629 = vpop.permute.xlu0 %628
  %630 = vrot.lane.b32.xlu0 %v187, 72
  %v631 = vpop.permute.xlu0 %630
  %632 = vrot.lane.b32.xlu0 %v190, 72
  %v633 = vpop.permute.xlu0 %632
  %634 = vrot.lane.b32.xlu0 %v195, 72
  %v635 = vpop.permute.xlu0 %634
  %636 = vrot.lane.b32.xlu0 %v198, 72
  %v637 = vpop.permute.xlu0 %636
  %638 = vrot.lane.b32.xlu0 %v203, 72
  %v639 = vpop.permute.xlu0 %638
  %640 = vrot.lane.b32.xlu0 %v206, 72
  %v641 = vpop.permute.xlu0 %640
  %v658 = vmul.f32 %v147, %v611
  %v659 = vmul.f32 %v150, %v613
  %v660 = vmul.f32 %v155, %v615
  %v661 = vmul.f32 %v158, %v617
  %v662 = vmul.f32 %v163, %v619
  %v663 = vmul.f32 %v166, %v621
  %v664 = vmul.f32 %v171, %v623
  %v665 = vmul.f32 %v174, %v625
  %v666 = vmul.f32 %v179, %v627
  %v667 = vmul.f32 %v182, %v629
  %v668 = vmul.f32 %v187, %v631
  %v669 = vmul.f32 %v190, %v633
  %v670 = vmul.f32 %v195, %v635
  %v671 = vmul.f32 %v198, %v637
  %v672 = vmul.f32 %v203, %v639
  %v673 = vmul.f32 %v206, %v641
  %v674 = vsel %vm289, %v658, 0.0
  %675 = vadd.xlane.f32.xlu0 %v674
  %v676 = vpop.xlane.xlu0 %675
  %v677 = vsel %vm289, %v659, 0.0
  %678 = vadd.xlane.f32.xlu0 %v677
  %v679 = vpop.xlane.xlu0 %678
  %v680 = vsel %vm289, %v660, 0.0
  %681 = vadd.xlane.f32.xlu0 %v680
  %v682 = vpop.xlane.xlu0 %681
  %v683 = vsel %vm289, %v661, 0.0
  %684 = vadd.xlane.f32.xlu0 %v683
  %v685 = vpop.xlane.xlu0 %684
  %v686 = vsel %vm289, %v662, 0.0
  %687 = vadd.xlane.f32.xlu0 %v686
  %v688 = vpop.xlane.xlu0 %687
  %v689 = vsel %vm289, %v663, 0.0
  %690 = vadd.xlane.f32.xlu0 %v689
  %v691 = vpop.xlane.xlu0 %690
  %v692 = vsel %vm289, %v664, 0.0
  %693 = vadd.xlane.f32.xlu0 %v692
  %v694 = vpop.xlane.xlu0 %693
  %v695 = vsel %vm289, %v665, 0.0
  %696 = vadd.xlane.f32.xlu0 %v695
  %v697 = vpop.xlane.xlu0 %696
  %v698 = vsel %vm289, %v666, 0.0
  %699 = vadd.xlane.f32.xlu0 %v698
  %v700 = vpop.xlane.xlu0 %699
  %v701 = vsel %vm289, %v667, 0.0
  %702 = vadd.xlane.f32.xlu0 %v701
  %v703 = vpop.xlane.xlu0 %702
  %v704 = vsel %vm289, %v668, 0.0
  %705 = vadd.xlane.f32.xlu0 %v704
  %v706 = vpop.xlane.xlu0 %705
  %v707 = vsel %vm289, %v669, 0.0
  %708 = vadd.xlane.f32.xlu0 %v707
  %v709 = vpop.xlane.xlu0 %708
  %v710 = vsel %vm289, %v670, 0.0
  %711 = vadd.xlane.f32.xlu0 %v710
  %v712 = vpop.xlane.xlu0 %711
  %v713 = vsel %vm289, %v671, 0.0
  %714 = vadd.xlane.f32.xlu0 %v713
  %v715 = vpop.xlane.xlu0 %714
  %v716 = vsel %vm289, %v672, 0.0
  %717 = vadd.xlane.f32.xlu0 %v716
  %v718 = vpop.xlane.xlu0 %717
  %v719 = vsel %vm289, %v673, 0.0
  %720 = vadd.xlane.f32.xlu0 %v719
  %v721 = vpop.xlane.xlu0 %720
  %v722 = vmul.f32 %v676, 0.0625
  %v723 = vmul.f32 %v679, 0.0625
  %v724 = vmul.f32 %v682, 0.0625
  %v725 = vmul.f32 %v685, 0.0625
  %v726 = vmul.f32 %v688, 0.0625
  %v727 = vmul.f32 %v691, 0.0625
  %v728 = vmul.f32 %v694, 0.0625
  %v729 = vmul.f32 %v697, 0.0625
  %v730 = vmul.f32 %v700, 0.0625
  %v731 = vmul.f32 %v703, 0.0625
  %v732 = vmul.f32 %v706, 0.0625
  %v733 = vmul.f32 %v709, 0.0625
  %v734 = vmul.f32 %v712, 0.0625
  %v735 = vmul.f32 %v715, 0.0625
  %v736 = vmul.f32 %v718, 0.0625
  %v737 = vmul.f32 %v721, 0.0625
  %v738 = vmax.f32 %v338, %v466
  %v739 = vmax.f32 %v339, %v467
  %v740 = vmax.f32 %v340, %v468
  %v741 = vmax.f32 %v341, %v469
  %v742 = vmax.f32 %v342, %v470
  %v743 = vmax.f32 %v343, %v471
  %v744 = vmax.f32 %v344, %v472
  %v745 = vmax.f32 %v345, %v473
  %v746 = vmax.f32 %v346, %v474
  %v747 = vmax.f32 %v347, %v475
  %v748 = vmax.f32 %v348, %v476
  %v749 = vmax.f32 %v349, %v477
  %v750 = vmax.f32 %v350, %v478
  %v751 = vmax.f32 %v351, %v479
  %v752 = vmax.f32 %v352, %v480
  %v753 = vmax.f32 %v353, %v481
  %v754 = vmax.f32 %v738, %v594
  %v755 = vmax.f32 %v739, %v595
  %v756 = vmax.f32 %v740, %v596
  %v757 = vmax.f32 %v741, %v597
  %v758 = vmax.f32 %v742, %v598
  %v759 = vmax.f32 %v743, %v599
  %v760 = vmax.f32 %v744, %v600
  %v761 = vmax.f32 %v745, %v601
  %v762 = vmax.f32 %v746, %v602
  %v763 = vmax.f32 %v747, %v603
  %v764 = vmax.f32 %v748, %v604
  %v765 = vmax.f32 %v749, %v605
  %v766 = vmax.f32 %v750, %v606
  %v767 = vmax.f32 %v751, %v607
  %v768 = vmax.f32 %v752, %v608
  %v769 = vmax.f32 %v753, %v609
  %v770 = vmax.f32 %v754, %v722
  %v771 = vmax.f32 %v755, %v723
  %v772 = vmax.f32 %v756, %v724
  %v773 = vmax.f32 %v757, %v725
  %v774 = vmax.f32 %v758, %v726
  %v775 = vmax.f32 %v759, %v727
  %v776 = vmax.f32 %v760, %v728
  %v777 = vmax.f32 %v761, %v729
  %v778 = vmax.f32 %v762, %v730
  %v779 = vmax.f32 %v763, %v731
  %v780 = vmax.f32 %v764, %v732
  %v781 = vmax.f32 %v765, %v733
  %v782 = vmax.f32 %v766, %v734
  %v783 = vmax.f32 %v767, %v735
  %v784 = vmax.f32 %v768, %v736
  %v785 = vmax.f32 %v769, %v737
  %v786 = vsub.f32 %v338, %v770
  %v787 = vsub.f32 %v339, %v771
  %v788 = vsub.f32 %v340, %v772
  %v789 = vsub.f32 %v341, %v773
  %v790 = vsub.f32 %v342, %v774
  %v791 = vsub.f32 %v343, %v775
  %v792 = vsub.f32 %v344, %v776
  %v793 = vsub.f32 %v345, %v777
  %v794 = vsub.f32 %v346, %v778
  %v795 = vsub.f32 %v347, %v779
  %v796 = vsub.f32 %v348, %v780
  %v797 = vsub.f32 %v349, %v781
  %v798 = vsub.f32 %v350, %v782
  %v799 = vsub.f32 %v351, %v783
  %v800 = vsub.f32 %v352, %v784
  %v801 = vsub.f32 %v353, %v785
  %v802 = vmul.f32 %v786, 1.442695
  %v803 = vpow.pop %v802
  %v804 = vmul.f32 %v787, 1.442695
  %v805 = vpow.pop %v804
  %v806 = vmul.f32 %v788, 1.442695
  %v807 = vpow.pop %v806
  %v808 = vmul.f32 %v789, 1.442695
  %v809 = vpow.pop %v808
  %v810 = vmul.f32 %v790, 1.442695
  %v811 = vpow.pop %v810
  %v812 = vmul.f32 %v791, 1.442695
  %v813 = vpow.pop %v812
  %v814 = vmul.f32 %v792, 1.442695
  %v815 = vpow.pop %v814
  %v816 = vmul.f32 %v793, 1.442695
  %v817 = vpow.pop %v816
  %v818 = vmul.f32 %v794, 1.442695
  %v819 = vpow.pop %v818
  %v820 = vmul.f32 %v795, 1.442695
  %v821 = vpow.pop %v820
  %v822 = vmul.f32 %v796, 1.442695
  %v823 = vpow.pop %v822
  %v824 = vmul.f32 %v797, 1.442695
  %v825 = vpow.pop %v824
  %v826 = vmul.f32 %v798, 1.442695
  %v827 = vpow.pop %v826
  %v828 = vmul.f32 %v799, 1.442695
  %v829 = vpow.pop %v828
  %v830 = vmul.f32 %v800, 1.442695
  %v831 = vpow.pop %v830
  %v832 = vmul.f32 %v801, 1.442695
  %v833 = vpow.pop %v832
  %v834 = vsub.f32 %v466, %v770
  %v835 = vsub.f32 %v467, %v771
  %v836 = vsub.f32 %v468, %v772
  %v837 = vsub.f32 %v469, %v773
  %v838 = vsub.f32 %v470, %v774
  %v839 = vsub.f32 %v471, %v775
  %v840 = vsub.f32 %v472, %v776
  %v841 = vsub.f32 %v473, %v777
  %v842 = vsub.f32 %v474, %v778
  %v843 = vsub.f32 %v475, %v779
  %v844 = vsub.f32 %v476, %v780
  %v845 = vsub.f32 %v477, %v781
  %v846 = vsub.f32 %v478, %v782
  %v847 = vsub.f32 %v479, %v783
  %v848 = vsub.f32 %v480, %v784
  %v849 = vsub.f32 %v481, %v785
  %v850 = vmul.f32 %v834, 1.442695
  %v851 = vpow.pop %v850
  %v852 = vmul.f32 %v835, 1.442695
  %v853 = vpow.pop %v852
  %v854 = vmul.f32 %v836, 1.442695
  %v855 = vpow.pop %v854
  %v856 = vmul.f32 %v837, 1.442695
  %v857 = vpow.pop %v856
  %v858 = vmul.f32 %v838, 1.442695
  %v859 = vpow.pop %v858
  %v860 = vmul.f32 %v839, 1.442695
  %v861 = vpow.pop %v860
  %v862 = vmul.f32 %v840, 1.442695
  %v863 = vpow.pop %v862
  %v864 = vmul.f32 %v841, 1.442695
  %v865 = vpow.pop %v864
  %v866 = vmul.f32 %v842, 1.442695
  %v867 = vpow.pop %v866
  %v868 = vmul.f32 %v843, 1.442695
  %v869 = vpow.pop %v868
  %v870 = vmul.f32 %v844, 1.442695
  %v871 = vpow.pop %v870
  %v872 = vmul.f32 %v845, 1.442695
  %v873 = vpow.pop %v872
  %v874 = vmul.f32 %v846, 1.442695
  %v875 = vpow.pop %v874
  %v876 = vmul.f32 %v847, 1.442695
  %v877 = vpow.pop %v876
  %v878 = vmul.f32 %v848, 1.442695
  %v879 = vpow.pop %v878
  %v880 = vmul.f32 %v849, 1.442695
  %v881 = vpow.pop %v880
  %v882 = vsub.f32 %v594, %v770
  %v883 = vsub.f32 %v595, %v771
  %v884 = vsub.f32 %v596, %v772
  %v885 = vsub.f32 %v597, %v773
  %v886 = vsub.f32 %v598, %v774
  %v887 = vsub.f32 %v599, %v775
  %v888 = vsub.f32 %v600, %v776
  %v889 = vsub.f32 %v601, %v777
  %v890 = vsub.f32 %v602, %v778
  %v891 = vsub.f32 %v603, %v779
  %v892 = vsub.f32 %v604, %v780
  %v893 = vsub.f32 %v605, %v781
  %v894 = vsub.f32 %v606, %v782
  %v895 = vsub.f32 %v607, %v783
  %v896 = vsub.f32 %v608, %v784
  %v897 = vsub.f32 %v609, %v785
  %v898 = vmul.f32 %v882, 1.442695
  %v899 = vpow.pop %v898
  %v900 = vmul.f32 %v883, 1.442695
  %v901 = vpow.pop %v900
  %v902 = vmul.f32 %v884, 1.442695
  %v903 = vpow.pop %v902
  %v904 = vmul.f32 %v885, 1.442695
  %v905 = vpow.pop %v904
  %v906 = vmul.f32 %v886, 1.442695
  %v907 = vpow.pop %v906
  %v908 = vmul.f32 %v887, 1.442695
  %v909 = vpow.pop %v908
  %v910 = vmul.f32 %v888, 1.442695
  %v911 = vpow.pop %v910
  %v912 = vmul.f32 %v889, 1.442695
  %v913 = vpow.pop %v912
  %v914 = vmul.f32 %v890, 1.442695
  %v915 = vpow.pop %v914
  %v916 = vmul.f32 %v891, 1.442695
  %v917 = vpow.pop %v916
  %v918 = vmul.f32 %v892, 1.442695
  %v919 = vpow.pop %v918
  %v920 = vmul.f32 %v893, 1.442695
  %v921 = vpow.pop %v920
  %v922 = vmul.f32 %v894, 1.442695
  %v923 = vpow.pop %v922
  %v924 = vmul.f32 %v895, 1.442695
  %v925 = vpow.pop %v924
  %v926 = vmul.f32 %v896, 1.442695
  %v927 = vpow.pop %v926
  %v928 = vmul.f32 %v897, 1.442695
  %v929 = vpow.pop %v928
  %v930 = vsub.f32 %v722, %v770
  %v931 = vsub.f32 %v723, %v771
  %v932 = vsub.f32 %v724, %v772
  %v933 = vsub.f32 %v725, %v773
  %v934 = vsub.f32 %v726, %v774
  %v935 = vsub.f32 %v727, %v775
  %v936 = vsub.f32 %v728, %v776
  %v937 = vsub.f32 %v729, %v777
  %v938 = vsub.f32 %v730, %v778
  %v939 = vsub.f32 %v731, %v779
  %v940 = vsub.f32 %v732, %v780
  %v941 = vsub.f32 %v733, %v781
  %v942 = vsub.f32 %v734, %v782
  %v943 = vsub.f32 %v735, %v783
  %v944 = vsub.f32 %v736, %v784
  %v945 = vsub.f32 %v737, %v785
  %v946 = vmul.f32 %v930, 1.442695
  %v947 = vpow.pop %v946
  %v948 = vmul.f32 %v931, 1.442695
  %v949 = vpow.pop %v948
  %v950 = vmul.f32 %v932, 1.442695
  %v951 = vpow.pop %v950
  %v952 = vmul.f32 %v933, 1.442695
  %v953 = vpow.pop %v952
  %v954 = vmul.f32 %v934, 1.442695
  %v955 = vpow.pop %v954
  %v956 = vmul.f32 %v935, 1.442695
  %v957 = vpow.pop %v956
  %v958 = vmul.f32 %v936, 1.442695
  %v959 = vpow.pop %v958
  %v960 = vmul.f32 %v937, 1.442695
  %v961 = vpow.pop %v960
  %v962 = vmul.f32 %v938, 1.442695
  %v963 = vpow.pop %v962
  %v964 = vmul.f32 %v939, 1.442695
  %v965 = vpow.pop %v964
  %v966 = vmul.f32 %v940, 1.442695
  %v967 = vpow.pop %v966
  %v968 = vmul.f32 %v941, 1.442695
  %v969 = vpow.pop %v968
  %v970 = vmul.f32 %v942, 1.442695
  %v971 = vpow.pop %v970
  %v972 = vmul.f32 %v943, 1.442695
  %v973 = vpow.pop %v972
  %v974 = vmul.f32 %v944, 1.442695
  %v975 = vpow.pop %v974
  %v976 = vmul.f32 %v945, 1.442695
  %v977 = vpow.pop %v976
  %v978 = vadd.f32 %v803, %v851
  %v979 = vadd.f32 %v805, %v853
  %v980 = vadd.f32 %v807, %v855
  %v981 = vadd.f32 %v809, %v857
  %v982 = vadd.f32 %v811, %v859
  %v983 = vadd.f32 %v813, %v861
  %v984 = vadd.f32 %v815, %v863
  %v985 = vadd.f32 %v817, %v865
  %v986 = vadd.f32 %v819, %v867
  %v987 = vadd.f32 %v821, %v869
  %v988 = vadd.f32 %v823, %v871
  %v989 = vadd.f32 %v825, %v873
  %v990 = vadd.f32 %v827, %v875
  %v991 = vadd.f32 %v829, %v877
  %v992 = vadd.f32 %v831, %v879
  %v993 = vadd.f32 %v833, %v881
  %v994 = vadd.f32 %v978, %v899
  %v995 = vadd.f32 %v979, %v901
  %v996 = vadd.f32 %v980, %v903
  %v997 = vadd.f32 %v981, %v905
  %v998 = vadd.f32 %v982, %v907
  %v999 = vadd.f32 %v983, %v909
  %v1000 = vadd.f32 %v984, %v911
  %v1001 = vadd.f32 %v985, %v913
  %v1002 = vadd.f32 %v986, %v915
  %v1003 = vadd.f32 %v987, %v917
  %v1004 = vadd.f32 %v988, %v919
  %v1005 = vadd.f32 %v989, %v921
  %v1006 = vadd.f32 %v990, %v923
  %v1007 = vadd.f32 %v991, %v925
  %v1008 = vadd.f32 %v992, %v927
  %v1009 = vadd.f32 %v993, %v929
  %v1010 = vadd.f32 %v994, %v947
  %v1011 = vadd.f32 %v995, %v949
  %v1012 = vadd.f32 %v996, %v951
  %v1013 = vadd.f32 %v997, %v953
  %v1014 = vadd.f32 %v998, %v955
  %v1015 = vadd.f32 %v999, %v957
  %v1016 = vadd.f32 %v1000, %v959
  %v1017 = vadd.f32 %v1001, %v961
  %v1018 = vadd.f32 %v1002, %v963
  %v1019 = vadd.f32 %v1003, %v965
  %v1020 = vadd.f32 %v1004, %v967
  %v1021 = vadd.f32 %v1005, %v969
  %v1022 = vadd.f32 %v1006, %v971
  %v1023 = vadd.f32 %v1007, %v973
  %v1024 = vadd.f32 %v1008, %v975
  %v1025 = vadd.f32 %v1009, %v977
  %v1026 = vrcp.pop %v1010
  %v1027 = vrcp.pop %v1011
  %v1028 = vrcp.pop %v1012
  %v1029 = vrcp.pop %v1013
  %v1030 = vrcp.pop %v1014
  %v1031 = vrcp.pop %v1015
  %v1032 = vrcp.pop %v1016
  %v1033 = vrcp.pop %v1017
  %v1034 = vrcp.pop %v1018
  %v1035 = vrcp.pop %v1019
  %v1036 = vrcp.pop %v1020
  %v1037 = vrcp.pop %v1021
  %v1038 = vrcp.pop %v1022
  %v1039 = vrcp.pop %v1023
  %v1040 = vrcp.pop %v1024
  %v1041 = vrcp.pop %v1025
  %v1042 = vmul.f32 %v803, %v1026
  %v1043 = vmul.f32 %v805, %v1027
  %v1044 = vmul.f32 %v807, %v1028
  %v1045 = vmul.f32 %v809, %v1029
  %v1046 = vmul.f32 %v811, %v1030
  %v1047 = vmul.f32 %v813, %v1031
  %v1048 = vmul.f32 %v815, %v1032
  %v1049 = vmul.f32 %v817, %v1033
  %v1050 = vmul.f32 %v819, %v1034
  %v1051 = vmul.f32 %v821, %v1035
  %v1052 = vmul.f32 %v823, %v1036
  %v1053 = vmul.f32 %v825, %v1037
  %v1054 = vmul.f32 %v827, %v1038
  %v1055 = vmul.f32 %v829, %v1039
  %v1056 = vmul.f32 %v831, %v1040
  %v1057 = vmul.f32 %v833, %v1041
  %v1058 = vmul.f32 %v1042, %v147
  %v1059 = vmul.f32 %v1043, %v150
  %v1060 = vmul.f32 %v1044, %v155
  %v1061 = vmul.f32 %v1045, %v158
  %v1062 = vmul.f32 %v1046, %v163
  %v1063 = vmul.f32 %v1047, %v166
  %v1064 = vmul.f32 %v1048, %v171
  %v1065 = vmul.f32 %v1049, %v174
  %v1066 = vmul.f32 %v1050, %v179
  %v1067 = vmul.f32 %v1051, %v182
  %v1068 = vmul.f32 %v1052, %v187
  %v1069 = vmul.f32 %v1053, %v190
  %v1070 = vmul.f32 %v1054, %v195
  %v1071 = vmul.f32 %v1055, %v198
  %v1072 = vmul.f32 %v1056, %v203
  %v1073 = vmul.f32 %v1057, %v206
  %v1074 = vmul.f32 %v851, %v1026
  %v1075 = vmul.f32 %v853, %v1027
  %v1076 = vmul.f32 %v855, %v1028
  %v1077 = vmul.f32 %v857, %v1029
  %v1078 = vmul.f32 %v859, %v1030
  %v1079 = vmul.f32 %v861, %v1031
  %v1080 = vmul.f32 %v863, %v1032
  %v1081 = vmul.f32 %v865, %v1033
  %v1082 = vmul.f32 %v867, %v1034
  %v1083 = vmul.f32 %v869, %v1035
  %v1084 = vmul.f32 %v871, %v1036
  %v1085 = vmul.f32 %v873, %v1037
  %v1086 = vmul.f32 %v875, %v1038
  %v1087 = vmul.f32 %v877, %v1039
  %v1088 = vmul.f32 %v879, %v1040
  %v1089 = vmul.f32 %v881, %v1041
  %v1090 = vmul.f32 %v1074, %v147
  %v1091 = vmul.f32 %v1075, %v150
  %v1092 = vmul.f32 %v1076, %v155
  %v1093 = vmul.f32 %v1077, %v158
  %v1094 = vmul.f32 %v1078, %v163
  %v1095 = vmul.f32 %v1079, %v166
  %v1096 = vmul.f32 %v1080, %v171
  %v1097 = vmul.f32 %v1081, %v174
  %v1098 = vmul.f32 %v1082, %v179
  %v1099 = vmul.f32 %v1083, %v182
  %v1100 = vmul.f32 %v1084, %v187
  %v1101 = vmul.f32 %v1085, %v190
  %v1102 = vmul.f32 %v1086, %v195
  %v1103 = vmul.f32 %v1087, %v198
  %v1104 = vmul.f32 %v1088, %v203
  %v1105 = vmul.f32 %v1089, %v206
  %1122 = vrot.lane.b32.xlu0 %v1090, 120
  %v1123 = vpop.permute.xlu0 %1122
  %1124 = vrot.lane.b32.xlu0 %v1091, 120
  %v1125 = vpop.permute.xlu0 %1124
  %1126 = vrot.lane.b32.xlu0 %v1092, 120
  %v1127 = vpop.permute.xlu0 %1126
  %1128 = vrot.lane.b32.xlu0 %v1093, 120
  %v1129 = vpop.permute.xlu0 %1128
  %1130 = vrot.lane.b32.xlu0 %v1094, 120
  %v1131 = vpop.permute.xlu0 %1130
  %1132 = vrot.lane.b32.xlu0 %v1095, 120
  %v1133 = vpop.permute.xlu0 %1132
  %1134 = vrot.lane.b32.xlu0 %v1096, 120
  %v1135 = vpop.permute.xlu0 %1134
  %1136 = vrot.lane.b32.xlu0 %v1097, 120
  %v1137 = vpop.permute.xlu0 %1136
  %1138 = vrot.lane.b32.xlu0 %v1098, 120
  %v1139 = vpop.permute.xlu0 %1138
  %1140 = vrot.lane.b32.xlu0 %v1099, 120
  %v1141 = vpop.permute.xlu0 %1140
  %1142 = vrot.lane.b32.xlu0 %v1100, 120
  %v1143 = vpop.permute.xlu0 %1142
  %1144 = vrot.lane.b32.xlu0 %v1101, 120
  %v1145 = vpop.permute.xlu0 %1144
  %1146 = vrot.lane.b32.xlu0 %v1102, 120
  %v1147 = vpop.permute.xlu0 %1146
  %1148 = vrot.lane.b32.xlu0 %v1103, 120
  %v1149 = vpop.permute.xlu0 %1148
  %1150 = vrot.lane.b32.xlu0 %v1104, 120
  %v1151 = vpop.permute.xlu0 %1150
  %1152 = vrot.lane.b32.xlu0 %v1105, 120
  %v1153 = vpop.permute.xlu0 %1152
  %v1170 = vadd.f32 %v1058, %v1123
  %v1171 = vadd.f32 %v1059, %v1125
  %v1172 = vadd.f32 %v1060, %v1127
  %v1173 = vadd.f32 %v1061, %v1129
  %v1174 = vadd.f32 %v1062, %v1131
  %v1175 = vadd.f32 %v1063, %v1133
  %v1176 = vadd.f32 %v1064, %v1135
  %v1177 = vadd.f32 %v1065, %v1137
  %v1178 = vadd.f32 %v1066, %v1139
  %v1179 = vadd.f32 %v1067, %v1141
  %v1180 = vadd.f32 %v1068, %v1143
  %v1181 = vadd.f32 %v1069, %v1145
  %v1182 = vadd.f32 %v1070, %v1147
  %v1183 = vadd.f32 %v1071, %v1149
  %v1184 = vadd.f32 %v1072, %v1151
  %v1185 = vadd.f32 %v1073, %v1153
  %v1186 = vmul.f32 %v899, %v1026
  %v1187 = vmul.f32 %v901, %v1027
  %v1188 = vmul.f32 %v903, %v1028
  %v1189 = vmul.f32 %v905, %v1029
  %v1190 = vmul.f32 %v907, %v1030
  %v1191 = vmul.f32 %v909, %v1031
  %v1192 = vmul.f32 %v911, %v1032
  %v1193 = vmul.f32 %v913, %v1033
  %v1194 = vmul.f32 %v915, %v1034
  %v1195 = vmul.f32 %v917, %v1035
  %v1196 = vmul.f32 %v919, %v1036
  %v1197 = vmul.f32 %v921, %v1037
  %v1198 = vmul.f32 %v923, %v1038
  %v1199 = vmul.f32 %v925, %v1039
  %v1200 = vmul.f32 %v927, %v1040
  %v1201 = vmul.f32 %v929, %v1041
  %v1202 = vmul.f32 %v1186, %v147
  %v1203 = vmul.f32 %v1187, %v150
  %v1204 = vmul.f32 %v1188, %v155
  %v1205 = vmul.f32 %v1189, %v158
  %v1206 = vmul.f32 %v1190, %v163
  %v1207 = vmul.f32 %v1191, %v166
  %v1208 = vmul.f32 %v1192, %v171
  %v1209 = vmul.f32 %v1193, %v174
  %v1210 = vmul.f32 %v1194, %v179
  %v1211 = vmul.f32 %v1195, %v182
  %v1212 = vmul.f32 %v1196, %v187
  %v1213 = vmul.f32 %v1197, %v190
  %v1214 = vmul.f32 %v1198, %v195
  %v1215 = vmul.f32 %v1199, %v198
  %v1216 = vmul.f32 %v1200, %v203
  %v1217 = vmul.f32 %v1201, %v206
  %1234 = vrot.lane.b32.xlu0 %v1202, 112
  %v1235 = vpop.permute.xlu0 %1234
  %1236 = vrot.lane.b32.xlu0 %v1203, 112
  %v1237 = vpop.permute.xlu0 %1236
  %1238 = vrot.lane.b32.xlu0 %v1204, 112
  %v1239 = vpop.permute.xlu0 %1238
  %1240 = vrot.lane.b32.xlu0 %v1205, 112
  %v1241 = vpop.permute.xlu0 %1240
  %1242 = vrot.lane.b32.xlu0 %v1206, 112
  %v1243 = vpop.permute.xlu0 %1242
  %1244 = vrot.lane.b32.xlu0 %v1207, 112
  %v1245 = vpop.permute.xlu0 %1244
  %1246 = vrot.lane.b32.xlu0 %v1208, 112
  %v1247 = vpop.permute.xlu0 %1246
  %1248 = vrot.lane.b32.xlu0 %v1209, 112
  %v1249 = vpop.permute.xlu0 %1248
  %1250 = vrot.lane.b32.xlu0 %v1210, 112
  %v1251 = vpop.permute.xlu0 %1250
  %1252 = vrot.lane.b32.xlu0 %v1211, 112
  %v1253 = vpop.permute.xlu0 %1252
  %1254 = vrot.lane.b32.xlu0 %v1212, 112
  %v1255 = vpop.permute.xlu0 %1254
  %1256 = vrot.lane.b32.xlu0 %v1213, 112
  %v1257 = vpop.permute.xlu0 %1256
  %1258 = vrot.lane.b32.xlu0 %v1214, 112
  %v1259 = vpop.permute.xlu0 %1258
  %1260 = vrot.lane.b32.xlu0 %v1215, 112
  %v1261 = vpop.permute.xlu0 %1260
  %1262 = vrot.lane.b32.xlu0 %v1216, 112
  %v1263 = vpop.permute.xlu0 %1262
  %1264 = vrot.lane.b32.xlu0 %v1217, 112
  %v1265 = vpop.permute.xlu0 %1264
  %v1282 = vadd.f32 %v1170, %v1235
  %v1283 = vadd.f32 %v1171, %v1237
  %v1284 = vadd.f32 %v1172, %v1239
  %v1285 = vadd.f32 %v1173, %v1241
  %v1286 = vadd.f32 %v1174, %v1243
  %v1287 = vadd.f32 %v1175, %v1245
  %v1288 = vadd.f32 %v1176, %v1247
  %v1289 = vadd.f32 %v1177, %v1249
  %v1290 = vadd.f32 %v1178, %v1251
  %v1291 = vadd.f32 %v1179, %v1253
  %v1292 = vadd.f32 %v1180, %v1255
  %v1293 = vadd.f32 %v1181, %v1257
  %v1294 = vadd.f32 %v1182, %v1259
  %v1295 = vadd.f32 %v1183, %v1261
  %v1296 = vadd.f32 %v1184, %v1263
  %v1297 = vadd.f32 %v1185, %v1265
  %v1298 = vmul.f32 %v947, %v1026
  %v1299 = vmul.f32 %v949, %v1027
  %v1300 = vmul.f32 %v951, %v1028
  %v1301 = vmul.f32 %v953, %v1029
  %v1302 = vmul.f32 %v955, %v1030
  %v1303 = vmul.f32 %v957, %v1031
  %v1304 = vmul.f32 %v959, %v1032
  %v1305 = vmul.f32 %v961, %v1033
  %v1306 = vmul.f32 %v963, %v1034
  %v1307 = vmul.f32 %v965, %v1035
  %v1308 = vmul.f32 %v967, %v1036
  %v1309 = vmul.f32 %v969, %v1037
  %v1310 = vmul.f32 %v971, %v1038
  %v1311 = vmul.f32 %v973, %v1039
  %v1312 = vmul.f32 %v975, %v1040
  %v1313 = vmul.f32 %v977, %v1041
  %v1314 = vmul.f32 %v1298, %v147
  %v1315 = vmul.f32 %v1299, %v150
  %v1316 = vmul.f32 %v1300, %v155
  %v1317 = vmul.f32 %v1301, %v158
  %v1318 = vmul.f32 %v1302, %v163
  %v1319 = vmul.f32 %v1303, %v166
  %v1320 = vmul.f32 %v1304, %v171
  %v1321 = vmul.f32 %v1305, %v174
  %v1322 = vmul.f32 %v1306, %v179
  %v1323 = vmul.f32 %v1307, %v182
  %v1324 = vmul.f32 %v1308, %v187
  %v1325 = vmul.f32 %v1309, %v190
  %v1326 = vmul.f32 %v1310, %v195
  %v1327 = vmul.f32 %v1311, %v198
  %v1328 = vmul.f32 %v1312, %v203
  %v1329 = vmul.f32 %v1313, %v206
  %1346 = vrot.lane.b32.xlu0 %v1314, 104
  %v1347 = vpop.permute.xlu0 %1346
  %1348 = vrot.lane.b32.xlu0 %v1315, 104
  %v1349 = vpop.permute.xlu0 %1348
  %1350 = vrot.lane.b32.xlu0 %v1316, 104
  %v1351 = vpop.permute.xlu0 %1350
  %1352 = vrot.lane.b32.xlu0 %v1317, 104
  %v1353 = vpop.permute.xlu0 %1352
  %1354 = vrot.lane.b32.xlu0 %v1318, 104
  %v1355 = vpop.permute.xlu0 %1354
  %1356 = vrot.lane.b32.xlu0 %v1319, 104
  %v1357 = vpop.permute.xlu0 %1356
  %1358 = vrot.lane.b32.xlu0 %v1320, 104
  %v1359 = vpop.permute.xlu0 %1358
  %1360 = vrot.lane.b32.xlu0 %v1321, 104
  %v1361 = vpop.permute.xlu0 %1360
  %1362 = vrot.lane.b32.xlu0 %v1322, 104
  %v1363 = vpop.permute.xlu0 %1362
  %1364 = vrot.lane.b32.xlu0 %v1323, 104
  %v1365 = vpop.permute.xlu0 %1364
  %1366 = vrot.lane.b32.xlu0 %v1324, 104
  %v1367 = vpop.permute.xlu0 %1366
  %1368 = vrot.lane.b32.xlu0 %v1325, 104
  %v1369 = vpop.permute.xlu0 %1368
  %1370 = vrot.lane.b32.xlu0 %v1326, 104
  %v1371 = vpop.permute.xlu0 %1370
  %1372 = vrot.lane.b32.xlu0 %v1327, 104
  %v1373 = vpop.permute.xlu0 %1372
  %1374 = vrot.lane.b32.xlu0 %v1328, 104
  %v1375 = vpop.permute.xlu0 %1374
  %1376 = vrot.lane.b32.xlu0 %v1329, 104
  %v1377 = vpop.permute.xlu0 %1376
  %v1394 = vadd.f32 %v1282, %v1347
  %v1395 = vadd.f32 %v1283, %v1349
  %v1396 = vadd.f32 %v1284, %v1351
  %v1397 = vadd.f32 %v1285, %v1353
  %v1398 = vadd.f32 %v1286, %v1355
  %v1399 = vadd.f32 %v1287, %v1357
  %v1400 = vadd.f32 %v1288, %v1359
  %v1401 = vadd.f32 %v1289, %v1361
  %v1402 = vadd.f32 %v1290, %v1363
  %v1403 = vadd.f32 %v1291, %v1365
  %v1404 = vadd.f32 %v1292, %v1367
  %v1405 = vadd.f32 %v1293, %v1369
  %v1406 = vadd.f32 %v1294, %v1371
  %v1407 = vadd.f32 %v1295, %v1373
  %v1408 = vadd.f32 %v1296, %v1375
  %v1409 = vadd.f32 %v1297, %v1377
  %1410 = vrot.lane.b32.xlu0 %v147, 104
  %v1411 = vpop.permute.xlu0 %1410
  %1412 = vrot.lane.b32.xlu0 %v150, 104
  %v1413 = vpop.permute.xlu0 %1412
  %1414 = vrot.lane.b32.xlu0 %v155, 104
  %v1415 = vpop.permute.xlu0 %1414
  %1416 = vrot.lane.b32.xlu0 %v158, 104
  %v1417 = vpop.permute.xlu0 %1416
  %1418 = vrot.lane.b32.xlu0 %v163, 104
  %v1419 = vpop.permute.xlu0 %1418
  %1420 = vrot.lane.b32.xlu0 %v166, 104
  %v1421 = vpop.permute.xlu0 %1420
  %1422 = vrot.lane.b32.xlu0 %v171, 104
  %v1423 = vpop.permute.xlu0 %1422
  %1424 = vrot.lane.b32.xlu0 %v174, 104
  %v1425 = vpop.permute.xlu0 %1424
  %1426 = vrot.lane.b32.xlu0 %v179, 104
  %v1427 = vpop.permute.xlu0 %1426
  %1428 = vrot.lane.b32.xlu0 %v182, 104
  %v1429 = vpop.permute.xlu0 %1428
  %1430 = vrot.lane.b32.xlu0 %v187, 104
  %v1431 = vpop.permute.xlu0 %1430
  %1432 = vrot.lane.b32.xlu0 %v190, 104
  %v1433 = vpop.permute.xlu0 %1432
  %1434 = vrot.lane.b32.xlu0 %v195, 104
  %v1435 = vpop.permute.xlu0 %1434
  %1436 = vrot.lane.b32.xlu0 %v198, 104
  %v1437 = vpop.permute.xlu0 %1436
  %1438 = vrot.lane.b32.xlu0 %v203, 104
  %v1439 = vpop.permute.xlu0 %1438
  %1440 = vrot.lane.b32.xlu0 %v206, 104
  %v1441 = vpop.permute.xlu0 %1440
  %v1458 = vmul.f32 %v147, %v1411
  %v1459 = vmul.f32 %v150, %v1413
  %v1460 = vmul.f32 %v155, %v1415
  %v1461 = vmul.f32 %v158, %v1417
  %v1462 = vmul.f32 %v163, %v1419
  %v1463 = vmul.f32 %v166, %v1421
  %v1464 = vmul.f32 %v171, %v1423
  %v1465 = vmul.f32 %v174, %v1425
  %v1466 = vmul.f32 %v179, %v1427
  %v1467 = vmul.f32 %v182, %v1429
  %v1468 = vmul.f32 %v187, %v1431
  %v1469 = vmul.f32 %v190, %v1433
  %v1470 = vmul.f32 %v195, %v1435
  %v1471 = vmul.f32 %v198, %v1437
  %v1472 = vmul.f32 %v203, %v1439
  %v1473 = vmul.f32 %v206, %v1441
  %1490 = vrot.lane.b32.xlu0 %v1458, 120
  %v1491 = vpop.permute.xlu0 %1490
  %1492 = vrot.lane.b32.xlu0 %v1459, 120
  %v1493 = vpop.permute.xlu0 %1492
  %1494 = vrot.lane.b32.xlu0 %v1460, 120
  %v1495 = vpop.permute.xlu0 %1494
  %1496 = vrot.lane.b32.xlu0 %v1461, 120
  %v1497 = vpop.permute.xlu0 %1496
  %1498 = vrot.lane.b32.xlu0 %v1462, 120
  %v1499 = vpop.permute.xlu0 %1498
  %1500 = vrot.lane.b32.xlu0 %v1463, 120
  %v1501 = vpop.permute.xlu0 %1500
  %1502 = vrot.lane.b32.xlu0 %v1464, 120
  %v1503 = vpop.permute.xlu0 %1502
  %1504 = vrot.lane.b32.xlu0 %v1465, 120
  %v1505 = vpop.permute.xlu0 %1504
  %1506 = vrot.lane.b32.xlu0 %v1466, 120
  %v1507 = vpop.permute.xlu0 %1506
  %1508 = vrot.lane.b32.xlu0 %v1467, 120
  %v1509 = vpop.permute.xlu0 %1508
  %1510 = vrot.lane.b32.xlu0 %v1468, 120
  %v1511 = vpop.permute.xlu0 %1510
  %1512 = vrot.lane.b32.xlu0 %v1469, 120
  %v1513 = vpop.permute.xlu0 %1512
  %1514 = vrot.lane.b32.xlu0 %v1470, 120
  %v1515 = vpop.permute.xlu0 %1514
  %1516 = vrot.lane.b32.xlu0 %v1471, 120
  %v1517 = vpop.permute.xlu0 %1516
  %1518 = vrot.lane.b32.xlu0 %v1472, 120
  %v1519 = vpop.permute.xlu0 %1518
  %1520 = vrot.lane.b32.xlu0 %v1473, 120
  %v1521 = vpop.permute.xlu0 %1520
  %v1538 = vsel %vm289, %v1491, 0.0
  %1539 = vadd.xlane.f32.xlu0 %v1538
  %v1540 = vpop.xlane.xlu0 %1539
  %v1541 = vsel %vm289, %v1493, 0.0
  %1542 = vadd.xlane.f32.xlu0 %v1541
  %v1543 = vpop.xlane.xlu0 %1542
  %v1544 = vsel %vm289, %v1495, 0.0
  %1545 = vadd.xlane.f32.xlu0 %v1544
  %v1546 = vpop.xlane.xlu0 %1545
  %v1547 = vsel %vm289, %v1497, 0.0
  %1548 = vadd.xlane.f32.xlu0 %v1547
  %v1549 = vpop.xlane.xlu0 %1548
  %v1550 = vsel %vm289, %v1499, 0.0
  %1551 = vadd.xlane.f32.xlu0 %v1550
  %v1552 = vpop.xlane.xlu0 %1551
  %v1553 = vsel %vm289, %v1501, 0.0
  %1554 = vadd.xlane.f32.xlu0 %v1553
  %v1555 = vpop.xlane.xlu0 %1554
  %v1556 = vsel %vm289, %v1503, 0.0
  %1557 = vadd.xlane.f32.xlu0 %v1556
  %v1558 = vpop.xlane.xlu0 %1557
  %v1559 = vsel %vm289, %v1505, 0.0
  %1560 = vadd.xlane.f32.xlu0 %v1559
  %v1561 = vpop.xlane.xlu0 %1560
  %v1562 = vsel %vm289, %v1507, 0.0
  %1563 = vadd.xlane.f32.xlu0 %v1562
  %v1564 = vpop.xlane.xlu0 %1563
  %v1565 = vsel %vm289, %v1509, 0.0
  %1566 = vadd.xlane.f32.xlu0 %v1565
  %v1567 = vpop.xlane.xlu0 %1566
  %v1568 = vsel %vm289, %v1511, 0.0
  %1569 = vadd.xlane.f32.xlu0 %v1568
  %v1570 = vpop.xlane.xlu0 %1569
  %v1571 = vsel %vm289, %v1513, 0.0
  %1572 = vadd.xlane.f32.xlu0 %v1571
  %v1573 = vpop.xlane.xlu0 %1572
  %v1574 = vsel %vm289, %v1515, 0.0
  %1575 = vadd.xlane.f32.xlu0 %v1574
  %v1576 = vpop.xlane.xlu0 %1575
  %v1577 = vsel %vm289, %v1517, 0.0
  %1578 = vadd.xlane.f32.xlu0 %v1577
  %v1579 = vpop.xlane.xlu0 %1578
  %v1580 = vsel %vm289, %v1519, 0.0
  %1581 = vadd.xlane.f32.xlu0 %v1580
  %v1582 = vpop.xlane.xlu0 %1581
  %v1583 = vsel %vm289, %v1521, 0.0
  %1584 = vadd.xlane.f32.xlu0 %v1583
  %v1585 = vpop.xlane.xlu0 %1584
  %v1586 = vmul.f32 %v1540, 0.0625
  %v1587 = vmul.f32 %v1543, 0.0625
  %v1588 = vmul.f32 %v1546, 0.0625
  %v1589 = vmul.f32 %v1549, 0.0625
  %v1590 = vmul.f32 %v1552, 0.0625
  %v1591 = vmul.f32 %v1555, 0.0625
  %v1592 = vmul.f32 %v1558, 0.0625
  %v1593 = vmul.f32 %v1561, 0.0625
  %v1594 = vmul.f32 %v1564, 0.0625
  %v1595 = vmul.f32 %v1567, 0.0625
  %v1596 = vmul.f32 %v1570, 0.0625
  %v1597 = vmul.f32 %v1573, 0.0625
  %v1598 = vmul.f32 %v1576, 0.0625
  %v1599 = vmul.f32 %v1579, 0.0625
  %v1600 = vmul.f32 %v1582, 0.0625
  %v1601 = vmul.f32 %v1585, 0.0625
  %1618 = vrot.lane.b32.xlu0 %v273, 120
  %v1619 = vpop.permute.xlu0 %1618
  %1620 = vrot.lane.b32.xlu0 %v274, 120
  %v1621 = vpop.permute.xlu0 %1620
  %1622 = vrot.lane.b32.xlu0 %v275, 120
  %v1623 = vpop.permute.xlu0 %1622
  %1624 = vrot.lane.b32.xlu0 %v276, 120
  %v1625 = vpop.permute.xlu0 %1624
  %1626 = vrot.lane.b32.xlu0 %v277, 120
  %v1627 = vpop.permute.xlu0 %1626
  %1628 = vrot.lane.b32.xlu0 %v278, 120
  %v1629 = vpop.permute.xlu0 %1628
  %1630 = vrot.lane.b32.xlu0 %v279, 120
  %v1631 = vpop.permute.xlu0 %1630
  %1632 = vrot.lane.b32.xlu0 %v280, 120
  %v1633 = vpop.permute.xlu0 %1632
  %1634 = vrot.lane.b32.xlu0 %v281, 120
  %v1635 = vpop.permute.xlu0 %1634
  %1636 = vrot.lane.b32.xlu0 %v282, 120
  %v1637 = vpop.permute.xlu0 %1636
  %1638 = vrot.lane.b32.xlu0 %v283, 120
  %v1639 = vpop.permute.xlu0 %1638
  %1640 = vrot.lane.b32.xlu0 %v284, 120
  %v1641 = vpop.permute.xlu0 %1640
  %1642 = vrot.lane.b32.xlu0 %v285, 120
  %v1643 = vpop.permute.xlu0 %1642
  %1644 = vrot.lane.b32.xlu0 %v286, 120
  %v1645 = vpop.permute.xlu0 %1644
  %1646 = vrot.lane.b32.xlu0 %v287, 120
  %v1647 = vpop.permute.xlu0 %1646
  %1648 = vrot.lane.b32.xlu0 %v288, 120
  %v1649 = vpop.permute.xlu0 %1648
  %v1666 = vsel %vm289, %v1619, 0.0
  %1667 = vadd.xlane.f32.xlu0 %v1666
  %v1668 = vpop.xlane.xlu0 %1667
  %v1669 = vsel %vm289, %v1621, 0.0
  %1670 = vadd.xlane.f32.xlu0 %v1669
  %v1671 = vpop.xlane.xlu0 %1670
  %v1672 = vsel %vm289, %v1623, 0.0
  %1673 = vadd.xlane.f32.xlu0 %v1672
  %v1674 = vpop.xlane.xlu0 %1673
  %v1675 = vsel %vm289, %v1625, 0.0
  %1676 = vadd.xlane.f32.xlu0 %v1675
  %v1677 = vpop.xlane.xlu0 %1676
  %v1678 = vsel %vm289, %v1627, 0.0
  %1679 = vadd.xlane.f32.xlu0 %v1678
  %v1680 = vpop.xlane.xlu0 %1679
  %v1681 = vsel %vm289, %v1629, 0.0
  %1682 = vadd.xlane.f32.xlu0 %v1681
  %v1683 = vpop.xlane.xlu0 %1682
  %v1684 = vsel %vm289, %v1631, 0.0
  %1685 = vadd.xlane.f32.xlu0 %v1684
  %v1686 = vpop.xlane.xlu0 %1685
  %v1687 = vsel %vm289, %v1633, 0.0
  %1688 = vadd.xlane.f32.xlu0 %v1687
  %v1689 = vpop.xlane.xlu0 %1688
  %v1690 = vsel %vm289, %v1635, 0.0
  %1691 = vadd.xlane.f32.xlu0 %v1690
  %v1692 = vpop.xlane.xlu0 %1691
  %v1693 = vsel %vm289, %v1637, 0.0
  %1694 = vadd.xlane.f32.xlu0 %v1693
  %v1695 = vpop.xlane.xlu0 %1694
  %v1696 = vsel %vm289, %v1639, 0.0
  %1697 = vadd.xlane.f32.xlu0 %v1696
  %v1698 = vpop.xlane.xlu0 %1697
  %v1699 = vsel %vm289, %v1641, 0.0
  %1700 = vadd.xlane.f32.xlu0 %v1699
  %v1701 = vpop.xlane.xlu0 %1700
  %v1702 = vsel %vm289, %v1643, 0.0
  %1703 = vadd.xlane.f32.xlu0 %v1702
  %v1704 = vpop.xlane.xlu0 %1703
  %v1705 = vsel %vm289, %v1645, 0.0
  %1706 = vadd.xlane.f32.xlu0 %v1705
  %v1707 = vpop.xlane.xlu0 %1706
  %v1708 = vsel %vm289, %v1647, 0.0
  %1709 = vadd.xlane.f32.xlu0 %v1708
  %v1710 = vpop.xlane.xlu0 %1709
  %v1711 = vsel %vm289, %v1649, 0.0
  %1712 = vadd.xlane.f32.xlu0 %v1711
  %v1713 = vpop.xlane.xlu0 %1712
  %v1714 = vmul.f32 %v1668, 0.0625
  %v1715 = vmul.f32 %v1671, 0.0625
  %v1716 = vmul.f32 %v1674, 0.0625
  %v1717 = vmul.f32 %v1677, 0.0625
  %v1718 = vmul.f32 %v1680, 0.0625
  %v1719 = vmul.f32 %v1683, 0.0625
  %v1720 = vmul.f32 %v1686, 0.0625
  %v1721 = vmul.f32 %v1689, 0.0625
  %v1722 = vmul.f32 %v1692, 0.0625
  %v1723 = vmul.f32 %v1695, 0.0625
  %v1724 = vmul.f32 %v1698, 0.0625
  %v1725 = vmul.f32 %v1701, 0.0625
  %v1726 = vmul.f32 %v1704, 0.0625
  %v1727 = vmul.f32 %v1707, 0.0625
  %v1728 = vmul.f32 %v1710, 0.0625
  %v1729 = vmul.f32 %v1713, 0.0625
  %1746 = vrot.lane.b32.xlu0 %v402, 120
  %v1747 = vpop.permute.xlu0 %1746
  %1748 = vrot.lane.b32.xlu0 %v403, 120
  %v1749 = vpop.permute.xlu0 %1748
  %1750 = vrot.lane.b32.xlu0 %v404, 120
  %v1751 = vpop.permute.xlu0 %1750
  %1752 = vrot.lane.b32.xlu0 %v405, 120
  %v1753 = vpop.permute.xlu0 %1752
  %1754 = vrot.lane.b32.xlu0 %v406, 120
  %v1755 = vpop.permute.xlu0 %1754
  %1756 = vrot.lane.b32.xlu0 %v407, 120
  %v1757 = vpop.permute.xlu0 %1756
  %1758 = vrot.lane.b32.xlu0 %v408, 120
  %v1759 = vpop.permute.xlu0 %1758
  %1760 = vrot.lane.b32.xlu0 %v409, 120
  %v1761 = vpop.permute.xlu0 %1760
  %1762 = vrot.lane.b32.xlu0 %v410, 120
  %v1763 = vpop.permute.xlu0 %1762
  %1764 = vrot.lane.b32.xlu0 %v411, 120
  %v1765 = vpop.permute.xlu0 %1764
  %1766 = vrot.lane.b32.xlu0 %v412, 120
  %v1767 = vpop.permute.xlu0 %1766
  %1768 = vrot.lane.b32.xlu0 %v413, 120
  %v1769 = vpop.permute.xlu0 %1768
  %1770 = vrot.lane.b32.xlu0 %v414, 120
  %v1771 = vpop.permute.xlu0 %1770
  %1772 = vrot.lane.b32.xlu0 %v415, 120
  %v1773 = vpop.permute.xlu0 %1772
  %1774 = vrot.lane.b32.xlu0 %v416, 120
  %v1775 = vpop.permute.xlu0 %1774
  %1776 = vrot.lane.b32.xlu0 %v417, 120
  %v1777 = vpop.permute.xlu0 %1776
  %v1794 = vsel %vm289, %v1747, 0.0
  %1795 = vadd.xlane.f32.xlu0 %v1794
  %v1796 = vpop.xlane.xlu0 %1795
  %v1797 = vsel %vm289, %v1749, 0.0
  %1798 = vadd.xlane.f32.xlu0 %v1797
  %v1799 = vpop.xlane.xlu0 %1798
  %v1800 = vsel %vm289, %v1751, 0.0
  %1801 = vadd.xlane.f32.xlu0 %v1800
  %v1802 = vpop.xlane.xlu0 %1801
  %v1803 = vsel %vm289, %v1753, 0.0
  %1804 = vadd.xlane.f32.xlu0 %v1803
  %v1805 = vpop.xlane.xlu0 %1804
  %v1806 = vsel %vm289, %v1755, 0.0
  %1807 = vadd.xlane.f32.xlu0 %v1806
  %v1808 = vpop.xlane.xlu0 %1807
  %v1809 = vsel %vm289, %v1757, 0.0
  %1810 = vadd.xlane.f32.xlu0 %v1809
  %v1811 = vpop.xlane.xlu0 %1810
  %v1812 = vsel %vm289, %v1759, 0.0
  %1813 = vadd.xlane.f32.xlu0 %v1812
  %v1814 = vpop.xlane.xlu0 %1813
  %v1815 = vsel %vm289, %v1761, 0.0
  %1816 = vadd.xlane.f32.xlu0 %v1815
  %v1817 = vpop.xlane.xlu0 %1816
  %v1818 = vsel %vm289, %v1763, 0.0
  %1819 = vadd.xlane.f32.xlu0 %v1818
  %v1820 = vpop.xlane.xlu0 %1819
  %v1821 = vsel %vm289, %v1765, 0.0
  %1822 = vadd.xlane.f32.xlu0 %v1821
  %v1823 = vpop.xlane.xlu0 %1822
  %v1824 = vsel %vm289, %v1767, 0.0
  %1825 = vadd.xlane.f32.xlu0 %v1824
  %v1826 = vpop.xlane.xlu0 %1825
  %v1827 = vsel %vm289, %v1769, 0.0
  %1828 = vadd.xlane.f32.xlu0 %v1827
  %v1829 = vpop.xlane.xlu0 %1828
  %v1830 = vsel %vm289, %v1771, 0.0
  %1831 = vadd.xlane.f32.xlu0 %v1830
  %v1832 = vpop.xlane.xlu0 %1831
  %v1833 = vsel %vm289, %v1773, 0.0
  %1834 = vadd.xlane.f32.xlu0 %v1833
  %v1835 = vpop.xlane.xlu0 %1834
  %v1836 = vsel %vm289, %v1775, 0.0
  %1837 = vadd.xlane.f32.xlu0 %v1836
  %v1838 = vpop.xlane.xlu0 %1837
  %v1839 = vsel %vm289, %v1777, 0.0
  %1840 = vadd.xlane.f32.xlu0 %v1839
  %v1841 = vpop.xlane.xlu0 %1840
  %v1842 = vmul.f32 %v1796, 0.0625
  %v1843 = vmul.f32 %v1799, 0.0625
  %v1844 = vmul.f32 %v1802, 0.0625
  %v1845 = vmul.f32 %v1805, 0.0625
  %v1846 = vmul.f32 %v1808, 0.0625
  %v1847 = vmul.f32 %v1811, 0.0625
  %v1848 = vmul.f32 %v1814, 0.0625
  %v1849 = vmul.f32 %v1817, 0.0625
  %v1850 = vmul.f32 %v1820, 0.0625
  %v1851 = vmul.f32 %v1823, 0.0625
  %v1852 = vmul.f32 %v1826, 0.0625
  %v1853 = vmul.f32 %v1829, 0.0625
  %v1854 = vmul.f32 %v1832, 0.0625
  %v1855 = vmul.f32 %v1835, 0.0625
  %v1856 = vmul.f32 %v1838, 0.0625
  %v1857 = vmul.f32 %v1841, 0.0625
  %1874 = vrot.lane.b32.xlu0 %v530, 120
  %v1875 = vpop.permute.xlu0 %1874
  %1876 = vrot.lane.b32.xlu0 %v531, 120
  %v1877 = vpop.permute.xlu0 %1876
  %1878 = vrot.lane.b32.xlu0 %v532, 120
  %v1879 = vpop.permute.xlu0 %1878
  %1880 = vrot.lane.b32.xlu0 %v533, 120
  %v1881 = vpop.permute.xlu0 %1880
  %1882 = vrot.lane.b32.xlu0 %v534, 120
  %v1883 = vpop.permute.xlu0 %1882
  %1884 = vrot.lane.b32.xlu0 %v535, 120
  %v1885 = vpop.permute.xlu0 %1884
  %1886 = vrot.lane.b32.xlu0 %v536, 120
  %v1887 = vpop.permute.xlu0 %1886
  %1888 = vrot.lane.b32.xlu0 %v537, 120
  %v1889 = vpop.permute.xlu0 %1888
  %1890 = vrot.lane.b32.xlu0 %v538, 120
  %v1891 = vpop.permute.xlu0 %1890
  %1892 = vrot.lane.b32.xlu0 %v539, 120
  %v1893 = vpop.permute.xlu0 %1892
  %1894 = vrot.lane.b32.xlu0 %v540, 120
  %v1895 = vpop.permute.xlu0 %1894
  %1896 = vrot.lane.b32.xlu0 %v541, 120
  %v1897 = vpop.permute.xlu0 %1896
  %1898 = vrot.lane.b32.xlu0 %v542, 120
  %v1899 = vpop.permute.xlu0 %1898
  %1900 = vrot.lane.b32.xlu0 %v543, 120
  %v1901 = vpop.permute.xlu0 %1900
  %1902 = vrot.lane.b32.xlu0 %v544, 120
  %v1903 = vpop.permute.xlu0 %1902
  %1904 = vrot.lane.b32.xlu0 %v545, 120
  %v1905 = vpop.permute.xlu0 %1904
  %v1922 = vsel %vm289, %v1875, 0.0
  %1923 = vadd.xlane.f32.xlu0 %v1922
  %v1924 = vpop.xlane.xlu0 %1923
  %v1925 = vsel %vm289, %v1877, 0.0
  %1926 = vadd.xlane.f32.xlu0 %v1925
  %v1927 = vpop.xlane.xlu0 %1926
  %v1928 = vsel %vm289, %v1879, 0.0
  %1929 = vadd.xlane.f32.xlu0 %v1928
  %v1930 = vpop.xlane.xlu0 %1929
  %v1931 = vsel %vm289, %v1881, 0.0
  %1932 = vadd.xlane.f32.xlu0 %v1931
  %v1933 = vpop.xlane.xlu0 %1932
  %v1934 = vsel %vm289, %v1883, 0.0
  %1935 = vadd.xlane.f32.xlu0 %v1934
  %v1936 = vpop.xlane.xlu0 %1935
  %v1937 = vsel %vm289, %v1885, 0.0
  %1938 = vadd.xlane.f32.xlu0 %v1937
  %v1939 = vpop.xlane.xlu0 %1938
  %v1940 = vsel %vm289, %v1887, 0.0
  %1941 = vadd.xlane.f32.xlu0 %v1940
  %v1942 = vpop.xlane.xlu0 %1941
  %v1943 = vsel %vm289, %v1889, 0.0
  %1944 = vadd.xlane.f32.xlu0 %v1943
  %v1945 = vpop.xlane.xlu0 %1944
  %v1946 = vsel %vm289, %v1891, 0.0
  %1947 = vadd.xlane.f32.xlu0 %v1946
  %v1948 = vpop.xlane.xlu0 %1947
  %v1949 = vsel %vm289, %v1893, 0.0
  %1950 = vadd.xlane.f32.xlu0 %v1949
  %v1951 = vpop.xlane.xlu0 %1950
  %v1952 = vsel %vm289, %v1895, 0.0
  %1953 = vadd.xlane.f32.xlu0 %v1952
  %v1954 = vpop.xlane.xlu0 %1953
  %v1955 = vsel %vm289, %v1897, 0.0
  %1956 = vadd.xlane.f32.xlu0 %v1955
  %v1957 = vpop.xlane.xlu0 %1956
  %v1958 = vsel %vm289, %v1899, 0.0
  %1959 = vadd.xlane.f32.xlu0 %v1958
  %v1960 = vpop.xlane.xlu0 %1959
  %v1961 = vsel %vm289, %v1901, 0.0
  %1962 = vadd.xlane.f32.xlu0 %v1961
  %v1963 = vpop.xlane.xlu0 %1962
  %v1964 = vsel %vm289, %v1903, 0.0
  %1965 = vadd.xlane.f32.xlu0 %v1964
  %v1966 = vpop.xlane.xlu0 %1965
  %v1967 = vsel %vm289, %v1905, 0.0
  %1968 = vadd.xlane.f32.xlu0 %v1967
  %v1969 = vpop.xlane.xlu0 %1968
  %v1970 = vmul.f32 %v1924, 0.0625
  %v1971 = vmul.f32 %v1927, 0.0625
  %v1972 = vmul.f32 %v1930, 0.0625
  %v1973 = vmul.f32 %v1933, 0.0625
  %v1974 = vmul.f32 %v1936, 0.0625
  %v1975 = vmul.f32 %v1939, 0.0625
  %v1976 = vmul.f32 %v1942, 0.0625
  %v1977 = vmul.f32 %v1945, 0.0625
  %v1978 = vmul.f32 %v1948, 0.0625
  %v1979 = vmul.f32 %v1951, 0.0625
  %v1980 = vmul.f32 %v1954, 0.0625
  %v1981 = vmul.f32 %v1957, 0.0625
  %v1982 = vmul.f32 %v1960, 0.0625
  %v1983 = vmul.f32 %v1963, 0.0625
  %v1984 = vmul.f32 %v1966, 0.0625
  %v1985 = vmul.f32 %v1969, 0.0625
  %v1986 = vmax.f32 %v1586, %v1714
  %v1987 = vmax.f32 %v1587, %v1715
  %v1988 = vmax.f32 %v1588, %v1716
  %v1989 = vmax.f32 %v1589, %v1717
  %v1990 = vmax.f32 %v1590, %v1718
  %v1991 = vmax.f32 %v1591, %v1719
  %v1992 = vmax.f32 %v1592, %v1720
  %v1993 = vmax.f32 %v1593, %v1721
  %v1994 = vmax.f32 %v1594, %v1722
  %v1995 = vmax.f32 %v1595, %v1723
  %v1996 = vmax.f32 %v1596, %v1724
  %v1997 = vmax.f32 %v1597, %v1725
  %v1998 = vmax.f32 %v1598, %v1726
  %v1999 = vmax.f32 %v1599, %v1727
  %v2000 = vmax.f32 %v1600, %v1728
  %v2001 = vmax.f32 %v1601, %v1729
  %v2002 = vmax.f32 %v1986, %v1842
  %v2003 = vmax.f32 %v1987, %v1843
  %v2004 = vmax.f32 %v1988, %v1844
  %v2005 = vmax.f32 %v1989, %v1845
  %v2006 = vmax.f32 %v1990, %v1846
  %v2007 = vmax.f32 %v1991, %v1847
  %v2008 = vmax.f32 %v1992, %v1848
  %v2009 = vmax.f32 %v1993, %v1849
  %v2010 = vmax.f32 %v1994, %v1850
  %v2011 = vmax.f32 %v1995, %v1851
  %v2012 = vmax.f32 %v1996, %v1852
  %v2013 = vmax.f32 %v1997, %v1853
  %v2014 = vmax.f32 %v1998, %v1854
  %v2015 = vmax.f32 %v1999, %v1855
  %v2016 = vmax.f32 %v2000, %v1856
  %v2017 = vmax.f32 %v2001, %v1857
  %v2018 = vmax.f32 %v2002, %v1970
  %v2019 = vmax.f32 %v2003, %v1971
  %v2020 = vmax.f32 %v2004, %v1972
  %v2021 = vmax.f32 %v2005, %v1973
  %v2022 = vmax.f32 %v2006, %v1974
  %v2023 = vmax.f32 %v2007, %v1975
  %v2024 = vmax.f32 %v2008, %v1976
  %v2025 = vmax.f32 %v2009, %v1977
  %v2026 = vmax.f32 %v2010, %v1978
  %v2027 = vmax.f32 %v2011, %v1979
  %v2028 = vmax.f32 %v2012, %v1980
  %v2029 = vmax.f32 %v2013, %v1981
  %v2030 = vmax.f32 %v2014, %v1982
  %v2031 = vmax.f32 %v2015, %v1983
  %v2032 = vmax.f32 %v2016, %v1984
  %v2033 = vmax.f32 %v2017, %v1985
  %v2034 = vsub.f32 %v1586, %v2018
  %v2035 = vsub.f32 %v1587, %v2019
  %v2036 = vsub.f32 %v1588, %v2020
  %v2037 = vsub.f32 %v1589, %v2021
  %v2038 = vsub.f32 %v1590, %v2022
  %v2039 = vsub.f32 %v1591, %v2023
  %v2040 = vsub.f32 %v1592, %v2024
  %v2041 = vsub.f32 %v1593, %v2025
  %v2042 = vsub.f32 %v1594, %v2026
  %v2043 = vsub.f32 %v1595, %v2027
  %v2044 = vsub.f32 %v1596, %v2028
  %v2045 = vsub.f32 %v1597, %v2029
  %v2046 = vsub.f32 %v1598, %v2030
  %v2047 = vsub.f32 %v1599, %v2031
  %v2048 = vsub.f32 %v1600, %v2032
  %v2049 = vsub.f32 %v1601, %v2033
  %v2050 = vmul.f32 %v2034, 1.442695
  %v2051 = vpow.pop %v2050
  %v2052 = vmul.f32 %v2035, 1.442695
  %v2053 = vpow.pop %v2052
  %v2054 = vmul.f32 %v2036, 1.442695
  %v2055 = vpow.pop %v2054
  %v2056 = vmul.f32 %v2037, 1.442695
  %v2057 = vpow.pop %v2056
  %v2058 = vmul.f32 %v2038, 1.442695
  %v2059 = vpow.pop %v2058
  %v2060 = vmul.f32 %v2039, 1.442695
  %v2061 = vpow.pop %v2060
  %v2062 = vmul.f32 %v2040, 1.442695
  %v2063 = vpow.pop %v2062
  %v2064 = vmul.f32 %v2041, 1.442695
  %v2065 = vpow.pop %v2064
  %v2066 = vmul.f32 %v2042, 1.442695
  %v2067 = vpow.pop %v2066
  %v2068 = vmul.f32 %v2043, 1.442695
  %v2069 = vpow.pop %v2068
  %v2070 = vmul.f32 %v2044, 1.442695
  %v2071 = vpow.pop %v2070
  %v2072 = vmul.f32 %v2045, 1.442695
  %v2073 = vpow.pop %v2072
  %v2074 = vmul.f32 %v2046, 1.442695
  %v2075 = vpow.pop %v2074
  %v2076 = vmul.f32 %v2047, 1.442695
  %v2077 = vpow.pop %v2076
  %v2078 = vmul.f32 %v2048, 1.442695
  %v2079 = vpow.pop %v2078
  %v2080 = vmul.f32 %v2049, 1.442695
  %v2081 = vpow.pop %v2080
  %v2082 = vsub.f32 %v1714, %v2018
  %v2083 = vsub.f32 %v1715, %v2019
  %v2084 = vsub.f32 %v1716, %v2020
  %v2085 = vsub.f32 %v1717, %v2021
  %v2086 = vsub.f32 %v1718, %v2022
  %v2087 = vsub.f32 %v1719, %v2023
  %v2088 = vsub.f32 %v1720, %v2024
  %v2089 = vsub.f32 %v1721, %v2025
  %v2090 = vsub.f32 %v1722, %v2026
  %v2091 = vsub.f32 %v1723, %v2027
  %v2092 = vsub.f32 %v1724, %v2028
  %v2093 = vsub.f32 %v1725, %v2029
  %v2094 = vsub.f32 %v1726, %v2030
  %v2095 = vsub.f32 %v1727, %v2031
  %v2096 = vsub.f32 %v1728, %v2032
  %v2097 = vsub.f32 %v1729, %v2033
  %v2098 = vmul.f32 %v2082, 1.442695
  %v2099 = vpow.pop %v2098
  %v2100 = vmul.f32 %v2083, 1.442695
  %v2101 = vpow.pop %v2100
  %v2102 = vmul.f32 %v2084, 1.442695
  %v2103 = vpow.pop %v2102
  %v2104 = vmul.f32 %v2085, 1.442695
  %v2105 = vpow.pop %v2104
  %v2106 = vmul.f32 %v2086, 1.442695
  %v2107 = vpow.pop %v2106
  %v2108 = vmul.f32 %v2087, 1.442695
  %v2109 = vpow.pop %v2108
  %v2110 = vmul.f32 %v2088, 1.442695
  %v2111 = vpow.pop %v2110
  %v2112 = vmul.f32 %v2089, 1.442695
  %v2113 = vpow.pop %v2112
  %v2114 = vmul.f32 %v2090, 1.442695
  %v2115 = vpow.pop %v2114
  %v2116 = vmul.f32 %v2091, 1.442695
  %v2117 = vpow.pop %v2116
  %v2118 = vmul.f32 %v2092, 1.442695
  %v2119 = vpow.pop %v2118
  %v2120 = vmul.f32 %v2093, 1.442695
  %v2121 = vpow.pop %v2120
  %v2122 = vmul.f32 %v2094, 1.442695
  %v2123 = vpow.pop %v2122
  %v2124 = vmul.f32 %v2095, 1.442695
  %v2125 = vpow.pop %v2124
  %v2126 = vmul.f32 %v2096, 1.442695
  %v2127 = vpow.pop %v2126
  %v2128 = vmul.f32 %v2097, 1.442695
  %v2129 = vpow.pop %v2128
  %v2130 = vsub.f32 %v1842, %v2018
  %v2131 = vsub.f32 %v1843, %v2019
  %v2132 = vsub.f32 %v1844, %v2020
  %v2133 = vsub.f32 %v1845, %v2021
  %v2134 = vsub.f32 %v1846, %v2022
  %v2135 = vsub.f32 %v1847, %v2023
  %v2136 = vsub.f32 %v1848, %v2024
  %v2137 = vsub.f32 %v1849, %v2025
  %v2138 = vsub.f32 %v1850, %v2026
  %v2139 = vsub.f32 %v1851, %v2027
  %v2140 = vsub.f32 %v1852, %v2028
  %v2141 = vsub.f32 %v1853, %v2029
  %v2142 = vsub.f32 %v1854, %v2030
  %v2143 = vsub.f32 %v1855, %v2031
  %v2144 = vsub.f32 %v1856, %v2032
  %v2145 = vsub.f32 %v1857, %v2033
  %v2146 = vmul.f32 %v2130, 1.442695
  %v2147 = vpow.pop %v2146
  %v2148 = vmul.f32 %v2131, 1.442695
  %v2149 = vpow.pop %v2148
  %v2150 = vmul.f32 %v2132, 1.442695
  %v2151 = vpow.pop %v2150
  %v2152 = vmul.f32 %v2133, 1.442695
  %v2153 = vpow.pop %v2152
  %v2154 = vmul.f32 %v2134, 1.442695
  %v2155 = vpow.pop %v2154
  %v2156 = vmul.f32 %v2135, 1.442695
  %v2157 = vpow.pop %v2156
  %v2158 = vmul.f32 %v2136, 1.442695
  %v2159 = vpow.pop %v2158
  %v2160 = vmul.f32 %v2137, 1.442695
  %v2161 = vpow.pop %v2160
  %v2162 = vmul.f32 %v2138, 1.442695
  %v2163 = vpow.pop %v2162
  %v2164 = vmul.f32 %v2139, 1.442695
  %v2165 = vpow.pop %v2164
  %v2166 = vmul.f32 %v2140, 1.442695
  %v2167 = vpow.pop %v2166
  %v2168 = vmul.f32 %v2141, 1.442695
  %v2169 = vpow.pop %v2168
  %v2170 = vmul.f32 %v2142, 1.442695
  %v2171 = vpow.pop %v2170
  %v2172 = vmul.f32 %v2143, 1.442695
  %v2173 = vpow.pop %v2172
  %v2174 = vmul.f32 %v2144, 1.442695
  %v2175 = vpow.pop %v2174
  %v2176 = vmul.f32 %v2145, 1.442695
  %v2177 = vpow.pop %v2176
  %v2178 = vsub.f32 %v1970, %v2018
  %v2179 = vsub.f32 %v1971, %v2019
  %v2180 = vsub.f32 %v1972, %v2020
  %v2181 = vsub.f32 %v1973, %v2021
  %v2182 = vsub.f32 %v1974, %v2022
  %v2183 = vsub.f32 %v1975, %v2023
  %v2184 = vsub.f32 %v1976, %v2024
  %v2185 = vsub.f32 %v1977, %v2025
  %v2186 = vsub.f32 %v1978, %v2026
  %v2187 = vsub.f32 %v1979, %v2027
  %v2188 = vsub.f32 %v1980, %v2028
  %v2189 = vsub.f32 %v1981, %v2029
  %v2190 = vsub.f32 %v1982, %v2030
  %v2191 = vsub.f32 %v1983, %v2031
  %v2192 = vsub.f32 %v1984, %v2032
  %v2193 = vsub.f32 %v1985, %v2033
  %v2194 = vmul.f32 %v2178, 1.442695
  %v2195 = vpow.pop %v2194
  %v2196 = vmul.f32 %v2179, 1.442695
  %v2197 = vpow.pop %v2196
  %v2198 = vmul.f32 %v2180, 1.442695
  %v2199 = vpow.pop %v2198
  %v2200 = vmul.f32 %v2181, 1.442695
  %v2201 = vpow.pop %v2200
  %v2202 = vmul.f32 %v2182, 1.442695
  %v2203 = vpow.pop %v2202
  %v2204 = vmul.f32 %v2183, 1.442695
  %v2205 = vpow.pop %v2204
  %v2206 = vmul.f32 %v2184, 1.442695
  %v2207 = vpow.pop %v2206
  %v2208 = vmul.f32 %v2185, 1.442695
  %v2209 = vpow.pop %v2208
  %v2210 = vmul.f32 %v2186, 1.442695
  %v2211 = vpow.pop %v2210
  %v2212 = vmul.f32 %v2187, 1.442695
  %v2213 = vpow.pop %v2212
  %v2214 = vmul.f32 %v2188, 1.442695
  %v2215 = vpow.pop %v2214
  %v2216 = vmul.f32 %v2189, 1.442695
  %v2217 = vpow.pop %v2216
  %v2218 = vmul.f32 %v2190, 1.442695
  %v2219 = vpow.pop %v2218
  %v2220 = vmul.f32 %v2191, 1.442695
  %v2221 = vpow.pop %v2220
  %v2222 = vmul.f32 %v2192, 1.442695
  %v2223 = vpow.pop %v2222
  %v2224 = vmul.f32 %v2193, 1.442695
  %v2225 = vpow.pop %v2224
  %v2226 = vadd.f32 %v2051, %v2099
  %v2227 = vadd.f32 %v2053, %v2101
  %v2228 = vadd.f32 %v2055, %v2103
  %v2229 = vadd.f32 %v2057, %v2105
  %v2230 = vadd.f32 %v2059, %v2107
  %v2231 = vadd.f32 %v2061, %v2109
  %v2232 = vadd.f32 %v2063, %v2111
  %v2233 = vadd.f32 %v2065, %v2113
  %v2234 = vadd.f32 %v2067, %v2115
  %v2235 = vadd.f32 %v2069, %v2117
  %v2236 = vadd.f32 %v2071, %v2119
  %v2237 = vadd.f32 %v2073, %v2121
  %v2238 = vadd.f32 %v2075, %v2123
  %v2239 = vadd.f32 %v2077, %v2125
  %v2240 = vadd.f32 %v2079, %v2127
  %v2241 = vadd.f32 %v2081, %v2129
  %v2242 = vadd.f32 %v2226, %v2147
  %v2243 = vadd.f32 %v2227, %v2149
  %v2244 = vadd.f32 %v2228, %v2151
  %v2245 = vadd.f32 %v2229, %v2153
  %v2246 = vadd.f32 %v2230, %v2155
  %v2247 = vadd.f32 %v2231, %v2157
  %v2248 = vadd.f32 %v2232, %v2159
  %v2249 = vadd.f32 %v2233, %v2161
  %v2250 = vadd.f32 %v2234, %v2163
  %v2251 = vadd.f32 %v2235, %v2165
  %v2252 = vadd.f32 %v2236, %v2167
  %v2253 = vadd.f32 %v2237, %v2169
  %v2254 = vadd.f32 %v2238, %v2171
  %v2255 = vadd.f32 %v2239, %v2173
  %v2256 = vadd.f32 %v2240, %v2175
  %v2257 = vadd.f32 %v2241, %v2177
  %v2258 = vadd.f32 %v2242, %v2195
  %v2259 = vadd.f32 %v2243, %v2197
  %v2260 = vadd.f32 %v2244, %v2199
  %v2261 = vadd.f32 %v2245, %v2201
  %v2262 = vadd.f32 %v2246, %v2203
  %v2263 = vadd.f32 %v2247, %v2205
  %v2264 = vadd.f32 %v2248, %v2207
  %v2265 = vadd.f32 %v2249, %v2209
  %v2266 = vadd.f32 %v2250, %v2211
  %v2267 = vadd.f32 %v2251, %v2213
  %v2268 = vadd.f32 %v2252, %v2215
  %v2269 = vadd.f32 %v2253, %v2217
  %v2270 = vadd.f32 %v2254, %v2219
  %v2271 = vadd.f32 %v2255, %v2221
  %v2272 = vadd.f32 %v2256, %v2223
  %v2273 = vadd.f32 %v2257, %v2225
  %v2274 = vrcp.pop %v2258
  %v2275 = vrcp.pop %v2259
  %v2276 = vrcp.pop %v2260
  %v2277 = vrcp.pop %v2261
  %v2278 = vrcp.pop %v2262
  %v2279 = vrcp.pop %v2263
  %v2280 = vrcp.pop %v2264
  %v2281 = vrcp.pop %v2265
  %v2282 = vrcp.pop %v2266
  %v2283 = vrcp.pop %v2267
  %v2284 = vrcp.pop %v2268
  %v2285 = vrcp.pop %v2269
  %v2286 = vrcp.pop %v2270
  %v2287 = vrcp.pop %v2271
  %v2288 = vrcp.pop %v2272
  %v2289 = vrcp.pop %v2273
  %v2290 = vmul.f32 %v2051, %v2274
  %v2291 = vmul.f32 %v2053, %v2275
  %v2292 = vmul.f32 %v2055, %v2276
  %v2293 = vmul.f32 %v2057, %v2277
  %v2294 = vmul.f32 %v2059, %v2278
  %v2295 = vmul.f32 %v2061, %v2279
  %v2296 = vmul.f32 %v2063, %v2280
  %v2297 = vmul.f32 %v2065, %v2281
  %v2298 = vmul.f32 %v2067, %v2282
  %v2299 = vmul.f32 %v2069, %v2283
  %v2300 = vmul.f32 %v2071, %v2284
  %v2301 = vmul.f32 %v2073, %v2285
  %v2302 = vmul.f32 %v2075, %v2286
  %v2303 = vmul.f32 %v2077, %v2287
  %v2304 = vmul.f32 %v2079, %v2288
  %v2305 = vmul.f32 %v2081, %v2289
  %v2306 = vmul.f32 %v2290, %v147
  %v2307 = vmul.f32 %v2291, %v150
  %v2308 = vmul.f32 %v2292, %v155
  %v2309 = vmul.f32 %v2293, %v158
  %v2310 = vmul.f32 %v2294, %v163
  %v2311 = vmul.f32 %v2295, %v166
  %v2312 = vmul.f32 %v2296, %v171
  %v2313 = vmul.f32 %v2297, %v174
  %v2314 = vmul.f32 %v2298, %v179
  %v2315 = vmul.f32 %v2299, %v182
  %v2316 = vmul.f32 %v2300, %v187
  %v2317 = vmul.f32 %v2301, %v190
  %v2318 = vmul.f32 %v2302, %v195
  %v2319 = vmul.f32 %v2303, %v198
  %v2320 = vmul.f32 %v2304, %v203
  %v2321 = vmul.f32 %v2305, %v206
  %v2322 = vmul.f32 %v2099, %v2274
  %v2323 = vmul.f32 %v2101, %v2275
  %v2324 = vmul.f32 %v2103, %v2276
  %v2325 = vmul.f32 %v2105, %v2277
  %v2326 = vmul.f32 %v2107, %v2278
  %v2327 = vmul.f32 %v2109, %v2279
  %v2328 = vmul.f32 %v2111, %v2280
  %v2329 = vmul.f32 %v2113, %v2281
  %v2330 = vmul.f32 %v2115, %v2282
  %v2331 = vmul.f32 %v2117, %v2283
  %v2332 = vmul.f32 %v2119, %v2284
  %v2333 = vmul.f32 %v2121, %v2285
  %v2334 = vmul.f32 %v2123, %v2286
  %v2335 = vmul.f32 %v2125, %v2287
  %v2336 = vmul.f32 %v2127, %v2288
  %v2337 = vmul.f32 %v2129, %v2289
  %v2338 = vmul.f32 %v2322, %v147
  %v2339 = vmul.f32 %v2323, %v150
  %v2340 = vmul.f32 %v2324, %v155
  %v2341 = vmul.f32 %v2325, %v158
  %v2342 = vmul.f32 %v2326, %v163
  %v2343 = vmul.f32 %v2327, %v166
  %v2344 = vmul.f32 %v2328, %v171
  %v2345 = vmul.f32 %v2329, %v174
  %v2346 = vmul.f32 %v2330, %v179
  %v2347 = vmul.f32 %v2331, %v182
  %v2348 = vmul.f32 %v2332, %v187
  %v2349 = vmul.f32 %v2333, %v190
  %v2350 = vmul.f32 %v2334, %v195
  %v2351 = vmul.f32 %v2335, %v198
  %v2352 = vmul.f32 %v2336, %v203
  %v2353 = vmul.f32 %v2337, %v206
  %2370 = vrot.lane.b32.xlu0 %v2338, 120
  %v2371 = vpop.permute.xlu0 %2370
  %2372 = vrot.lane.b32.xlu0 %v2339, 120
  %v2373 = vpop.permute.xlu0 %2372
  %2374 = vrot.lane.b32.xlu0 %v2340, 120
  %v2375 = vpop.permute.xlu0 %2374
  %2376 = vrot.lane.b32.xlu0 %v2341, 120
  %v2377 = vpop.permute.xlu0 %2376
  %2378 = vrot.lane.b32.xlu0 %v2342, 120
  %v2379 = vpop.permute.xlu0 %2378
  %2380 = vrot.lane.b32.xlu0 %v2343, 120
  %v2381 = vpop.permute.xlu0 %2380
  %2382 = vrot.lane.b32.xlu0 %v2344, 120
  %v2383 = vpop.permute.xlu0 %2382
  %2384 = vrot.lane.b32.xlu0 %v2345, 120
  %v2385 = vpop.permute.xlu0 %2384
  %2386 = vrot.lane.b32.xlu0 %v2346, 120
  %v2387 = vpop.permute.xlu0 %2386
  %2388 = vrot.lane.b32.xlu0 %v2347, 120
  %v2389 = vpop.permute.xlu0 %2388
  %2390 = vrot.lane.b32.xlu0 %v2348, 120
  %v2391 = vpop.permute.xlu0 %2390
  %2392 = vrot.lane.b32.xlu0 %v2349, 120
  %v2393 = vpop.permute.xlu0 %2392
  %2394 = vrot.lane.b32.xlu0 %v2350, 120
  %v2395 = vpop.permute.xlu0 %2394
  %2396 = vrot.lane.b32.xlu0 %v2351, 120
  %v2397 = vpop.permute.xlu0 %2396
  %2398 = vrot.lane.b32.xlu0 %v2352, 120
  %v2399 = vpop.permute.xlu0 %2398
  %2400 = vrot.lane.b32.xlu0 %v2353, 120
  %v2401 = vpop.permute.xlu0 %2400
  %v2418 = vadd.f32 %v2306, %v2371
  %v2419 = vadd.f32 %v2307, %v2373
  %v2420 = vadd.f32 %v2308, %v2375
  %v2421 = vadd.f32 %v2309, %v2377
  %v2422 = vadd.f32 %v2310, %v2379
  %v2423 = vadd.f32 %v2311, %v2381
  %v2424 = vadd.f32 %v2312, %v2383
  %v2425 = vadd.f32 %v2313, %v2385
  %v2426 = vadd.f32 %v2314, %v2387
  %v2427 = vadd.f32 %v2315, %v2389
  %v2428 = vadd.f32 %v2316, %v2391
  %v2429 = vadd.f32 %v2317, %v2393
  %v2430 = vadd.f32 %v2318, %v2395
  %v2431 = vadd.f32 %v2319, %v2397
  %v2432 = vadd.f32 %v2320, %v2399
  %v2433 = vadd.f32 %v2321, %v2401
  %v2434 = vmul.f32 %v2147, %v2274
  %v2435 = vmul.f32 %v2149, %v2275
  %v2436 = vmul.f32 %v2151, %v2276
  %v2437 = vmul.f32 %v2153, %v2277
  %v2438 = vmul.f32 %v2155, %v2278
  %v2439 = vmul.f32 %v2157, %v2279
  %v2440 = vmul.f32 %v2159, %v2280
  %v2441 = vmul.f32 %v2161, %v2281
  %v2442 = vmul.f32 %v2163, %v2282
  %v2443 = vmul.f32 %v2165, %v2283
  %v2444 = vmul.f32 %v2167, %v2284
  %v2445 = vmul.f32 %v2169, %v2285
  %v2446 = vmul.f32 %v2171, %v2286
  %v2447 = vmul.f32 %v2173, %v2287
  %v2448 = vmul.f32 %v2175, %v2288
  %v2449 = vmul.f32 %v2177, %v2289
  %v2450 = vmul.f32 %v2434, %v147
  %v2451 = vmul.f32 %v2435, %v150
  %v2452 = vmul.f32 %v2436, %v155
  %v2453 = vmul.f32 %v2437, %v158
  %v2454 = vmul.f32 %v2438, %v163
  %v2455 = vmul.f32 %v2439, %v166
  %v2456 = vmul.f32 %v2440, %v171
  %v2457 = vmul.f32 %v2441, %v174
  %v2458 = vmul.f32 %v2442, %v179
  %v2459 = vmul.f32 %v2443, %v182
  %v2460 = vmul.f32 %v2444, %v187
  %v2461 = vmul.f32 %v2445, %v190
  %v2462 = vmul.f32 %v2446, %v195
  %v2463 = vmul.f32 %v2447, %v198
  %v2464 = vmul.f32 %v2448, %v203
  %v2465 = vmul.f32 %v2449, %v206
  %2482 = vrot.lane.b32.xlu0 %v2450, 112
  %v2483 = vpop.permute.xlu0 %2482
  %2484 = vrot.lane.b32.xlu0 %v2451, 112
  %v2485 = vpop.permute.xlu0 %2484
  %2486 = vrot.lane.b32.xlu0 %v2452, 112
  %v2487 = vpop.permute.xlu0 %2486
  %2488 = vrot.lane.b32.xlu0 %v2453, 112
  %v2489 = vpop.permute.xlu0 %2488
  %2490 = vrot.lane.b32.xlu0 %v2454, 112
  %v2491 = vpop.permute.xlu0 %2490
  %2492 = vrot.lane.b32.xlu0 %v2455, 112
  %v2493 = vpop.permute.xlu0 %2492
  %2494 = vrot.lane.b32.xlu0 %v2456, 112
  %v2495 = vpop.permute.xlu0 %2494
  %2496 = vrot.lane.b32.xlu0 %v2457, 112
  %v2497 = vpop.permute.xlu0 %2496
  %2498 = vrot.lane.b32.xlu0 %v2458, 112
  %v2499 = vpop.permute.xlu0 %2498
  %2500 = vrot.lane.b32.xlu0 %v2459, 112
  %v2501 = vpop.permute.xlu0 %2500
  %2502 = vrot.lane.b32.xlu0 %v2460, 112
  %v2503 = vpop.permute.xlu0 %2502
  %2504 = vrot.lane.b32.xlu0 %v2461, 112
  %v2505 = vpop.permute.xlu0 %2504
  %2506 = vrot.lane.b32.xlu0 %v2462, 112
  %v2507 = vpop.permute.xlu0 %2506
  %2508 = vrot.lane.b32.xlu0 %v2463, 112
  %v2509 = vpop.permute.xlu0 %2508
  %2510 = vrot.lane.b32.xlu0 %v2464, 112
  %v2511 = vpop.permute.xlu0 %2510
  %2512 = vrot.lane.b32.xlu0 %v2465, 112
  %v2513 = vpop.permute.xlu0 %2512
  %v2530 = vadd.f32 %v2418, %v2483
  %v2531 = vadd.f32 %v2419, %v2485
  %v2532 = vadd.f32 %v2420, %v2487
  %v2533 = vadd.f32 %v2421, %v2489
  %v2534 = vadd.f32 %v2422, %v2491
  %v2535 = vadd.f32 %v2423, %v2493
  %v2536 = vadd.f32 %v2424, %v2495
  %v2537 = vadd.f32 %v2425, %v2497
  %v2538 = vadd.f32 %v2426, %v2499
  %v2539 = vadd.f32 %v2427, %v2501
  %v2540 = vadd.f32 %v2428, %v2503
  %v2541 = vadd.f32 %v2429, %v2505
  %v2542 = vadd.f32 %v2430, %v2507
  %v2543 = vadd.f32 %v2431, %v2509
  %v2544 = vadd.f32 %v2432, %v2511
  %v2545 = vadd.f32 %v2433, %v2513
  %v2546 = vmul.f32 %v2195, %v2274
  %v2547 = vmul.f32 %v2197, %v2275
  %v2548 = vmul.f32 %v2199, %v2276
  %v2549 = vmul.f32 %v2201, %v2277
  %v2550 = vmul.f32 %v2203, %v2278
  %v2551 = vmul.f32 %v2205, %v2279
  %v2552 = vmul.f32 %v2207, %v2280
  %v2553 = vmul.f32 %v2209, %v2281
  %v2554 = vmul.f32 %v2211, %v2282
  %v2555 = vmul.f32 %v2213, %v2283
  %v2556 = vmul.f32 %v2215, %v2284
  %v2557 = vmul.f32 %v2217, %v2285
  %v2558 = vmul.f32 %v2219, %v2286
  %v2559 = vmul.f32 %v2221, %v2287
  %v2560 = vmul.f32 %v2223, %v2288
  %v2561 = vmul.f32 %v2225, %v2289
  %v2562 = vmul.f32 %v2546, %v147
  %v2563 = vmul.f32 %v2547, %v150
  %v2564 = vmul.f32 %v2548, %v155
  %v2565 = vmul.f32 %v2549, %v158
  %v2566 = vmul.f32 %v2550, %v163
  %v2567 = vmul.f32 %v2551, %v166
  %v2568 = vmul.f32 %v2552, %v171
  %v2569 = vmul.f32 %v2553, %v174
  %v2570 = vmul.f32 %v2554, %v179
  %v2571 = vmul.f32 %v2555, %v182
  %v2572 = vmul.f32 %v2556, %v187
  %v2573 = vmul.f32 %v2557, %v190
  %v2574 = vmul.f32 %v2558, %v195
  %v2575 = vmul.f32 %v2559, %v198
  %v2576 = vmul.f32 %v2560, %v203
  %v2577 = vmul.f32 %v2561, %v206
  %2594 = vrot.lane.b32.xlu0 %v2562, 104
  %v2595 = vpop.permute.xlu0 %2594
  %2596 = vrot.lane.b32.xlu0 %v2563, 104
  %v2597 = vpop.permute.xlu0 %2596
  %2598 = vrot.lane.b32.xlu0 %v2564, 104
  %v2599 = vpop.permute.xlu0 %2598
  %2600 = vrot.lane.b32.xlu0 %v2565, 104
  %v2601 = vpop.permute.xlu0 %2600
  %2602 = vrot.lane.b32.xlu0 %v2566, 104
  %v2603 = vpop.permute.xlu0 %2602
  %2604 = vrot.lane.b32.xlu0 %v2567, 104
  %v2605 = vpop.permute.xlu0 %2604
  %2606 = vrot.lane.b32.xlu0 %v2568, 104
  %v2607 = vpop.permute.xlu0 %2606
  %2608 = vrot.lane.b32.xlu0 %v2569, 104
  %v2609 = vpop.permute.xlu0 %2608
  %2610 = vrot.lane.b32.xlu0 %v2570, 104
  %v2611 = vpop.permute.xlu0 %2610
  %2612 = vrot.lane.b32.xlu0 %v2571, 104
  %v2613 = vpop.permute.xlu0 %2612
  %2614 = vrot.lane.b32.xlu0 %v2572, 104
  %v2615 = vpop.permute.xlu0 %2614
  %2616 = vrot.lane.b32.xlu0 %v2573, 104
  %v2617 = vpop.permute.xlu0 %2616
  %2618 = vrot.lane.b32.xlu0 %v2574, 104
  %v2619 = vpop.permute.xlu0 %2618
  %2620 = vrot.lane.b32.xlu0 %v2575, 104
  %v2621 = vpop.permute.xlu0 %2620
  %2622 = vrot.lane.b32.xlu0 %v2576, 104
  %v2623 = vpop.permute.xlu0 %2622
  %2624 = vrot.lane.b32.xlu0 %v2577, 104
  %v2625 = vpop.permute.xlu0 %2624
  %v2642 = vadd.f32 %v2530, %v2595
  %v2643 = vadd.f32 %v2531, %v2597
  %v2644 = vadd.f32 %v2532, %v2599
  %v2645 = vadd.f32 %v2533, %v2601
  %v2646 = vadd.f32 %v2534, %v2603
  %v2647 = vadd.f32 %v2535, %v2605
  %v2648 = vadd.f32 %v2536, %v2607
  %v2649 = vadd.f32 %v2537, %v2609
  %v2650 = vadd.f32 %v2538, %v2611
  %v2651 = vadd.f32 %v2539, %v2613
  %v2652 = vadd.f32 %v2540, %v2615
  %v2653 = vadd.f32 %v2541, %v2617
  %v2654 = vadd.f32 %v2542, %v2619
  %v2655 = vadd.f32 %v2543, %v2621
  %v2656 = vadd.f32 %v2544, %v2623
  %v2657 = vadd.f32 %v2545, %v2625
  %2658 = vrot.lane.b32.xlu0 %v147, 112
  %v2659 = vpop.permute.xlu0 %2658
  %2660 = vrot.lane.b32.xlu0 %v150, 112
  %v2661 = vpop.permute.xlu0 %2660
  %2662 = vrot.lane.b32.xlu0 %v155, 112
  %v2663 = vpop.permute.xlu0 %2662
  %2664 = vrot.lane.b32.xlu0 %v158, 112
  %v2665 = vpop.permute.xlu0 %2664
  %2666 = vrot.lane.b32.xlu0 %v163, 112
  %v2667 = vpop.permute.xlu0 %2666
  %2668 = vrot.lane.b32.xlu0 %v166, 112
  %v2669 = vpop.permute.xlu0 %2668
  %2670 = vrot.lane.b32.xlu0 %v171, 112
  %v2671 = vpop.permute.xlu0 %2670
  %2672 = vrot.lane.b32.xlu0 %v174, 112
  %v2673 = vpop.permute.xlu0 %2672
  %2674 = vrot.lane.b32.xlu0 %v179, 112
  %v2675 = vpop.permute.xlu0 %2674
  %2676 = vrot.lane.b32.xlu0 %v182, 112
  %v2677 = vpop.permute.xlu0 %2676
  %2678 = vrot.lane.b32.xlu0 %v187, 112
  %v2679 = vpop.permute.xlu0 %2678
  %2680 = vrot.lane.b32.xlu0 %v190, 112
  %v2681 = vpop.permute.xlu0 %2680
  %2682 = vrot.lane.b32.xlu0 %v195, 112
  %v2683 = vpop.permute.xlu0 %2682
  %2684 = vrot.lane.b32.xlu0 %v198, 112
  %v2685 = vpop.permute.xlu0 %2684
  %2686 = vrot.lane.b32.xlu0 %v203, 112
  %v2687 = vpop.permute.xlu0 %2686
  %2688 = vrot.lane.b32.xlu0 %v206, 112
  %v2689 = vpop.permute.xlu0 %2688
  %v2706 = vmul.f32 %v147, %v2659
  %v2707 = vmul.f32 %v150, %v2661
  %v2708 = vmul.f32 %v155, %v2663
  %v2709 = vmul.f32 %v158, %v2665
  %v2710 = vmul.f32 %v163, %v2667
  %v2711 = vmul.f32 %v166, %v2669
  %v2712 = vmul.f32 %v171, %v2671
  %v2713 = vmul.f32 %v174, %v2673
  %v2714 = vmul.f32 %v179, %v2675
  %v2715 = vmul.f32 %v182, %v2677
  %v2716 = vmul.f32 %v187, %v2679
  %v2717 = vmul.f32 %v190, %v2681
  %v2718 = vmul.f32 %v195, %v2683
  %v2719 = vmul.f32 %v198, %v2685
  %v2720 = vmul.f32 %v203, %v2687
  %v2721 = vmul.f32 %v206, %v2689
  %2738 = vrot.lane.b32.xlu0 %v2706, 112
  %v2739 = vpop.permute.xlu0 %2738
  %2740 = vrot.lane.b32.xlu0 %v2707, 112
  %v2741 = vpop.permute.xlu0 %2740
  %2742 = vrot.lane.b32.xlu0 %v2708, 112
  %v2743 = vpop.permute.xlu0 %2742
  %2744 = vrot.lane.b32.xlu0 %v2709, 112
  %v2745 = vpop.permute.xlu0 %2744
  %2746 = vrot.lane.b32.xlu0 %v2710, 112
  %v2747 = vpop.permute.xlu0 %2746
  %2748 = vrot.lane.b32.xlu0 %v2711, 112
  %v2749 = vpop.permute.xlu0 %2748
  %2750 = vrot.lane.b32.xlu0 %v2712, 112
  %v2751 = vpop.permute.xlu0 %2750
  %2752 = vrot.lane.b32.xlu0 %v2713, 112
  %v2753 = vpop.permute.xlu0 %2752
  %2754 = vrot.lane.b32.xlu0 %v2714, 112
  %v2755 = vpop.permute.xlu0 %2754
  %2756 = vrot.lane.b32.xlu0 %v2715, 112
  %v2757 = vpop.permute.xlu0 %2756
  %2758 = vrot.lane.b32.xlu0 %v2716, 112
  %v2759 = vpop.permute.xlu0 %2758
  %2760 = vrot.lane.b32.xlu0 %v2717, 112
  %v2761 = vpop.permute.xlu0 %2760
  %2762 = vrot.lane.b32.xlu0 %v2718, 112
  %v2763 = vpop.permute.xlu0 %2762
  %2764 = vrot.lane.b32.xlu0 %v2719, 112
  %v2765 = vpop.permute.xlu0 %2764
  %2766 = vrot.lane.b32.xlu0 %v2720, 112
  %v2767 = vpop.permute.xlu0 %2766
  %2768 = vrot.lane.b32.xlu0 %v2721, 112
  %v2769 = vpop.permute.xlu0 %2768
  %v2786 = vsel %vm289, %v2739, 0.0
  %2787 = vadd.xlane.f32.xlu0 %v2786
  %v2788 = vpop.xlane.xlu0 %2787
  %v2789 = vsel %vm289, %v2741, 0.0
  %2790 = vadd.xlane.f32.xlu0 %v2789
  %v2791 = vpop.xlane.xlu0 %2790
  %v2792 = vsel %vm289, %v2743, 0.0
  %2793 = vadd.xlane.f32.xlu0 %v2792
  %v2794 = vpop.xlane.xlu0 %2793
  %v2795 = vsel %vm289, %v2745, 0.0
  %2796 = vadd.xlane.f32.xlu0 %v2795
  %v2797 = vpop.xlane.xlu0 %2796
  %v2798 = vsel %vm289, %v2747, 0.0
  %2799 = vadd.xlane.f32.xlu0 %v2798
  %v2800 = vpop.xlane.xlu0 %2799
  %v2801 = vsel %vm289, %v2749, 0.0
  %2802 = vadd.xlane.f32.xlu0 %v2801
  %v2803 = vpop.xlane.xlu0 %2802
  %v2804 = vsel %vm289, %v2751, 0.0
  %2805 = vadd.xlane.f32.xlu0 %v2804
  %v2806 = vpop.xlane.xlu0 %2805
  %v2807 = vsel %vm289, %v2753, 0.0
  %2808 = vadd.xlane.f32.xlu0 %v2807
  %v2809 = vpop.xlane.xlu0 %2808
  %v2810 = vsel %vm289, %v2755, 0.0
  %2811 = vadd.xlane.f32.xlu0 %v2810
  %v2812 = vpop.xlane.xlu0 %2811
  %v2813 = vsel %vm289, %v2757, 0.0
  %2814 = vadd.xlane.f32.xlu0 %v2813
  %v2815 = vpop.xlane.xlu0 %2814
  %v2816 = vsel %vm289, %v2759, 0.0
  %2817 = vadd.xlane.f32.xlu0 %v2816
  %v2818 = vpop.xlane.xlu0 %2817
  %v2819 = vsel %vm289, %v2761, 0.0
  %2820 = vadd.xlane.f32.xlu0 %v2819
  %v2821 = vpop.xlane.xlu0 %2820
  %v2822 = vsel %vm289, %v2763, 0.0
  %2823 = vadd.xlane.f32.xlu0 %v2822
  %v2824 = vpop.xlane.xlu0 %2823
  %v2825 = vsel %vm289, %v2765, 0.0
  %2826 = vadd.xlane.f32.xlu0 %v2825
  %v2827 = vpop.xlane.xlu0 %2826
  %v2828 = vsel %vm289, %v2767, 0.0
  %2829 = vadd.xlane.f32.xlu0 %v2828
  %v2830 = vpop.xlane.xlu0 %2829
  %v2831 = vsel %vm289, %v2769, 0.0
  %2832 = vadd.xlane.f32.xlu0 %v2831
  %v2833 = vpop.xlane.xlu0 %2832
  %v2834 = vmul.f32 %v2788, 0.0625
  %v2835 = vmul.f32 %v2791, 0.0625
  %v2836 = vmul.f32 %v2794, 0.0625
  %v2837 = vmul.f32 %v2797, 0.0625
  %v2838 = vmul.f32 %v2800, 0.0625
  %v2839 = vmul.f32 %v2803, 0.0625
  %v2840 = vmul.f32 %v2806, 0.0625
  %v2841 = vmul.f32 %v2809, 0.0625
  %v2842 = vmul.f32 %v2812, 0.0625
  %v2843 = vmul.f32 %v2815, 0.0625
  %v2844 = vmul.f32 %v2818, 0.0625
  %v2845 = vmul.f32 %v2821, 0.0625
  %v2846 = vmul.f32 %v2824, 0.0625
  %v2847 = vmul.f32 %v2827, 0.0625
  %v2848 = vmul.f32 %v2830, 0.0625
  %v2849 = vmul.f32 %v2833, 0.0625
  %2850 = vrot.lane.b32.xlu0 %v1458, 112
  %v2851 = vpop.permute.xlu0 %2850
  %2852 = vrot.lane.b32.xlu0 %v1459, 112
  %v2853 = vpop.permute.xlu0 %2852
  %2854 = vrot.lane.b32.xlu0 %v1460, 112
  %v2855 = vpop.permute.xlu0 %2854
  %2856 = vrot.lane.b32.xlu0 %v1461, 112
  %v2857 = vpop.permute.xlu0 %2856
  %2858 = vrot.lane.b32.xlu0 %v1462, 112
  %v2859 = vpop.permute.xlu0 %2858
  %2860 = vrot.lane.b32.xlu0 %v1463, 112
  %v2861 = vpop.permute.xlu0 %2860
  %2862 = vrot.lane.b32.xlu0 %v1464, 112
  %v2863 = vpop.permute.xlu0 %2862
  %2864 = vrot.lane.b32.xlu0 %v1465, 112
  %v2865 = vpop.permute.xlu0 %2864
  %2866 = vrot.lane.b32.xlu0 %v1466, 112
  %v2867 = vpop.permute.xlu0 %2866
  %2868 = vrot.lane.b32.xlu0 %v1467, 112
  %v2869 = vpop.permute.xlu0 %2868
  %2870 = vrot.lane.b32.xlu0 %v1468, 112
  %v2871 = vpop.permute.xlu0 %2870
  %2872 = vrot.lane.b32.xlu0 %v1469, 112
  %v2873 = vpop.permute.xlu0 %2872
  %2874 = vrot.lane.b32.xlu0 %v1470, 112
  %v2875 = vpop.permute.xlu0 %2874
  %2876 = vrot.lane.b32.xlu0 %v1471, 112
  %v2877 = vpop.permute.xlu0 %2876
  %2878 = vrot.lane.b32.xlu0 %v1472, 112
  %v2879 = vpop.permute.xlu0 %2878
  %2880 = vrot.lane.b32.xlu0 %v1473, 112
  %v2881 = vpop.permute.xlu0 %2880
  %v2898 = vsel %vm289, %v2851, 0.0
  %2899 = vadd.xlane.f32.xlu0 %v2898
  %v2900 = vpop.xlane.xlu0 %2899
  %v2901 = vsel %vm289, %v2853, 0.0
  %2902 = vadd.xlane.f32.xlu0 %v2901
  %v2903 = vpop.xlane.xlu0 %2902
  %v2904 = vsel %vm289, %v2855, 0.0
  %2905 = vadd.xlane.f32.xlu0 %v2904
  %v2906 = vpop.xlane.xlu0 %2905
  %v2907 = vsel %vm289, %v2857, 0.0
  %2908 = vadd.xlane.f32.xlu0 %v2907
  %v2909 = vpop.xlane.xlu0 %2908
  %v2910 = vsel %vm289, %v2859, 0.0
  %2911 = vadd.xlane.f32.xlu0 %v2910
  %v2912 = vpop.xlane.xlu0 %2911
  %v2913 = vsel %vm289, %v2861, 0.0
  %2914 = vadd.xlane.f32.xlu0 %v2913
  %v2915 = vpop.xlane.xlu0 %2914
  %v2916 = vsel %vm289, %v2863, 0.0
  %2917 = vadd.xlane.f32.xlu0 %v2916
  %v2918 = vpop.xlane.xlu0 %2917
  %v2919 = vsel %vm289, %v2865, 0.0
  %2920 = vadd.xlane.f32.xlu0 %v2919
  %v2921 = vpop.xlane.xlu0 %2920
  %v2922 = vsel %vm289, %v2867, 0.0
  %2923 = vadd.xlane.f32.xlu0 %v2922
  %v2924 = vpop.xlane.xlu0 %2923
  %v2925 = vsel %vm289, %v2869, 0.0
  %2926 = vadd.xlane.f32.xlu0 %v2925
  %v2927 = vpop.xlane.xlu0 %2926
  %v2928 = vsel %vm289, %v2871, 0.0
  %2929 = vadd.xlane.f32.xlu0 %v2928
  %v2930 = vpop.xlane.xlu0 %2929
  %v2931 = vsel %vm289, %v2873, 0.0
  %2932 = vadd.xlane.f32.xlu0 %v2931
  %v2933 = vpop.xlane.xlu0 %2932
  %v2934 = vsel %vm289, %v2875, 0.0
  %2935 = vadd.xlane.f32.xlu0 %v2934
  %v2936 = vpop.xlane.xlu0 %2935
  %v2937 = vsel %vm289, %v2877, 0.0
  %2938 = vadd.xlane.f32.xlu0 %v2937
  %v2939 = vpop.xlane.xlu0 %2938
  %v2940 = vsel %vm289, %v2879, 0.0
  %2941 = vadd.xlane.f32.xlu0 %v2940
  %v2942 = vpop.xlane.xlu0 %2941
  %v2943 = vsel %vm289, %v2881, 0.0
  %2944 = vadd.xlane.f32.xlu0 %v2943
  %v2945 = vpop.xlane.xlu0 %2944
  %v2946 = vmul.f32 %v2900, 0.0625
  %v2947 = vmul.f32 %v2903, 0.0625
  %v2948 = vmul.f32 %v2906, 0.0625
  %v2949 = vmul.f32 %v2909, 0.0625
  %v2950 = vmul.f32 %v2912, 0.0625
  %v2951 = vmul.f32 %v2915, 0.0625
  %v2952 = vmul.f32 %v2918, 0.0625
  %v2953 = vmul.f32 %v2921, 0.0625
  %v2954 = vmul.f32 %v2924, 0.0625
  %v2955 = vmul.f32 %v2927, 0.0625
  %v2956 = vmul.f32 %v2930, 0.0625
  %v2957 = vmul.f32 %v2933, 0.0625
  %v2958 = vmul.f32 %v2936, 0.0625
  %v2959 = vmul.f32 %v2939, 0.0625
  %v2960 = vmul.f32 %v2942, 0.0625
  %v2961 = vmul.f32 %v2945, 0.0625
  %2962 = vrot.lane.b32.xlu0 %v273, 112
  %v2963 = vpop.permute.xlu0 %2962
  %2964 = vrot.lane.b32.xlu0 %v274, 112
  %v2965 = vpop.permute.xlu0 %2964
  %2966 = vrot.lane.b32.xlu0 %v275, 112
  %v2967 = vpop.permute.xlu0 %2966
  %2968 = vrot.lane.b32.xlu0 %v276, 112
  %v2969 = vpop.permute.xlu0 %2968
  %2970 = vrot.lane.b32.xlu0 %v277, 112
  %v2971 = vpop.permute.xlu0 %2970
  %2972 = vrot.lane.b32.xlu0 %v278, 112
  %v2973 = vpop.permute.xlu0 %2972
  %2974 = vrot.lane.b32.xlu0 %v279, 112
  %v2975 = vpop.permute.xlu0 %2974
  %2976 = vrot.lane.b32.xlu0 %v280, 112
  %v2977 = vpop.permute.xlu0 %2976
  %2978 = vrot.lane.b32.xlu0 %v281, 112
  %v2979 = vpop.permute.xlu0 %2978
  %2980 = vrot.lane.b32.xlu0 %v282, 112
  %v2981 = vpop.permute.xlu0 %2980
  %2982 = vrot.lane.b32.xlu0 %v283, 112
  %v2983 = vpop.permute.xlu0 %2982
  %2984 = vrot.lane.b32.xlu0 %v284, 112
  %v2985 = vpop.permute.xlu0 %2984
  %2986 = vrot.lane.b32.xlu0 %v285, 112
  %v2987 = vpop.permute.xlu0 %2986
  %2988 = vrot.lane.b32.xlu0 %v286, 112
  %v2989 = vpop.permute.xlu0 %2988
  %2990 = vrot.lane.b32.xlu0 %v287, 112
  %v2991 = vpop.permute.xlu0 %2990
  %2992 = vrot.lane.b32.xlu0 %v288, 112
  %v2993 = vpop.permute.xlu0 %2992
  %v3010 = vsel %vm289, %v2963, 0.0
  %3011 = vadd.xlane.f32.xlu0 %v3010
  %v3012 = vpop.xlane.xlu0 %3011
  %v3013 = vsel %vm289, %v2965, 0.0
  %3014 = vadd.xlane.f32.xlu0 %v3013
  %v3015 = vpop.xlane.xlu0 %3014
  %v3016 = vsel %vm289, %v2967, 0.0
  %3017 = vadd.xlane.f32.xlu0 %v3016
  %v3018 = vpop.xlane.xlu0 %3017
  %v3019 = vsel %vm289, %v2969, 0.0
  %3020 = vadd.xlane.f32.xlu0 %v3019
  %v3021 = vpop.xlane.xlu0 %3020
  %v3022 = vsel %vm289, %v2971, 0.0
  %3023 = vadd.xlane.f32.xlu0 %v3022
  %v3024 = vpop.xlane.xlu0 %3023
  %v3025 = vsel %vm289, %v2973, 0.0
  %3026 = vadd.xlane.f32.xlu0 %v3025
  %v3027 = vpop.xlane.xlu0 %3026
  %v3028 = vsel %vm289, %v2975, 0.0
  %3029 = vadd.xlane.f32.xlu0 %v3028
  %v3030 = vpop.xlane.xlu0 %3029
  %v3031 = vsel %vm289, %v2977, 0.0
  %3032 = vadd.xlane.f32.xlu0 %v3031
  %v3033 = vpop.xlane.xlu0 %3032
  %v3034 = vsel %vm289, %v2979, 0.0
  %3035 = vadd.xlane.f32.xlu0 %v3034
  %v3036 = vpop.xlane.xlu0 %3035
  %v3037 = vsel %vm289, %v2981, 0.0
  %3038 = vadd.xlane.f32.xlu0 %v3037
  %v3039 = vpop.xlane.xlu0 %3038
  %v3040 = vsel %vm289, %v2983, 0.0
  %3041 = vadd.xlane.f32.xlu0 %v3040
  %v3042 = vpop.xlane.xlu0 %3041
  %v3043 = vsel %vm289, %v2985, 0.0
  %3044 = vadd.xlane.f32.xlu0 %v3043
  %v3045 = vpop.xlane.xlu0 %3044
  %v3046 = vsel %vm289, %v2987, 0.0
  %3047 = vadd.xlane.f32.xlu0 %v3046
  %v3048 = vpop.xlane.xlu0 %3047
  %v3049 = vsel %vm289, %v2989, 0.0
  %3050 = vadd.xlane.f32.xlu0 %v3049
  %v3051 = vpop.xlane.xlu0 %3050
  %v3052 = vsel %vm289, %v2991, 0.0
  %3053 = vadd.xlane.f32.xlu0 %v3052
  %v3054 = vpop.xlane.xlu0 %3053
  %v3055 = vsel %vm289, %v2993, 0.0
  %3056 = vadd.xlane.f32.xlu0 %v3055
  %v3057 = vpop.xlane.xlu0 %3056
  %v3058 = vmul.f32 %v3012, 0.0625
  %v3059 = vmul.f32 %v3015, 0.0625
  %v3060 = vmul.f32 %v3018, 0.0625
  %v3061 = vmul.f32 %v3021, 0.0625
  %v3062 = vmul.f32 %v3024, 0.0625
  %v3063 = vmul.f32 %v3027, 0.0625
  %v3064 = vmul.f32 %v3030, 0.0625
  %v3065 = vmul.f32 %v3033, 0.0625
  %v3066 = vmul.f32 %v3036, 0.0625
  %v3067 = vmul.f32 %v3039, 0.0625
  %v3068 = vmul.f32 %v3042, 0.0625
  %v3069 = vmul.f32 %v3045, 0.0625
  %v3070 = vmul.f32 %v3048, 0.0625
  %v3071 = vmul.f32 %v3051, 0.0625
  %v3072 = vmul.f32 %v3054, 0.0625
  %v3073 = vmul.f32 %v3057, 0.0625
  %3074 = vrot.lane.b32.xlu0 %v402, 112
  %v3075 = vpop.permute.xlu0 %3074
  %3076 = vrot.lane.b32.xlu0 %v403, 112
  %v3077 = vpop.permute.xlu0 %3076
  %3078 = vrot.lane.b32.xlu0 %v404, 112
  %v3079 = vpop.permute.xlu0 %3078
  %3080 = vrot.lane.b32.xlu0 %v405, 112
  %v3081 = vpop.permute.xlu0 %3080
  %3082 = vrot.lane.b32.xlu0 %v406, 112
  %v3083 = vpop.permute.xlu0 %3082
  %3084 = vrot.lane.b32.xlu0 %v407, 112
  %v3085 = vpop.permute.xlu0 %3084
  %3086 = vrot.lane.b32.xlu0 %v408, 112
  %v3087 = vpop.permute.xlu0 %3086
  %3088 = vrot.lane.b32.xlu0 %v409, 112
  %v3089 = vpop.permute.xlu0 %3088
  %3090 = vrot.lane.b32.xlu0 %v410, 112
  %v3091 = vpop.permute.xlu0 %3090
  %3092 = vrot.lane.b32.xlu0 %v411, 112
  %v3093 = vpop.permute.xlu0 %3092
  %3094 = vrot.lane.b32.xlu0 %v412, 112
  %v3095 = vpop.permute.xlu0 %3094
  %3096 = vrot.lane.b32.xlu0 %v413, 112
  %v3097 = vpop.permute.xlu0 %3096
  %3098 = vrot.lane.b32.xlu0 %v414, 112
  %v3099 = vpop.permute.xlu0 %3098
  %3100 = vrot.lane.b32.xlu0 %v415, 112
  %v3101 = vpop.permute.xlu0 %3100
  %3102 = vrot.lane.b32.xlu0 %v416, 112
  %v3103 = vpop.permute.xlu0 %3102
  %3104 = vrot.lane.b32.xlu0 %v417, 112
  %v3105 = vpop.permute.xlu0 %3104
  %v3122 = vsel %vm289, %v3075, 0.0
  %3123 = vadd.xlane.f32.xlu0 %v3122
  %v3124 = vpop.xlane.xlu0 %3123
  %v3125 = vsel %vm289, %v3077, 0.0
  %3126 = vadd.xlane.f32.xlu0 %v3125
  %v3127 = vpop.xlane.xlu0 %3126
  %v3128 = vsel %vm289, %v3079, 0.0
  %3129 = vadd.xlane.f32.xlu0 %v3128
  %v3130 = vpop.xlane.xlu0 %3129
  %v3131 = vsel %vm289, %v3081, 0.0
  %3132 = vadd.xlane.f32.xlu0 %v3131
  %v3133 = vpop.xlane.xlu0 %3132
  %v3134 = vsel %vm289, %v3083, 0.0
  %3135 = vadd.xlane.f32.xlu0 %v3134
  %v3136 = vpop.xlane.xlu0 %3135
  %v3137 = vsel %vm289, %v3085, 0.0
  %3138 = vadd.xlane.f32.xlu0 %v3137
  %v3139 = vpop.xlane.xlu0 %3138
  %v3140 = vsel %vm289, %v3087, 0.0
  %3141 = vadd.xlane.f32.xlu0 %v3140
  %v3142 = vpop.xlane.xlu0 %3141
  %v3143 = vsel %vm289, %v3089, 0.0
  %3144 = vadd.xlane.f32.xlu0 %v3143
  %v3145 = vpop.xlane.xlu0 %3144
  %v3146 = vsel %vm289, %v3091, 0.0
  %3147 = vadd.xlane.f32.xlu0 %v3146
  %v3148 = vpop.xlane.xlu0 %3147
  %v3149 = vsel %vm289, %v3093, 0.0
  %3150 = vadd.xlane.f32.xlu0 %v3149
  %v3151 = vpop.xlane.xlu0 %3150
  %v3152 = vsel %vm289, %v3095, 0.0
  %3153 = vadd.xlane.f32.xlu0 %v3152
  %v3154 = vpop.xlane.xlu0 %3153
  %v3155 = vsel %vm289, %v3097, 0.0
  %3156 = vadd.xlane.f32.xlu0 %v3155
  %v3157 = vpop.xlane.xlu0 %3156
  %v3158 = vsel %vm289, %v3099, 0.0
  %3159 = vadd.xlane.f32.xlu0 %v3158
  %v3160 = vpop.xlane.xlu0 %3159
  %v3161 = vsel %vm289, %v3101, 0.0
  %3162 = vadd.xlane.f32.xlu0 %v3161
  %v3163 = vpop.xlane.xlu0 %3162
  %v3164 = vsel %vm289, %v3103, 0.0
  %3165 = vadd.xlane.f32.xlu0 %v3164
  %v3166 = vpop.xlane.xlu0 %3165
  %v3167 = vsel %vm289, %v3105, 0.0
  %3168 = vadd.xlane.f32.xlu0 %v3167
  %v3169 = vpop.xlane.xlu0 %3168
  %v3170 = vmul.f32 %v3124, 0.0625
  %v3171 = vmul.f32 %v3127, 0.0625
  %v3172 = vmul.f32 %v3130, 0.0625
  %v3173 = vmul.f32 %v3133, 0.0625
  %v3174 = vmul.f32 %v3136, 0.0625
  %v3175 = vmul.f32 %v3139, 0.0625
  %v3176 = vmul.f32 %v3142, 0.0625
  %v3177 = vmul.f32 %v3145, 0.0625
  %v3178 = vmul.f32 %v3148, 0.0625
  %v3179 = vmul.f32 %v3151, 0.0625
  %v3180 = vmul.f32 %v3154, 0.0625
  %v3181 = vmul.f32 %v3157, 0.0625
  %v3182 = vmul.f32 %v3160, 0.0625
  %v3183 = vmul.f32 %v3163, 0.0625
  %v3184 = vmul.f32 %v3166, 0.0625
  %v3185 = vmul.f32 %v3169, 0.0625
  %v3186 = vmax.f32 %v2834, %v2946
  %v3187 = vmax.f32 %v2835, %v2947
  %v3188 = vmax.f32 %v2836, %v2948
  %v3189 = vmax.f32 %v2837, %v2949
  %v3190 = vmax.f32 %v2838, %v2950
  %v3191 = vmax.f32 %v2839, %v2951
  %v3192 = vmax.f32 %v2840, %v2952
  %v3193 = vmax.f32 %v2841, %v2953
  %v3194 = vmax.f32 %v2842, %v2954
  %v3195 = vmax.f32 %v2843, %v2955
  %v3196 = vmax.f32 %v2844, %v2956
  %v3197 = vmax.f32 %v2845, %v2957
  %v3198 = vmax.f32 %v2846, %v2958
  %v3199 = vmax.f32 %v2847, %v2959
  %v3200 = vmax.f32 %v2848, %v2960
  %v3201 = vmax.f32 %v2849, %v2961
  %v3202 = vmax.f32 %v3186, %v3058
  %v3203 = vmax.f32 %v3187, %v3059
  %v3204 = vmax.f32 %v3188, %v3060
  %v3205 = vmax.f32 %v3189, %v3061
  %v3206 = vmax.f32 %v3190, %v3062
  %v3207 = vmax.f32 %v3191, %v3063
  %v3208 = vmax.f32 %v3192, %v3064
  %v3209 = vmax.f32 %v3193, %v3065
  %v3210 = vmax.f32 %v3194, %v3066
  %v3211 = vmax.f32 %v3195, %v3067
  %v3212 = vmax.f32 %v3196, %v3068
  %v3213 = vmax.f32 %v3197, %v3069
  %v3214 = vmax.f32 %v3198, %v3070
  %v3215 = vmax.f32 %v3199, %v3071
  %v3216 = vmax.f32 %v3200, %v3072
  %v3217 = vmax.f32 %v3201, %v3073
  %v3218 = vmax.f32 %v3202, %v3170
  %v3219 = vmax.f32 %v3203, %v3171
  %v3220 = vmax.f32 %v3204, %v3172
  %v3221 = vmax.f32 %v3205, %v3173
  %v3222 = vmax.f32 %v3206, %v3174
  %v3223 = vmax.f32 %v3207, %v3175
  %v3224 = vmax.f32 %v3208, %v3176
  %v3225 = vmax.f32 %v3209, %v3177
  %v3226 = vmax.f32 %v3210, %v3178
  %v3227 = vmax.f32 %v3211, %v3179
  %v3228 = vmax.f32 %v3212, %v3180
  %v3229 = vmax.f32 %v3213, %v3181
  %v3230 = vmax.f32 %v3214, %v3182
  %v3231 = vmax.f32 %v3215, %v3183
  %v3232 = vmax.f32 %v3216, %v3184
  %v3233 = vmax.f32 %v3217, %v3185
  %v3234 = vsub.f32 %v2834, %v3218
  %v3235 = vsub.f32 %v2835, %v3219
  %v3236 = vsub.f32 %v2836, %v3220
  %v3237 = vsub.f32 %v2837, %v3221
  %v3238 = vsub.f32 %v2838, %v3222
  %v3239 = vsub.f32 %v2839, %v3223
  %v3240 = vsub.f32 %v2840, %v3224
  %v3241 = vsub.f32 %v2841, %v3225
  %v3242 = vsub.f32 %v2842, %v3226
  %v3243 = vsub.f32 %v2843, %v3227
  %v3244 = vsub.f32 %v2844, %v3228
  %v3245 = vsub.f32 %v2845, %v3229
  %v3246 = vsub.f32 %v2846, %v3230
  %v3247 = vsub.f32 %v2847, %v3231
  %v3248 = vsub.f32 %v2848, %v3232
  %v3249 = vsub.f32 %v2849, %v3233
  %v3250 = vmul.f32 %v3234, 1.442695
  %v3251 = vpow.pop %v3250
  %v3252 = vmul.f32 %v3235, 1.442695
  %v3253 = vpow.pop %v3252
  %v3254 = vmul.f32 %v3236, 1.442695
  %v3255 = vpow.pop %v3254
  %v3256 = vmul.f32 %v3237, 1.442695
  %v3257 = vpow.pop %v3256
  %v3258 = vmul.f32 %v3238, 1.442695
  %v3259 = vpow.pop %v3258
  %v3260 = vmul.f32 %v3239, 1.442695
  %v3261 = vpow.pop %v3260
  %v3262 = vmul.f32 %v3240, 1.442695
  %v3263 = vpow.pop %v3262
  %v3264 = vmul.f32 %v3241, 1.442695
  %v3265 = vpow.pop %v3264
  %v3266 = vmul.f32 %v3242, 1.442695
  %v3267 = vpow.pop %v3266
  %v3268 = vmul.f32 %v3243, 1.442695
  %v3269 = vpow.pop %v3268
  %v3270 = vmul.f32 %v3244, 1.442695
  %v3271 = vpow.pop %v3270
  %v3272 = vmul.f32 %v3245, 1.442695
  %v3273 = vpow.pop %v3272
  %v3274 = vmul.f32 %v3246, 1.442695
  %v3275 = vpow.pop %v3274
  %v3276 = vmul.f32 %v3247, 1.442695
  %v3277 = vpow.pop %v3276
  %v3278 = vmul.f32 %v3248, 1.442695
  %v3279 = vpow.pop %v3278
  %v3280 = vmul.f32 %v3249, 1.442695
  %v3281 = vpow.pop %v3280
  %v3282 = vsub.f32 %v2946, %v3218
  %v3283 = vsub.f32 %v2947, %v3219
  %v3284 = vsub.f32 %v2948, %v3220
  %v3285 = vsub.f32 %v2949, %v3221
  %v3286 = vsub.f32 %v2950, %v3222
  %v3287 = vsub.f32 %v2951, %v3223
  %v3288 = vsub.f32 %v2952, %v3224
  %v3289 = vsub.f32 %v2953, %v3225
  %v3290 = vsub.f32 %v2954, %v3226
  %v3291 = vsub.f32 %v2955, %v3227
  %v3292 = vsub.f32 %v2956, %v3228
  %v3293 = vsub.f32 %v2957, %v3229
  %v3294 = vsub.f32 %v2958, %v3230
  %v3295 = vsub.f32 %v2959, %v3231
  %v3296 = vsub.f32 %v2960, %v3232
  %v3297 = vsub.f32 %v2961, %v3233
  %v3298 = vmul.f32 %v3282, 1.442695
  %v3299 = vpow.pop %v3298
  %v3300 = vmul.f32 %v3283, 1.442695
  %v3301 = vpow.pop %v3300
  %v3302 = vmul.f32 %v3284, 1.442695
  %v3303 = vpow.pop %v3302
  %v3304 = vmul.f32 %v3285, 1.442695
  %v3305 = vpow.pop %v3304
  %v3306 = vmul.f32 %v3286, 1.442695
  %v3307 = vpow.pop %v3306
  %v3308 = vmul.f32 %v3287, 1.442695
  %v3309 = vpow.pop %v3308
  %v3310 = vmul.f32 %v3288, 1.442695
  %v3311 = vpow.pop %v3310
  %v3312 = vmul.f32 %v3289, 1.442695
  %v3313 = vpow.pop %v3312
  %v3314 = vmul.f32 %v3290, 1.442695
  %v3315 = vpow.pop %v3314
  %v3316 = vmul.f32 %v3291, 1.442695
  %v3317 = vpow.pop %v3316
  %v3318 = vmul.f32 %v3292, 1.442695
  %v3319 = vpow.pop %v3318
  %v3320 = vmul.f32 %v3293, 1.442695
  %v3321 = vpow.pop %v3320
  %v3322 = vmul.f32 %v3294, 1.442695
  %v3323 = vpow.pop %v3322
  %v3324 = vmul.f32 %v3295, 1.442695
  %v3325 = vpow.pop %v3324
  %v3326 = vmul.f32 %v3296, 1.442695
  %v3327 = vpow.pop %v3326
  %v3328 = vmul.f32 %v3297, 1.442695
  %v3329 = vpow.pop %v3328
  %v3330 = vsub.f32 %v3058, %v3218
  %v3331 = vsub.f32 %v3059, %v3219
  %v3332 = vsub.f32 %v3060, %v3220
  %v3333 = vsub.f32 %v3061, %v3221
  %v3334 = vsub.f32 %v3062, %v3222
  %v3335 = vsub.f32 %v3063, %v3223
  %v3336 = vsub.f32 %v3064, %v3224
  %v3337 = vsub.f32 %v3065, %v3225
  %v3338 = vsub.f32 %v3066, %v3226
  %v3339 = vsub.f32 %v3067, %v3227
  %v3340 = vsub.f32 %v3068, %v3228
  %v3341 = vsub.f32 %v3069, %v3229
  %v3342 = vsub.f32 %v3070, %v3230
  %v3343 = vsub.f32 %v3071, %v3231
  %v3344 = vsub.f32 %v3072, %v3232
  %v3345 = vsub.f32 %v3073, %v3233
  %v3346 = vmul.f32 %v3330, 1.442695
  %v3347 = vpow.pop %v3346
  %v3348 = vmul.f32 %v3331, 1.442695
  %v3349 = vpow.pop %v3348
  %v3350 = vmul.f32 %v3332, 1.442695
  %v3351 = vpow.pop %v3350
  %v3352 = vmul.f32 %v3333, 1.442695
  %v3353 = vpow.pop %v3352
  %v3354 = vmul.f32 %v3334, 1.442695
  %v3355 = vpow.pop %v3354
  %v3356 = vmul.f32 %v3335, 1.442695
  %v3357 = vpow.pop %v3356
  %v3358 = vmul.f32 %v3336, 1.442695
  %v3359 = vpow.pop %v3358
  %v3360 = vmul.f32 %v3337, 1.442695
  %v3361 = vpow.pop %v3360
  %v3362 = vmul.f32 %v3338, 1.442695
  %v3363 = vpow.pop %v3362
  %v3364 = vmul.f32 %v3339, 1.442695
  %v3365 = vpow.pop %v3364
  %v3366 = vmul.f32 %v3340, 1.442695
  %v3367 = vpow.pop %v3366
  %v3368 = vmul.f32 %v3341, 1.442695
  %v3369 = vpow.pop %v3368
  %v3370 = vmul.f32 %v3342, 1.442695
  %v3371 = vpow.pop %v3370
  %v3372 = vmul.f32 %v3343, 1.442695
  %v3373 = vpow.pop %v3372
  %v3374 = vmul.f32 %v3344, 1.442695
  %v3375 = vpow.pop %v3374
  %v3376 = vmul.f32 %v3345, 1.442695
  %v3377 = vpow.pop %v3376
  %v3378 = vsub.f32 %v3170, %v3218
  %v3379 = vsub.f32 %v3171, %v3219
  %v3380 = vsub.f32 %v3172, %v3220
  %v3381 = vsub.f32 %v3173, %v3221
  %v3382 = vsub.f32 %v3174, %v3222
  %v3383 = vsub.f32 %v3175, %v3223
  %v3384 = vsub.f32 %v3176, %v3224
  %v3385 = vsub.f32 %v3177, %v3225
  %v3386 = vsub.f32 %v3178, %v3226
  %v3387 = vsub.f32 %v3179, %v3227
  %v3388 = vsub.f32 %v3180, %v3228
  %v3389 = vsub.f32 %v3181, %v3229
  %v3390 = vsub.f32 %v3182, %v3230
  %v3391 = vsub.f32 %v3183, %v3231
  %v3392 = vsub.f32 %v3184, %v3232
  %v3393 = vsub.f32 %v3185, %v3233
  %v3394 = vmul.f32 %v3378, 1.442695
  %v3395 = vpow.pop %v3394
  %v3396 = vmul.f32 %v3379, 1.442695
  %v3397 = vpow.pop %v3396
  %v3398 = vmul.f32 %v3380, 1.442695
  %v3399 = vpow.pop %v3398
  %v3400 = vmul.f32 %v3381, 1.442695
  %v3401 = vpow.pop %v3400
  %v3402 = vmul.f32 %v3382, 1.442695
  %v3403 = vpow.pop %v3402
  %v3404 = vmul.f32 %v3383, 1.442695
  %v3405 = vpow.pop %v3404
  %v3406 = vmul.f32 %v3384, 1.442695
  %v3407 = vpow.pop %v3406
  %v3408 = vmul.f32 %v3385, 1.442695
  %v3409 = vpow.pop %v3408
  %v3410 = vmul.f32 %v3386, 1.442695
  %v3411 = vpow.pop %v3410
  %v3412 = vmul.f32 %v3387, 1.442695
  %v3413 = vpow.pop %v3412
  %v3414 = vmul.f32 %v3388, 1.442695
  %v3415 = vpow.pop %v3414
  %v3416 = vmul.f32 %v3389, 1.442695
  %v3417 = vpow.pop %v3416
  %v3418 = vmul.f32 %v3390, 1.442695
  %v3419 = vpow.pop %v3418
  %v3420 = vmul.f32 %v3391, 1.442695
  %v3421 = vpow.pop %v3420
  %v3422 = vmul.f32 %v3392, 1.442695
  %v3423 = vpow.pop %v3422
  %v3424 = vmul.f32 %v3393, 1.442695
  %v3425 = vpow.pop %v3424
  %v3426 = vadd.f32 %v3251, %v3299
  %v3427 = vadd.f32 %v3253, %v3301
  %v3428 = vadd.f32 %v3255, %v3303
  %v3429 = vadd.f32 %v3257, %v3305
  %v3430 = vadd.f32 %v3259, %v3307
  %v3431 = vadd.f32 %v3261, %v3309
  %v3432 = vadd.f32 %v3263, %v3311
  %v3433 = vadd.f32 %v3265, %v3313
  %v3434 = vadd.f32 %v3267, %v3315
  %v3435 = vadd.f32 %v3269, %v3317
  %v3436 = vadd.f32 %v3271, %v3319
  %v3437 = vadd.f32 %v3273, %v3321
  %v3438 = vadd.f32 %v3275, %v3323
  %v3439 = vadd.f32 %v3277, %v3325
  %v3440 = vadd.f32 %v3279, %v3327
  %v3441 = vadd.f32 %v3281, %v3329
  %v3442 = vadd.f32 %v3426, %v3347
  %v3443 = vadd.f32 %v3427, %v3349
  %v3444 = vadd.f32 %v3428, %v3351
  %v3445 = vadd.f32 %v3429, %v3353
  %v3446 = vadd.f32 %v3430, %v3355
  %v3447 = vadd.f32 %v3431, %v3357
  %v3448 = vadd.f32 %v3432, %v3359
  %v3449 = vadd.f32 %v3433, %v3361
  %v3450 = vadd.f32 %v3434, %v3363
  %v3451 = vadd.f32 %v3435, %v3365
  %v3452 = vadd.f32 %v3436, %v3367
  %v3453 = vadd.f32 %v3437, %v3369
  %v3454 = vadd.f32 %v3438, %v3371
  %v3455 = vadd.f32 %v3439, %v3373
  %v3456 = vadd.f32 %v3440, %v3375
  %v3457 = vadd.f32 %v3441, %v3377
  %v3458 = vadd.f32 %v3442, %v3395
  %v3459 = vadd.f32 %v3443, %v3397
  %v3460 = vadd.f32 %v3444, %v3399
  %v3461 = vadd.f32 %v3445, %v3401
  %v3462 = vadd.f32 %v3446, %v3403
  %v3463 = vadd.f32 %v3447, %v3405
  %v3464 = vadd.f32 %v3448, %v3407
  %v3465 = vadd.f32 %v3449, %v3409
  %v3466 = vadd.f32 %v3450, %v3411
  %v3467 = vadd.f32 %v3451, %v3413
  %v3468 = vadd.f32 %v3452, %v3415
  %v3469 = vadd.f32 %v3453, %v3417
  %v3470 = vadd.f32 %v3454, %v3419
  %v3471 = vadd.f32 %v3455, %v3421
  %v3472 = vadd.f32 %v3456, %v3423
  %v3473 = vadd.f32 %v3457, %v3425
  %v3474 = vrcp.pop %v3458
  %v3475 = vrcp.pop %v3459
  %v3476 = vrcp.pop %v3460
  %v3477 = vrcp.pop %v3461
  %v3478 = vrcp.pop %v3462
  %v3479 = vrcp.pop %v3463
  %v3480 = vrcp.pop %v3464
  %v3481 = vrcp.pop %v3465
  %v3482 = vrcp.pop %v3466
  %v3483 = vrcp.pop %v3467
  %v3484 = vrcp.pop %v3468
  %v3485 = vrcp.pop %v3469
  %v3486 = vrcp.pop %v3470
  %v3487 = vrcp.pop %v3471
  %v3488 = vrcp.pop %v3472
  %v3489 = vrcp.pop %v3473
  %v3490 = vmul.f32 %v3251, %v3474
  %v3491 = vmul.f32 %v3253, %v3475
  %v3492 = vmul.f32 %v3255, %v3476
  %v3493 = vmul.f32 %v3257, %v3477
  %v3494 = vmul.f32 %v3259, %v3478
  %v3495 = vmul.f32 %v3261, %v3479
  %v3496 = vmul.f32 %v3263, %v3480
  %v3497 = vmul.f32 %v3265, %v3481
  %v3498 = vmul.f32 %v3267, %v3482
  %v3499 = vmul.f32 %v3269, %v3483
  %v3500 = vmul.f32 %v3271, %v3484
  %v3501 = vmul.f32 %v3273, %v3485
  %v3502 = vmul.f32 %v3275, %v3486
  %v3503 = vmul.f32 %v3277, %v3487
  %v3504 = vmul.f32 %v3279, %v3488
  %v3505 = vmul.f32 %v3281, %v3489
  %v3506 = vmul.f32 %v3490, %v147
  %v3507 = vmul.f32 %v3491, %v150
  %v3508 = vmul.f32 %v3492, %v155
  %v3509 = vmul.f32 %v3493, %v158
  %v3510 = vmul.f32 %v3494, %v163
  %v3511 = vmul.f32 %v3495, %v166
  %v3512 = vmul.f32 %v3496, %v171
  %v3513 = vmul.f32 %v3497, %v174
  %v3514 = vmul.f32 %v3498, %v179
  %v3515 = vmul.f32 %v3499, %v182
  %v3516 = vmul.f32 %v3500, %v187
  %v3517 = vmul.f32 %v3501, %v190
  %v3518 = vmul.f32 %v3502, %v195
  %v3519 = vmul.f32 %v3503, %v198
  %v3520 = vmul.f32 %v3504, %v203
  %v3521 = vmul.f32 %v3505, %v206
  %v3522 = vmul.f32 %v3299, %v3474
  %v3523 = vmul.f32 %v3301, %v3475
  %v3524 = vmul.f32 %v3303, %v3476
  %v3525 = vmul.f32 %v3305, %v3477
  %v3526 = vmul.f32 %v3307, %v3478
  %v3527 = vmul.f32 %v3309, %v3479
  %v3528 = vmul.f32 %v3311, %v3480
  %v3529 = vmul.f32 %v3313, %v3481
  %v3530 = vmul.f32 %v3315, %v3482
  %v3531 = vmul.f32 %v3317, %v3483
  %v3532 = vmul.f32 %v3319, %v3484
  %v3533 = vmul.f32 %v3321, %v3485
  %v3534 = vmul.f32 %v3323, %v3486
  %v3535 = vmul.f32 %v3325, %v3487
  %v3536 = vmul.f32 %v3327, %v3488
  %v3537 = vmul.f32 %v3329, %v3489
  %v3538 = vmul.f32 %v3522, %v147
  %v3539 = vmul.f32 %v3523, %v150
  %v3540 = vmul.f32 %v3524, %v155
  %v3541 = vmul.f32 %v3525, %v158
  %v3542 = vmul.f32 %v3526, %v163
  %v3543 = vmul.f32 %v3527, %v166
  %v3544 = vmul.f32 %v3528, %v171
  %v3545 = vmul.f32 %v3529, %v174
  %v3546 = vmul.f32 %v3530, %v179
  %v3547 = vmul.f32 %v3531, %v182
  %v3548 = vmul.f32 %v3532, %v187
  %v3549 = vmul.f32 %v3533, %v190
  %v3550 = vmul.f32 %v3534, %v195
  %v3551 = vmul.f32 %v3535, %v198
  %v3552 = vmul.f32 %v3536, %v203
  %v3553 = vmul.f32 %v3537, %v206
  %3570 = vrot.lane.b32.xlu0 %v3538, 120
  %v3571 = vpop.permute.xlu0 %3570
  %3572 = vrot.lane.b32.xlu0 %v3539, 120
  %v3573 = vpop.permute.xlu0 %3572
  %3574 = vrot.lane.b32.xlu0 %v3540, 120
  %v3575 = vpop.permute.xlu0 %3574
  %3576 = vrot.lane.b32.xlu0 %v3541, 120
  %v3577 = vpop.permute.xlu0 %3576
  %3578 = vrot.lane.b32.xlu0 %v3542, 120
  %v3579 = vpop.permute.xlu0 %3578
  %3580 = vrot.lane.b32.xlu0 %v3543, 120
  %v3581 = vpop.permute.xlu0 %3580
  %3582 = vrot.lane.b32.xlu0 %v3544, 120
  %v3583 = vpop.permute.xlu0 %3582
  %3584 = vrot.lane.b32.xlu0 %v3545, 120
  %v3585 = vpop.permute.xlu0 %3584
  %3586 = vrot.lane.b32.xlu0 %v3546, 120
  %v3587 = vpop.permute.xlu0 %3586
  %3588 = vrot.lane.b32.xlu0 %v3547, 120
  %v3589 = vpop.permute.xlu0 %3588
  %3590 = vrot.lane.b32.xlu0 %v3548, 120
  %v3591 = vpop.permute.xlu0 %3590
  %3592 = vrot.lane.b32.xlu0 %v3549, 120
  %v3593 = vpop.permute.xlu0 %3592
  %3594 = vrot.lane.b32.xlu0 %v3550, 120
  %v3595 = vpop.permute.xlu0 %3594
  %3596 = vrot.lane.b32.xlu0 %v3551, 120
  %v3597 = vpop.permute.xlu0 %3596
  %3598 = vrot.lane.b32.xlu0 %v3552, 120
  %v3599 = vpop.permute.xlu0 %3598
  %3600 = vrot.lane.b32.xlu0 %v3553, 120
  %v3601 = vpop.permute.xlu0 %3600
  %v3618 = vadd.f32 %v3506, %v3571
  %v3619 = vadd.f32 %v3507, %v3573
  %v3620 = vadd.f32 %v3508, %v3575
  %v3621 = vadd.f32 %v3509, %v3577
  %v3622 = vadd.f32 %v3510, %v3579
  %v3623 = vadd.f32 %v3511, %v3581
  %v3624 = vadd.f32 %v3512, %v3583
  %v3625 = vadd.f32 %v3513, %v3585
  %v3626 = vadd.f32 %v3514, %v3587
  %v3627 = vadd.f32 %v3515, %v3589
  %v3628 = vadd.f32 %v3516, %v3591
  %v3629 = vadd.f32 %v3517, %v3593
  %v3630 = vadd.f32 %v3518, %v3595
  %v3631 = vadd.f32 %v3519, %v3597
  %v3632 = vadd.f32 %v3520, %v3599
  %v3633 = vadd.f32 %v3521, %v3601
  %v3634 = vmul.f32 %v3347, %v3474
  %v3635 = vmul.f32 %v3349, %v3475
  %v3636 = vmul.f32 %v3351, %v3476
  %v3637 = vmul.f32 %v3353, %v3477
  %v3638 = vmul.f32 %v3355, %v3478
  %v3639 = vmul.f32 %v3357, %v3479
  %v3640 = vmul.f32 %v3359, %v3480
  %v3641 = vmul.f32 %v3361, %v3481
  %v3642 = vmul.f32 %v3363, %v3482
  %v3643 = vmul.f32 %v3365, %v3483
  %v3644 = vmul.f32 %v3367, %v3484
  %v3645 = vmul.f32 %v3369, %v3485
  %v3646 = vmul.f32 %v3371, %v3486
  %v3647 = vmul.f32 %v3373, %v3487
  %v3648 = vmul.f32 %v3375, %v3488
  %v3649 = vmul.f32 %v3377, %v3489
  %v3650 = vmul.f32 %v3634, %v147
  %v3651 = vmul.f32 %v3635, %v150
  %v3652 = vmul.f32 %v3636, %v155
  %v3653 = vmul.f32 %v3637, %v158
  %v3654 = vmul.f32 %v3638, %v163
  %v3655 = vmul.f32 %v3639, %v166
  %v3656 = vmul.f32 %v3640, %v171
  %v3657 = vmul.f32 %v3641, %v174
  %v3658 = vmul.f32 %v3642, %v179
  %v3659 = vmul.f32 %v3643, %v182
  %v3660 = vmul.f32 %v3644, %v187
  %v3661 = vmul.f32 %v3645, %v190
  %v3662 = vmul.f32 %v3646, %v195
  %v3663 = vmul.f32 %v3647, %v198
  %v3664 = vmul.f32 %v3648, %v203
  %v3665 = vmul.f32 %v3649, %v206
  %3682 = vrot.lane.b32.xlu0 %v3650, 112
  %v3683 = vpop.permute.xlu0 %3682
  %3684 = vrot.lane.b32.xlu0 %v3651, 112
  %v3685 = vpop.permute.xlu0 %3684
  %3686 = vrot.lane.b32.xlu0 %v3652, 112
  %v3687 = vpop.permute.xlu0 %3686
  %3688 = vrot.lane.b32.xlu0 %v3653, 112
  %v3689 = vpop.permute.xlu0 %3688
  %3690 = vrot.lane.b32.xlu0 %v3654, 112
  %v3691 = vpop.permute.xlu0 %3690
  %3692 = vrot.lane.b32.xlu0 %v3655, 112
  %v3693 = vpop.permute.xlu0 %3692
  %3694 = vrot.lane.b32.xlu0 %v3656, 112
  %v3695 = vpop.permute.xlu0 %3694
  %3696 = vrot.lane.b32.xlu0 %v3657, 112
  %v3697 = vpop.permute.xlu0 %3696
  %3698 = vrot.lane.b32.xlu0 %v3658, 112
  %v3699 = vpop.permute.xlu0 %3698
  %3700 = vrot.lane.b32.xlu0 %v3659, 112
  %v3701 = vpop.permute.xlu0 %3700
  %3702 = vrot.lane.b32.xlu0 %v3660, 112
  %v3703 = vpop.permute.xlu0 %3702
  %3704 = vrot.lane.b32.xlu0 %v3661, 112
  %v3705 = vpop.permute.xlu0 %3704
  %3706 = vrot.lane.b32.xlu0 %v3662, 112
  %v3707 = vpop.permute.xlu0 %3706
  %3708 = vrot.lane.b32.xlu0 %v3663, 112
  %v3709 = vpop.permute.xlu0 %3708
  %3710 = vrot.lane.b32.xlu0 %v3664, 112
  %v3711 = vpop.permute.xlu0 %3710
  %3712 = vrot.lane.b32.xlu0 %v3665, 112
  %v3713 = vpop.permute.xlu0 %3712
  %v3730 = vadd.f32 %v3618, %v3683
  %v3731 = vadd.f32 %v3619, %v3685
  %v3732 = vadd.f32 %v3620, %v3687
  %v3733 = vadd.f32 %v3621, %v3689
  %v3734 = vadd.f32 %v3622, %v3691
  %v3735 = vadd.f32 %v3623, %v3693
  %v3736 = vadd.f32 %v3624, %v3695
  %v3737 = vadd.f32 %v3625, %v3697
  %v3738 = vadd.f32 %v3626, %v3699
  %v3739 = vadd.f32 %v3627, %v3701
  %v3740 = vadd.f32 %v3628, %v3703
  %v3741 = vadd.f32 %v3629, %v3705
  %v3742 = vadd.f32 %v3630, %v3707
  %v3743 = vadd.f32 %v3631, %v3709
  %v3744 = vadd.f32 %v3632, %v3711
  %v3745 = vadd.f32 %v3633, %v3713
  %v3746 = vmul.f32 %v3395, %v3474
  %v3747 = vmul.f32 %v3397, %v3475
  %v3748 = vmul.f32 %v3399, %v3476
  %v3749 = vmul.f32 %v3401, %v3477
  %v3750 = vmul.f32 %v3403, %v3478
  %v3751 = vmul.f32 %v3405, %v3479
  %v3752 = vmul.f32 %v3407, %v3480
  %v3753 = vmul.f32 %v3409, %v3481
  %v3754 = vmul.f32 %v3411, %v3482
  %v3755 = vmul.f32 %v3413, %v3483
  %v3756 = vmul.f32 %v3415, %v3484
  %v3757 = vmul.f32 %v3417, %v3485
  %v3758 = vmul.f32 %v3419, %v3486
  %v3759 = vmul.f32 %v3421, %v3487
  %v3760 = vmul.f32 %v3423, %v3488
  %v3761 = vmul.f32 %v3425, %v3489
  %v3762 = vmul.f32 %v3746, %v147
  %v3763 = vmul.f32 %v3747, %v150
  %v3764 = vmul.f32 %v3748, %v155
  %v3765 = vmul.f32 %v3749, %v158
  %v3766 = vmul.f32 %v3750, %v163
  %v3767 = vmul.f32 %v3751, %v166
  %v3768 = vmul.f32 %v3752, %v171
  %v3769 = vmul.f32 %v3753, %v174
  %v3770 = vmul.f32 %v3754, %v179
  %v3771 = vmul.f32 %v3755, %v182
  %v3772 = vmul.f32 %v3756, %v187
  %v3773 = vmul.f32 %v3757, %v190
  %v3774 = vmul.f32 %v3758, %v195
  %v3775 = vmul.f32 %v3759, %v198
  %v3776 = vmul.f32 %v3760, %v203
  %v3777 = vmul.f32 %v3761, %v206
  %3794 = vrot.lane.b32.xlu0 %v3762, 104
  %v3795 = vpop.permute.xlu0 %3794
  %3796 = vrot.lane.b32.xlu0 %v3763, 104
  %v3797 = vpop.permute.xlu0 %3796
  %3798 = vrot.lane.b32.xlu0 %v3764, 104
  %v3799 = vpop.permute.xlu0 %3798
  %3800 = vrot.lane.b32.xlu0 %v3765, 104
  %v3801 = vpop.permute.xlu0 %3800
  %3802 = vrot.lane.b32.xlu0 %v3766, 104
  %v3803 = vpop.permute.xlu0 %3802
  %3804 = vrot.lane.b32.xlu0 %v3767, 104
  %v3805 = vpop.permute.xlu0 %3804
  %3806 = vrot.lane.b32.xlu0 %v3768, 104
  %v3807 = vpop.permute.xlu0 %3806
  %3808 = vrot.lane.b32.xlu0 %v3769, 104
  %v3809 = vpop.permute.xlu0 %3808
  %3810 = vrot.lane.b32.xlu0 %v3770, 104
  %v3811 = vpop.permute.xlu0 %3810
  %3812 = vrot.lane.b32.xlu0 %v3771, 104
  %v3813 = vpop.permute.xlu0 %3812
  %3814 = vrot.lane.b32.xlu0 %v3772, 104
  %v3815 = vpop.permute.xlu0 %3814
  %3816 = vrot.lane.b32.xlu0 %v3773, 104
  %v3817 = vpop.permute.xlu0 %3816
  %3818 = vrot.lane.b32.xlu0 %v3774, 104
  %v3819 = vpop.permute.xlu0 %3818
  %3820 = vrot.lane.b32.xlu0 %v3775, 104
  %v3821 = vpop.permute.xlu0 %3820
  %3822 = vrot.lane.b32.xlu0 %v3776, 104
  %v3823 = vpop.permute.xlu0 %3822
  %3824 = vrot.lane.b32.xlu0 %v3777, 104
  %v3825 = vpop.permute.xlu0 %3824
  %v3842 = vadd.f32 %v3730, %v3795
  %v3843 = vadd.f32 %v3731, %v3797
  %v3844 = vadd.f32 %v3732, %v3799
  %v3845 = vadd.f32 %v3733, %v3801
  %v3846 = vadd.f32 %v3734, %v3803
  %v3847 = vadd.f32 %v3735, %v3805
  %v3848 = vadd.f32 %v3736, %v3807
  %v3849 = vadd.f32 %v3737, %v3809
  %v3850 = vadd.f32 %v3738, %v3811
  %v3851 = vadd.f32 %v3739, %v3813
  %v3852 = vadd.f32 %v3740, %v3815
  %v3853 = vadd.f32 %v3741, %v3817
  %v3854 = vadd.f32 %v3742, %v3819
  %v3855 = vadd.f32 %v3743, %v3821
  %v3856 = vadd.f32 %v3744, %v3823
  %v3857 = vadd.f32 %v3745, %v3825
  %3858 = vrot.lane.b32.xlu0 %v147, 120
  %v3859 = vpop.permute.xlu0 %3858
  %3860 = vrot.lane.b32.xlu0 %v150, 120
  %v3861 = vpop.permute.xlu0 %3860
  %3862 = vrot.lane.b32.xlu0 %v155, 120
  %v3863 = vpop.permute.xlu0 %3862
  %3864 = vrot.lane.b32.xlu0 %v158, 120
  %v3865 = vpop.permute.xlu0 %3864
  %3866 = vrot.lane.b32.xlu0 %v163, 120
  %v3867 = vpop.permute.xlu0 %3866
  %3868 = vrot.lane.b32.xlu0 %v166, 120
  %v3869 = vpop.permute.xlu0 %3868
  %3870 = vrot.lane.b32.xlu0 %v171, 120
  %v3871 = vpop.permute.xlu0 %3870
  %3872 = vrot.lane.b32.xlu0 %v174, 120
  %v3873 = vpop.permute.xlu0 %3872
  %3874 = vrot.lane.b32.xlu0 %v179, 120
  %v3875 = vpop.permute.xlu0 %3874
  %3876 = vrot.lane.b32.xlu0 %v182, 120
  %v3877 = vpop.permute.xlu0 %3876
  %3878 = vrot.lane.b32.xlu0 %v187, 120
  %v3879 = vpop.permute.xlu0 %3878
  %3880 = vrot.lane.b32.xlu0 %v190, 120
  %v3881 = vpop.permute.xlu0 %3880
  %3882 = vrot.lane.b32.xlu0 %v195, 120
  %v3883 = vpop.permute.xlu0 %3882
  %3884 = vrot.lane.b32.xlu0 %v198, 120
  %v3885 = vpop.permute.xlu0 %3884
  %3886 = vrot.lane.b32.xlu0 %v203, 120
  %v3887 = vpop.permute.xlu0 %3886
  %3888 = vrot.lane.b32.xlu0 %v206, 120
  %v3889 = vpop.permute.xlu0 %3888
  %v3906 = vmul.f32 %v147, %v3859
  %v3907 = vmul.f32 %v150, %v3861
  %v3908 = vmul.f32 %v155, %v3863
  %v3909 = vmul.f32 %v158, %v3865
  %v3910 = vmul.f32 %v163, %v3867
  %v3911 = vmul.f32 %v166, %v3869
  %v3912 = vmul.f32 %v171, %v3871
  %v3913 = vmul.f32 %v174, %v3873
  %v3914 = vmul.f32 %v179, %v3875
  %v3915 = vmul.f32 %v182, %v3877
  %v3916 = vmul.f32 %v187, %v3879
  %v3917 = vmul.f32 %v190, %v3881
  %v3918 = vmul.f32 %v195, %v3883
  %v3919 = vmul.f32 %v198, %v3885
  %v3920 = vmul.f32 %v203, %v3887
  %v3921 = vmul.f32 %v206, %v3889
  %3938 = vrot.lane.b32.xlu0 %v3906, 104
  %v3939 = vpop.permute.xlu0 %3938
  %3940 = vrot.lane.b32.xlu0 %v3907, 104
  %v3941 = vpop.permute.xlu0 %3940
  %3942 = vrot.lane.b32.xlu0 %v3908, 104
  %v3943 = vpop.permute.xlu0 %3942
  %3944 = vrot.lane.b32.xlu0 %v3909, 104
  %v3945 = vpop.permute.xlu0 %3944
  %3946 = vrot.lane.b32.xlu0 %v3910, 104
  %v3947 = vpop.permute.xlu0 %3946
  %3948 = vrot.lane.b32.xlu0 %v3911, 104
  %v3949 = vpop.permute.xlu0 %3948
  %3950 = vrot.lane.b32.xlu0 %v3912, 104
  %v3951 = vpop.permute.xlu0 %3950
  %3952 = vrot.lane.b32.xlu0 %v3913, 104
  %v3953 = vpop.permute.xlu0 %3952
  %3954 = vrot.lane.b32.xlu0 %v3914, 104
  %v3955 = vpop.permute.xlu0 %3954
  %3956 = vrot.lane.b32.xlu0 %v3915, 104
  %v3957 = vpop.permute.xlu0 %3956
  %3958 = vrot.lane.b32.xlu0 %v3916, 104
  %v3959 = vpop.permute.xlu0 %3958
  %3960 = vrot.lane.b32.xlu0 %v3917, 104
  %v3961 = vpop.permute.xlu0 %3960
  %3962 = vrot.lane.b32.xlu0 %v3918, 104
  %v3963 = vpop.permute.xlu0 %3962
  %3964 = vrot.lane.b32.xlu0 %v3919, 104
  %v3965 = vpop.permute.xlu0 %3964
  %3966 = vrot.lane.b32.xlu0 %v3920, 104
  %v3967 = vpop.permute.xlu0 %3966
  %3968 = vrot.lane.b32.xlu0 %v3921, 104
  %v3969 = vpop.permute.xlu0 %3968
  %v3986 = vsel %vm289, %v3939, 0.0
  %3987 = vadd.xlane.f32.xlu0 %v3986
  %v3988 = vpop.xlane.xlu0 %3987
  %v3989 = vsel %vm289, %v3941, 0.0
  %3990 = vadd.xlane.f32.xlu0 %v3989
  %v3991 = vpop.xlane.xlu0 %3990
  %v3992 = vsel %vm289, %v3943, 0.0
  %3993 = vadd.xlane.f32.xlu0 %v3992
  %v3994 = vpop.xlane.xlu0 %3993
  %v3995 = vsel %vm289, %v3945, 0.0
  %3996 = vadd.xlane.f32.xlu0 %v3995
  %v3997 = vpop.xlane.xlu0 %3996
  %v3998 = vsel %vm289, %v3947, 0.0
  %3999 = vadd.xlane.f32.xlu0 %v3998
  %v4000 = vpop.xlane.xlu0 %3999
  %v4001 = vsel %vm289, %v3949, 0.0
  %4002 = vadd.xlane.f32.xlu0 %v4001
  %v4003 = vpop.xlane.xlu0 %4002
  %v4004 = vsel %vm289, %v3951, 0.0
  %4005 = vadd.xlane.f32.xlu0 %v4004
  %v4006 = vpop.xlane.xlu0 %4005
  %v4007 = vsel %vm289, %v3953, 0.0
  %4008 = vadd.xlane.f32.xlu0 %v4007
  %v4009 = vpop.xlane.xlu0 %4008
  %v4010 = vsel %vm289, %v3955, 0.0
  %4011 = vadd.xlane.f32.xlu0 %v4010
  %v4012 = vpop.xlane.xlu0 %4011
  %v4013 = vsel %vm289, %v3957, 0.0
  %4014 = vadd.xlane.f32.xlu0 %v4013
  %v4015 = vpop.xlane.xlu0 %4014
  %v4016 = vsel %vm289, %v3959, 0.0
  %4017 = vadd.xlane.f32.xlu0 %v4016
  %v4018 = vpop.xlane.xlu0 %4017
  %v4019 = vsel %vm289, %v3961, 0.0
  %4020 = vadd.xlane.f32.xlu0 %v4019
  %v4021 = vpop.xlane.xlu0 %4020
  %v4022 = vsel %vm289, %v3963, 0.0
  %4023 = vadd.xlane.f32.xlu0 %v4022
  %v4024 = vpop.xlane.xlu0 %4023
  %v4025 = vsel %vm289, %v3965, 0.0
  %4026 = vadd.xlane.f32.xlu0 %v4025
  %v4027 = vpop.xlane.xlu0 %4026
  %v4028 = vsel %vm289, %v3967, 0.0
  %4029 = vadd.xlane.f32.xlu0 %v4028
  %v4030 = vpop.xlane.xlu0 %4029
  %v4031 = vsel %vm289, %v3969, 0.0
  %4032 = vadd.xlane.f32.xlu0 %v4031
  %v4033 = vpop.xlane.xlu0 %4032
  %v4034 = vmul.f32 %v3988, 0.0625
  %v4035 = vmul.f32 %v3991, 0.0625
  %v4036 = vmul.f32 %v3994, 0.0625
  %v4037 = vmul.f32 %v3997, 0.0625
  %v4038 = vmul.f32 %v4000, 0.0625
  %v4039 = vmul.f32 %v4003, 0.0625
  %v4040 = vmul.f32 %v4006, 0.0625
  %v4041 = vmul.f32 %v4009, 0.0625
  %v4042 = vmul.f32 %v4012, 0.0625
  %v4043 = vmul.f32 %v4015, 0.0625
  %v4044 = vmul.f32 %v4018, 0.0625
  %v4045 = vmul.f32 %v4021, 0.0625
  %v4046 = vmul.f32 %v4024, 0.0625
  %v4047 = vmul.f32 %v4027, 0.0625
  %v4048 = vmul.f32 %v4030, 0.0625
  %v4049 = vmul.f32 %v4033, 0.0625
  %4050 = vrot.lane.b32.xlu0 %v2706, 104
  %v4051 = vpop.permute.xlu0 %4050
  %4052 = vrot.lane.b32.xlu0 %v2707, 104
  %v4053 = vpop.permute.xlu0 %4052
  %4054 = vrot.lane.b32.xlu0 %v2708, 104
  %v4055 = vpop.permute.xlu0 %4054
  %4056 = vrot.lane.b32.xlu0 %v2709, 104
  %v4057 = vpop.permute.xlu0 %4056
  %4058 = vrot.lane.b32.xlu0 %v2710, 104
  %v4059 = vpop.permute.xlu0 %4058
  %4060 = vrot.lane.b32.xlu0 %v2711, 104
  %v4061 = vpop.permute.xlu0 %4060
  %4062 = vrot.lane.b32.xlu0 %v2712, 104
  %v4063 = vpop.permute.xlu0 %4062
  %4064 = vrot.lane.b32.xlu0 %v2713, 104
  %v4065 = vpop.permute.xlu0 %4064
  %4066 = vrot.lane.b32.xlu0 %v2714, 104
  %v4067 = vpop.permute.xlu0 %4066
  %4068 = vrot.lane.b32.xlu0 %v2715, 104
  %v4069 = vpop.permute.xlu0 %4068
  %4070 = vrot.lane.b32.xlu0 %v2716, 104
  %v4071 = vpop.permute.xlu0 %4070
  %4072 = vrot.lane.b32.xlu0 %v2717, 104
  %v4073 = vpop.permute.xlu0 %4072
  %4074 = vrot.lane.b32.xlu0 %v2718, 104
  %v4075 = vpop.permute.xlu0 %4074
  %4076 = vrot.lane.b32.xlu0 %v2719, 104
  %v4077 = vpop.permute.xlu0 %4076
  %4078 = vrot.lane.b32.xlu0 %v2720, 104
  %v4079 = vpop.permute.xlu0 %4078
  %4080 = vrot.lane.b32.xlu0 %v2721, 104
  %v4081 = vpop.permute.xlu0 %4080
  %v4098 = vsel %vm289, %v4051, 0.0
  %4099 = vadd.xlane.f32.xlu0 %v4098
  %v4100 = vpop.xlane.xlu0 %4099
  %v4101 = vsel %vm289, %v4053, 0.0
  %4102 = vadd.xlane.f32.xlu0 %v4101
  %v4103 = vpop.xlane.xlu0 %4102
  %v4104 = vsel %vm289, %v4055, 0.0
  %4105 = vadd.xlane.f32.xlu0 %v4104
  %v4106 = vpop.xlane.xlu0 %4105
  %v4107 = vsel %vm289, %v4057, 0.0
  %4108 = vadd.xlane.f32.xlu0 %v4107
  %v4109 = vpop.xlane.xlu0 %4108
  %v4110 = vsel %vm289, %v4059, 0.0
  %4111 = vadd.xlane.f32.xlu0 %v4110
  %v4112 = vpop.xlane.xlu0 %4111
  %v4113 = vsel %vm289, %v4061, 0.0
  %4114 = vadd.xlane.f32.xlu0 %v4113
  %v4115 = vpop.xlane.xlu0 %4114
  %v4116 = vsel %vm289, %v4063, 0.0
  %4117 = vadd.xlane.f32.xlu0 %v4116
  %v4118 = vpop.xlane.xlu0 %4117
  %v4119 = vsel %vm289, %v4065, 0.0
  %4120 = vadd.xlane.f32.xlu0 %v4119
  %v4121 = vpop.xlane.xlu0 %4120
  %v4122 = vsel %vm289, %v4067, 0.0
  %4123 = vadd.xlane.f32.xlu0 %v4122
  %v4124 = vpop.xlane.xlu0 %4123
  %v4125 = vsel %vm289, %v4069, 0.0
  %4126 = vadd.xlane.f32.xlu0 %v4125
  %v4127 = vpop.xlane.xlu0 %4126
  %v4128 = vsel %vm289, %v4071, 0.0
  %4129 = vadd.xlane.f32.xlu0 %v4128
  %v4130 = vpop.xlane.xlu0 %4129
  %v4131 = vsel %vm289, %v4073, 0.0
  %4132 = vadd.xlane.f32.xlu0 %v4131
  %v4133 = vpop.xlane.xlu0 %4132
  %v4134 = vsel %vm289, %v4075, 0.0
  %4135 = vadd.xlane.f32.xlu0 %v4134
  %v4136 = vpop.xlane.xlu0 %4135
  %v4137 = vsel %vm289, %v4077, 0.0
  %4138 = vadd.xlane.f32.xlu0 %v4137
  %v4139 = vpop.xlane.xlu0 %4138
  %v4140 = vsel %vm289, %v4079, 0.0
  %4141 = vadd.xlane.f32.xlu0 %v4140
  %v4142 = vpop.xlane.xlu0 %4141
  %v4143 = vsel %vm289, %v4081, 0.0
  %4144 = vadd.xlane.f32.xlu0 %v4143
  %v4145 = vpop.xlane.xlu0 %4144
  %v4146 = vmul.f32 %v4100, 0.0625
  %v4147 = vmul.f32 %v4103, 0.0625
  %v4148 = vmul.f32 %v4106, 0.0625
  %v4149 = vmul.f32 %v4109, 0.0625
  %v4150 = vmul.f32 %v4112, 0.0625
  %v4151 = vmul.f32 %v4115, 0.0625
  %v4152 = vmul.f32 %v4118, 0.0625
  %v4153 = vmul.f32 %v4121, 0.0625
  %v4154 = vmul.f32 %v4124, 0.0625
  %v4155 = vmul.f32 %v4127, 0.0625
  %v4156 = vmul.f32 %v4130, 0.0625
  %v4157 = vmul.f32 %v4133, 0.0625
  %v4158 = vmul.f32 %v4136, 0.0625
  %v4159 = vmul.f32 %v4139, 0.0625
  %v4160 = vmul.f32 %v4142, 0.0625
  %v4161 = vmul.f32 %v4145, 0.0625
  %4162 = vrot.lane.b32.xlu0 %v1458, 104
  %v4163 = vpop.permute.xlu0 %4162
  %4164 = vrot.lane.b32.xlu0 %v1459, 104
  %v4165 = vpop.permute.xlu0 %4164
  %4166 = vrot.lane.b32.xlu0 %v1460, 104
  %v4167 = vpop.permute.xlu0 %4166
  %4168 = vrot.lane.b32.xlu0 %v1461, 104
  %v4169 = vpop.permute.xlu0 %4168
  %4170 = vrot.lane.b32.xlu0 %v1462, 104
  %v4171 = vpop.permute.xlu0 %4170
  %4172 = vrot.lane.b32.xlu0 %v1463, 104
  %v4173 = vpop.permute.xlu0 %4172
  %4174 = vrot.lane.b32.xlu0 %v1464, 104
  %v4175 = vpop.permute.xlu0 %4174
  %4176 = vrot.lane.b32.xlu0 %v1465, 104
  %v4177 = vpop.permute.xlu0 %4176
  %4178 = vrot.lane.b32.xlu0 %v1466, 104
  %v4179 = vpop.permute.xlu0 %4178
  %4180 = vrot.lane.b32.xlu0 %v1467, 104
  %v4181 = vpop.permute.xlu0 %4180
  %4182 = vrot.lane.b32.xlu0 %v1468, 104
  %v4183 = vpop.permute.xlu0 %4182
  %4184 = vrot.lane.b32.xlu0 %v1469, 104
  %v4185 = vpop.permute.xlu0 %4184
  %4186 = vrot.lane.b32.xlu0 %v1470, 104
  %v4187 = vpop.permute.xlu0 %4186
  %4188 = vrot.lane.b32.xlu0 %v1471, 104
  %v4189 = vpop.permute.xlu0 %4188
  %4190 = vrot.lane.b32.xlu0 %v1472, 104
  %v4191 = vpop.permute.xlu0 %4190
  %4192 = vrot.lane.b32.xlu0 %v1473, 104
  %v4193 = vpop.permute.xlu0 %4192
  %v4210 = vsel %vm289, %v4163, 0.0
  %4211 = vadd.xlane.f32.xlu0 %v4210
  %v4212 = vpop.xlane.xlu0 %4211
  %v4213 = vsel %vm289, %v4165, 0.0
  %4214 = vadd.xlane.f32.xlu0 %v4213
  %v4215 = vpop.xlane.xlu0 %4214
  %v4216 = vsel %vm289, %v4167, 0.0
  %4217 = vadd.xlane.f32.xlu0 %v4216
  %v4218 = vpop.xlane.xlu0 %4217
  %v4219 = vsel %vm289, %v4169, 0.0
  %4220 = vadd.xlane.f32.xlu0 %v4219
  %v4221 = vpop.xlane.xlu0 %4220
  %v4222 = vsel %vm289, %v4171, 0.0
  %4223 = vadd.xlane.f32.xlu0 %v4222
  %v4224 = vpop.xlane.xlu0 %4223
  %v4225 = vsel %vm289, %v4173, 0.0
  %4226 = vadd.xlane.f32.xlu0 %v4225
  %v4227 = vpop.xlane.xlu0 %4226
  %v4228 = vsel %vm289, %v4175, 0.0
  %4229 = vadd.xlane.f32.xlu0 %v4228
  %v4230 = vpop.xlane.xlu0 %4229
  %v4231 = vsel %vm289, %v4177, 0.0
  %4232 = vadd.xlane.f32.xlu0 %v4231
  %v4233 = vpop.xlane.xlu0 %4232
  %v4234 = vsel %vm289, %v4179, 0.0
  %4235 = vadd.xlane.f32.xlu0 %v4234
  %v4236 = vpop.xlane.xlu0 %4235
  %v4237 = vsel %vm289, %v4181, 0.0
  %4238 = vadd.xlane.f32.xlu0 %v4237
  %v4239 = vpop.xlane.xlu0 %4238
  %v4240 = vsel %vm289, %v4183, 0.0
  %4241 = vadd.xlane.f32.xlu0 %v4240
  %v4242 = vpop.xlane.xlu0 %4241
  %v4243 = vsel %vm289, %v4185, 0.0
  %4244 = vadd.xlane.f32.xlu0 %v4243
  %v4245 = vpop.xlane.xlu0 %4244
  %v4246 = vsel %vm289, %v4187, 0.0
  %4247 = vadd.xlane.f32.xlu0 %v4246
  %v4248 = vpop.xlane.xlu0 %4247
  %v4249 = vsel %vm289, %v4189, 0.0
  %4250 = vadd.xlane.f32.xlu0 %v4249
  %v4251 = vpop.xlane.xlu0 %4250
  %v4252 = vsel %vm289, %v4191, 0.0
  %4253 = vadd.xlane.f32.xlu0 %v4252
  %v4254 = vpop.xlane.xlu0 %4253
  %v4255 = vsel %vm289, %v4193, 0.0
  %4256 = vadd.xlane.f32.xlu0 %v4255
  %v4257 = vpop.xlane.xlu0 %4256
  %v4258 = vmul.f32 %v4212, 0.0625
  %v4259 = vmul.f32 %v4215, 0.0625
  %v4260 = vmul.f32 %v4218, 0.0625
  %v4261 = vmul.f32 %v4221, 0.0625
  %v4262 = vmul.f32 %v4224, 0.0625
  %v4263 = vmul.f32 %v4227, 0.0625
  %v4264 = vmul.f32 %v4230, 0.0625
  %v4265 = vmul.f32 %v4233, 0.0625
  %v4266 = vmul.f32 %v4236, 0.0625
  %v4267 = vmul.f32 %v4239, 0.0625
  %v4268 = vmul.f32 %v4242, 0.0625
  %v4269 = vmul.f32 %v4245, 0.0625
  %v4270 = vmul.f32 %v4248, 0.0625
  %v4271 = vmul.f32 %v4251, 0.0625
  %v4272 = vmul.f32 %v4254, 0.0625
  %v4273 = vmul.f32 %v4257, 0.0625
  %4274 = vrot.lane.b32.xlu0 %v273, 104
  %v4275 = vpop.permute.xlu0 %4274
  %4276 = vrot.lane.b32.xlu0 %v274, 104
  %v4277 = vpop.permute.xlu0 %4276
  %4278 = vrot.lane.b32.xlu0 %v275, 104
  %v4279 = vpop.permute.xlu0 %4278
  %4280 = vrot.lane.b32.xlu0 %v276, 104
  %v4281 = vpop.permute.xlu0 %4280
  %4282 = vrot.lane.b32.xlu0 %v277, 104
  %v4283 = vpop.permute.xlu0 %4282
  %4284 = vrot.lane.b32.xlu0 %v278, 104
  %v4285 = vpop.permute.xlu0 %4284
  %4286 = vrot.lane.b32.xlu0 %v279, 104
  %v4287 = vpop.permute.xlu0 %4286
  %4288 = vrot.lane.b32.xlu0 %v280, 104
  %v4289 = vpop.permute.xlu0 %4288
  %4290 = vrot.lane.b32.xlu0 %v281, 104
  %v4291 = vpop.permute.xlu0 %4290
  %4292 = vrot.lane.b32.xlu0 %v282, 104
  %v4293 = vpop.permute.xlu0 %4292
  %4294 = vrot.lane.b32.xlu0 %v283, 104
  %v4295 = vpop.permute.xlu0 %4294
  %4296 = vrot.lane.b32.xlu0 %v284, 104
  %v4297 = vpop.permute.xlu0 %4296
  %4298 = vrot.lane.b32.xlu0 %v285, 104
  %v4299 = vpop.permute.xlu0 %4298
  %4300 = vrot.lane.b32.xlu0 %v286, 104
  %v4301 = vpop.permute.xlu0 %4300
  %4302 = vrot.lane.b32.xlu0 %v287, 104
  %v4303 = vpop.permute.xlu0 %4302
  %4304 = vrot.lane.b32.xlu0 %v288, 104
  %v4305 = vpop.permute.xlu0 %4304
  %v4322 = vsel %vm289, %v4275, 0.0
  %4323 = vadd.xlane.f32.xlu0 %v4322
  %v4324 = vpop.xlane.xlu0 %4323
  %v4325 = vsel %vm289, %v4277, 0.0
  %4326 = vadd.xlane.f32.xlu0 %v4325
  %v4327 = vpop.xlane.xlu0 %4326
  %v4328 = vsel %vm289, %v4279, 0.0
  %4329 = vadd.xlane.f32.xlu0 %v4328
  %v4330 = vpop.xlane.xlu0 %4329
  %v4331 = vsel %vm289, %v4281, 0.0
  %4332 = vadd.xlane.f32.xlu0 %v4331
  %v4333 = vpop.xlane.xlu0 %4332
  %v4334 = vsel %vm289, %v4283, 0.0
  %4335 = vadd.xlane.f32.xlu0 %v4334
  %v4336 = vpop.xlane.xlu0 %4335
  %v4337 = vsel %vm289, %v4285, 0.0
  %4338 = vadd.xlane.f32.xlu0 %v4337
  %v4339 = vpop.xlane.xlu0 %4338
  %v4340 = vsel %vm289, %v4287, 0.0
  %4341 = vadd.xlane.f32.xlu0 %v4340
  %v4342 = vpop.xlane.xlu0 %4341
  %v4343 = vsel %vm289, %v4289, 0.0
  %4344 = vadd.xlane.f32.xlu0 %v4343
  %v4345 = vpop.xlane.xlu0 %4344
  %v4346 = vsel %vm289, %v4291, 0.0
  %4347 = vadd.xlane.f32.xlu0 %v4346
  %v4348 = vpop.xlane.xlu0 %4347
  %v4349 = vsel %vm289, %v4293, 0.0
  %4350 = vadd.xlane.f32.xlu0 %v4349
  %v4351 = vpop.xlane.xlu0 %4350
  %v4352 = vsel %vm289, %v4295, 0.0
  %4353 = vadd.xlane.f32.xlu0 %v4352
  %v4354 = vpop.xlane.xlu0 %4353
  %v4355 = vsel %vm289, %v4297, 0.0
  %4356 = vadd.xlane.f32.xlu0 %v4355
  %v4357 = vpop.xlane.xlu0 %4356
  %v4358 = vsel %vm289, %v4299, 0.0
  %4359 = vadd.xlane.f32.xlu0 %v4358
  %v4360 = vpop.xlane.xlu0 %4359
  %v4361 = vsel %vm289, %v4301, 0.0
  %4362 = vadd.xlane.f32.xlu0 %v4361
  %v4363 = vpop.xlane.xlu0 %4362
  %v4364 = vsel %vm289, %v4303, 0.0
  %4365 = vadd.xlane.f32.xlu0 %v4364
  %v4366 = vpop.xlane.xlu0 %4365
  %v4367 = vsel %vm289, %v4305, 0.0
  %4368 = vadd.xlane.f32.xlu0 %v4367
  %v4369 = vpop.xlane.xlu0 %4368
  %v4370 = vmul.f32 %v4324, 0.0625
  %v4371 = vmul.f32 %v4327, 0.0625
  %v4372 = vmul.f32 %v4330, 0.0625
  %v4373 = vmul.f32 %v4333, 0.0625
  %v4374 = vmul.f32 %v4336, 0.0625
  %v4375 = vmul.f32 %v4339, 0.0625
  %v4376 = vmul.f32 %v4342, 0.0625
  %v4377 = vmul.f32 %v4345, 0.0625
  %v4378 = vmul.f32 %v4348, 0.0625
  %v4379 = vmul.f32 %v4351, 0.0625
  %v4380 = vmul.f32 %v4354, 0.0625
  %v4381 = vmul.f32 %v4357, 0.0625
  %v4382 = vmul.f32 %v4360, 0.0625
  %v4383 = vmul.f32 %v4363, 0.0625
  %v4384 = vmul.f32 %v4366, 0.0625
  %v4385 = vmul.f32 %v4369, 0.0625
  %v4386 = vmax.f32 %v4034, %v4146
  %v4387 = vmax.f32 %v4035, %v4147
  %v4388 = vmax.f32 %v4036, %v4148
  %v4389 = vmax.f32 %v4037, %v4149
  %v4390 = vmax.f32 %v4038, %v4150
  %v4391 = vmax.f32 %v4039, %v4151
  %v4392 = vmax.f32 %v4040, %v4152
  %v4393 = vmax.f32 %v4041, %v4153
  %v4394 = vmax.f32 %v4042, %v4154
  %v4395 = vmax.f32 %v4043, %v4155
  %v4396 = vmax.f32 %v4044, %v4156
  %v4397 = vmax.f32 %v4045, %v4157
  %v4398 = vmax.f32 %v4046, %v4158
  %v4399 = vmax.f32 %v4047, %v4159
  %v4400 = vmax.f32 %v4048, %v4160
  %v4401 = vmax.f32 %v4049, %v4161
  %v4402 = vmax.f32 %v4386, %v4258
  %v4403 = vmax.f32 %v4387, %v4259
  %v4404 = vmax.f32 %v4388, %v4260
  %v4405 = vmax.f32 %v4389, %v4261
  %v4406 = vmax.f32 %v4390, %v4262
  %v4407 = vmax.f32 %v4391, %v4263
  %v4408 = vmax.f32 %v4392, %v4264
  %v4409 = vmax.f32 %v4393, %v4265
  %v4410 = vmax.f32 %v4394, %v4266
  %v4411 = vmax.f32 %v4395, %v4267
  %v4412 = vmax.f32 %v4396, %v4268
  %v4413 = vmax.f32 %v4397, %v4269
  %v4414 = vmax.f32 %v4398, %v4270
  %v4415 = vmax.f32 %v4399, %v4271
  %v4416 = vmax.f32 %v4400, %v4272
  %v4417 = vmax.f32 %v4401, %v4273
  %v4418 = vmax.f32 %v4402, %v4370
  %v4419 = vmax.f32 %v4403, %v4371
  %v4420 = vmax.f32 %v4404, %v4372
  %v4421 = vmax.f32 %v4405, %v4373
  %v4422 = vmax.f32 %v4406, %v4374
  %v4423 = vmax.f32 %v4407, %v4375
  %v4424 = vmax.f32 %v4408, %v4376
  %v4425 = vmax.f32 %v4409, %v4377
  %v4426 = vmax.f32 %v4410, %v4378
  %v4427 = vmax.f32 %v4411, %v4379
  %v4428 = vmax.f32 %v4412, %v4380
  %v4429 = vmax.f32 %v4413, %v4381
  %v4430 = vmax.f32 %v4414, %v4382
  %v4431 = vmax.f32 %v4415, %v4383
  %v4432 = vmax.f32 %v4416, %v4384
  %v4433 = vmax.f32 %v4417, %v4385
  %v4434 = vsub.f32 %v4034, %v4418
  %v4435 = vsub.f32 %v4035, %v4419
  %v4436 = vsub.f32 %v4036, %v4420
  %v4437 = vsub.f32 %v4037, %v4421
  %v4438 = vsub.f32 %v4038, %v4422
  %v4439 = vsub.f32 %v4039, %v4423
  %v4440 = vsub.f32 %v4040, %v4424
  %v4441 = vsub.f32 %v4041, %v4425
  %v4442 = vsub.f32 %v4042, %v4426
  %v4443 = vsub.f32 %v4043, %v4427
  %v4444 = vsub.f32 %v4044, %v4428
  %v4445 = vsub.f32 %v4045, %v4429
  %v4446 = vsub.f32 %v4046, %v4430
  %v4447 = vsub.f32 %v4047, %v4431
  %v4448 = vsub.f32 %v4048, %v4432
  %v4449 = vsub.f32 %v4049, %v4433
  %v4450 = vmul.f32 %v4434, 1.442695
  %v4451 = vpow.pop %v4450
  %v4452 = vmul.f32 %v4435, 1.442695
  %v4453 = vpow.pop %v4452
  %v4454 = vmul.f32 %v4436, 1.442695
  %v4455 = vpow.pop %v4454
  %v4456 = vmul.f32 %v4437, 1.442695
  %v4457 = vpow.pop %v4456
  %v4458 = vmul.f32 %v4438, 1.442695
  %v4459 = vpow.pop %v4458
  %v4460 = vmul.f32 %v4439, 1.442695
  %v4461 = vpow.pop %v4460
  %v4462 = vmul.f32 %v4440, 1.442695
  %v4463 = vpow.pop %v4462
  %v4464 = vmul.f32 %v4441, 1.442695
  %v4465 = vpow.pop %v4464
  %v4466 = vmul.f32 %v4442, 1.442695
  %v4467 = vpow.pop %v4466
  %v4468 = vmul.f32 %v4443, 1.442695
  %v4469 = vpow.pop %v4468
  %v4470 = vmul.f32 %v4444, 1.442695
  %v4471 = vpow.pop %v4470
  %v4472 = vmul.f32 %v4445, 1.442695
  %v4473 = vpow.pop %v4472
  %v4474 = vmul.f32 %v4446, 1.442695
  %v4475 = vpow.pop %v4474
  %v4476 = vmul.f32 %v4447, 1.442695
  %v4477 = vpow.pop %v4476
  %v4478 = vmul.f32 %v4448, 1.442695
  %v4479 = vpow.pop %v4478
  %v4480 = vmul.f32 %v4449, 1.442695
  %v4481 = vpow.pop %v4480
  %v4482 = vsub.f32 %v4146, %v4418
  %v4483 = vsub.f32 %v4147, %v4419
  %v4484 = vsub.f32 %v4148, %v4420
  %v4485 = vsub.f32 %v4149, %v4421
  %v4486 = vsub.f32 %v4150, %v4422
  %v4487 = vsub.f32 %v4151, %v4423
  %v4488 = vsub.f32 %v4152, %v4424
  %v4489 = vsub.f32 %v4153, %v4425
  %v4490 = vsub.f32 %v4154, %v4426
  %v4491 = vsub.f32 %v4155, %v4427
  %v4492 = vsub.f32 %v4156, %v4428
  %v4493 = vsub.f32 %v4157, %v4429
  %v4494 = vsub.f32 %v4158, %v4430
  %v4495 = vsub.f32 %v4159, %v4431
  %v4496 = vsub.f32 %v4160, %v4432
  %v4497 = vsub.f32 %v4161, %v4433
  %v4498 = vmul.f32 %v4482, 1.442695
  %v4499 = vpow.pop %v4498
  %v4500 = vmul.f32 %v4483, 1.442695
  %v4501 = vpow.pop %v4500
  %v4502 = vmul.f32 %v4484, 1.442695
  %v4503 = vpow.pop %v4502
  %v4504 = vmul.f32 %v4485, 1.442695
  %v4505 = vpow.pop %v4504
  %v4506 = vmul.f32 %v4486, 1.442695
  %v4507 = vpow.pop %v4506
  %v4508 = vmul.f32 %v4487, 1.442695
  %v4509 = vpow.pop %v4508
  %v4510 = vmul.f32 %v4488, 1.442695
  %v4511 = vpow.pop %v4510
  %v4512 = vmul.f32 %v4489, 1.442695
  %v4513 = vpow.pop %v4512
  %v4514 = vmul.f32 %v4490, 1.442695
  %v4515 = vpow.pop %v4514
  %v4516 = vmul.f32 %v4491, 1.442695
  %v4517 = vpow.pop %v4516
  %v4518 = vmul.f32 %v4492, 1.442695
  %v4519 = vpow.pop %v4518
  %v4520 = vmul.f32 %v4493, 1.442695
  %v4521 = vpow.pop %v4520
  %v4522 = vmul.f32 %v4494, 1.442695
  %v4523 = vpow.pop %v4522
  %v4524 = vmul.f32 %v4495, 1.442695
  %v4525 = vpow.pop %v4524
  %v4526 = vmul.f32 %v4496, 1.442695
  %v4527 = vpow.pop %v4526
  %v4528 = vmul.f32 %v4497, 1.442695
  %v4529 = vpow.pop %v4528
  %v4530 = vsub.f32 %v4258, %v4418
  %v4531 = vsub.f32 %v4259, %v4419
  %v4532 = vsub.f32 %v4260, %v4420
  %v4533 = vsub.f32 %v4261, %v4421
  %v4534 = vsub.f32 %v4262, %v4422
  %v4535 = vsub.f32 %v4263, %v4423
  %v4536 = vsub.f32 %v4264, %v4424
  %v4537 = vsub.f32 %v4265, %v4425
  %v4538 = vsub.f32 %v4266, %v4426
  %v4539 = vsub.f32 %v4267, %v4427
  %v4540 = vsub.f32 %v4268, %v4428
  %v4541 = vsub.f32 %v4269, %v4429
  %v4542 = vsub.f32 %v4270, %v4430
  %v4543 = vsub.f32 %v4271, %v4431
  %v4544 = vsub.f32 %v4272, %v4432
  %v4545 = vsub.f32 %v4273, %v4433
  %v4546 = vmul.f32 %v4530, 1.442695
  %v4547 = vpow.pop %v4546
  %v4548 = vmul.f32 %v4531, 1.442695
  %v4549 = vpow.pop %v4548
  %v4550 = vmul.f32 %v4532, 1.442695
  %v4551 = vpow.pop %v4550
  %v4552 = vmul.f32 %v4533, 1.442695
  %v4553 = vpow.pop %v4552
  %v4554 = vmul.f32 %v4534, 1.442695
  %v4555 = vpow.pop %v4554
  %v4556 = vmul.f32 %v4535, 1.442695
  %v4557 = vpow.pop %v4556
  %v4558 = vmul.f32 %v4536, 1.442695
  %v4559 = vpow.pop %v4558
  %v4560 = vmul.f32 %v4537, 1.442695
  %v4561 = vpow.pop %v4560
  %v4562 = vmul.f32 %v4538, 1.442695
  %v4563 = vpow.pop %v4562
  %v4564 = vmul.f32 %v4539, 1.442695
  %v4565 = vpow.pop %v4564
  %v4566 = vmul.f32 %v4540, 1.442695
  %v4567 = vpow.pop %v4566
  %v4568 = vmul.f32 %v4541, 1.442695
  %v4569 = vpow.pop %v4568
  %v4570 = vmul.f32 %v4542, 1.442695
  %v4571 = vpow.pop %v4570
  %v4572 = vmul.f32 %v4543, 1.442695
  %v4573 = vpow.pop %v4572
  %v4574 = vmul.f32 %v4544, 1.442695
  %v4575 = vpow.pop %v4574
  %v4576 = vmul.f32 %v4545, 1.442695
  %v4577 = vpow.pop %v4576
  %v4578 = vsub.f32 %v4370, %v4418
  %v4579 = vsub.f32 %v4371, %v4419
  %v4580 = vsub.f32 %v4372, %v4420
  %v4581 = vsub.f32 %v4373, %v4421
  %v4582 = vsub.f32 %v4374, %v4422
  %v4583 = vsub.f32 %v4375, %v4423
  %v4584 = vsub.f32 %v4376, %v4424
  %v4585 = vsub.f32 %v4377, %v4425
  %v4586 = vsub.f32 %v4378, %v4426
  %v4587 = vsub.f32 %v4379, %v4427
  %v4588 = vsub.f32 %v4380, %v4428
  %v4589 = vsub.f32 %v4381, %v4429
  %v4590 = vsub.f32 %v4382, %v4430
  %v4591 = vsub.f32 %v4383, %v4431
  %v4592 = vsub.f32 %v4384, %v4432
  %v4593 = vsub.f32 %v4385, %v4433
  %v4594 = vmul.f32 %v4578, 1.442695
  %v4595 = vpow.pop %v4594
  %v4596 = vmul.f32 %v4579, 1.442695
  %v4597 = vpow.pop %v4596
  %v4598 = vmul.f32 %v4580, 1.442695
  %v4599 = vpow.pop %v4598
  %v4600 = vmul.f32 %v4581, 1.442695
  %v4601 = vpow.pop %v4600
  %v4602 = vmul.f32 %v4582, 1.442695
  %v4603 = vpow.pop %v4602
  %v4604 = vmul.f32 %v4583, 1.442695
  %v4605 = vpow.pop %v4604
  %v4606 = vmul.f32 %v4584, 1.442695
  %v4607 = vpow.pop %v4606
  %v4608 = vmul.f32 %v4585, 1.442695
  %v4609 = vpow.pop %v4608
  %v4610 = vmul.f32 %v4586, 1.442695
  %v4611 = vpow.pop %v4610
  %v4612 = vmul.f32 %v4587, 1.442695
  %v4613 = vpow.pop %v4612
  %v4614 = vmul.f32 %v4588, 1.442695
  %v4615 = vpow.pop %v4614
  %v4616 = vmul.f32 %v4589, 1.442695
  %v4617 = vpow.pop %v4616
  %v4618 = vmul.f32 %v4590, 1.442695
  %v4619 = vpow.pop %v4618
  %v4620 = vmul.f32 %v4591, 1.442695
  %v4621 = vpow.pop %v4620
  %v4622 = vmul.f32 %v4592, 1.442695
  %v4623 = vpow.pop %v4622
  %v4624 = vmul.f32 %v4593, 1.442695
  %v4625 = vpow.pop %v4624
  %v4626 = vadd.f32 %v4451, %v4499
  %v4627 = vadd.f32 %v4453, %v4501
  %v4628 = vadd.f32 %v4455, %v4503
  %v4629 = vadd.f32 %v4457, %v4505
  %v4630 = vadd.f32 %v4459, %v4507
  %v4631 = vadd.f32 %v4461, %v4509
  %v4632 = vadd.f32 %v4463, %v4511
  %v4633 = vadd.f32 %v4465, %v4513
  %v4634 = vadd.f32 %v4467, %v4515
  %v4635 = vadd.f32 %v4469, %v4517
  %v4636 = vadd.f32 %v4471, %v4519
  %v4637 = vadd.f32 %v4473, %v4521
  %v4638 = vadd.f32 %v4475, %v4523
  %v4639 = vadd.f32 %v4477, %v4525
  %v4640 = vadd.f32 %v4479, %v4527
  %v4641 = vadd.f32 %v4481, %v4529
  %v4642 = vadd.f32 %v4626, %v4547
  %v4643 = vadd.f32 %v4627, %v4549
  %v4644 = vadd.f32 %v4628, %v4551
  %v4645 = vadd.f32 %v4629, %v4553
  %v4646 = vadd.f32 %v4630, %v4555
  %v4647 = vadd.f32 %v4631, %v4557
  %v4648 = vadd.f32 %v4632, %v4559
  %v4649 = vadd.f32 %v4633, %v4561
  %v4650 = vadd.f32 %v4634, %v4563
  %v4651 = vadd.f32 %v4635, %v4565
  %v4652 = vadd.f32 %v4636, %v4567
  %v4653 = vadd.f32 %v4637, %v4569
  %v4654 = vadd.f32 %v4638, %v4571
  %v4655 = vadd.f32 %v4639, %v4573
  %v4656 = vadd.f32 %v4640, %v4575
  %v4657 = vadd.f32 %v4641, %v4577
  %v4658 = vadd.f32 %v4642, %v4595
  %v4659 = vadd.f32 %v4643, %v4597
  %v4660 = vadd.f32 %v4644, %v4599
  %v4661 = vadd.f32 %v4645, %v4601
  %v4662 = vadd.f32 %v4646, %v4603
  %v4663 = vadd.f32 %v4647, %v4605
  %v4664 = vadd.f32 %v4648, %v4607
  %v4665 = vadd.f32 %v4649, %v4609
  %v4666 = vadd.f32 %v4650, %v4611
  %v4667 = vadd.f32 %v4651, %v4613
  %v4668 = vadd.f32 %v4652, %v4615
  %v4669 = vadd.f32 %v4653, %v4617
  %v4670 = vadd.f32 %v4654, %v4619
  %v4671 = vadd.f32 %v4655, %v4621
  %v4672 = vadd.f32 %v4656, %v4623
  %v4673 = vadd.f32 %v4657, %v4625
  %v4674 = vrcp.pop %v4658
  %v4675 = vrcp.pop %v4659
  %v4676 = vrcp.pop %v4660
  %v4677 = vrcp.pop %v4661
  %v4678 = vrcp.pop %v4662
  %v4679 = vrcp.pop %v4663
  %v4680 = vrcp.pop %v4664
  %v4681 = vrcp.pop %v4665
  %v4682 = vrcp.pop %v4666
  %v4683 = vrcp.pop %v4667
  %v4684 = vrcp.pop %v4668
  %v4685 = vrcp.pop %v4669
  %v4686 = vrcp.pop %v4670
  %v4687 = vrcp.pop %v4671
  %v4688 = vrcp.pop %v4672
  %v4689 = vrcp.pop %v4673
  %v4690 = vmul.f32 %v4451, %v4674
  %v4691 = vmul.f32 %v4453, %v4675
  %v4692 = vmul.f32 %v4455, %v4676
  %v4693 = vmul.f32 %v4457, %v4677
  %v4694 = vmul.f32 %v4459, %v4678
  %v4695 = vmul.f32 %v4461, %v4679
  %v4696 = vmul.f32 %v4463, %v4680
  %v4697 = vmul.f32 %v4465, %v4681
  %v4698 = vmul.f32 %v4467, %v4682
  %v4699 = vmul.f32 %v4469, %v4683
  %v4700 = vmul.f32 %v4471, %v4684
  %v4701 = vmul.f32 %v4473, %v4685
  %v4702 = vmul.f32 %v4475, %v4686
  %v4703 = vmul.f32 %v4477, %v4687
  %v4704 = vmul.f32 %v4479, %v4688
  %v4705 = vmul.f32 %v4481, %v4689
  %v4706 = vmul.f32 %v4690, %v147
  %v4707 = vmul.f32 %v4691, %v150
  %v4708 = vmul.f32 %v4692, %v155
  %v4709 = vmul.f32 %v4693, %v158
  %v4710 = vmul.f32 %v4694, %v163
  %v4711 = vmul.f32 %v4695, %v166
  %v4712 = vmul.f32 %v4696, %v171
  %v4713 = vmul.f32 %v4697, %v174
  %v4714 = vmul.f32 %v4698, %v179
  %v4715 = vmul.f32 %v4699, %v182
  %v4716 = vmul.f32 %v4700, %v187
  %v4717 = vmul.f32 %v4701, %v190
  %v4718 = vmul.f32 %v4702, %v195
  %v4719 = vmul.f32 %v4703, %v198
  %v4720 = vmul.f32 %v4704, %v203
  %v4721 = vmul.f32 %v4705, %v206
  %v4722 = vmul.f32 %v4499, %v4674
  %v4723 = vmul.f32 %v4501, %v4675
  %v4724 = vmul.f32 %v4503, %v4676
  %v4725 = vmul.f32 %v4505, %v4677
  %v4726 = vmul.f32 %v4507, %v4678
  %v4727 = vmul.f32 %v4509, %v4679
  %v4728 = vmul.f32 %v4511, %v4680
  %v4729 = vmul.f32 %v4513, %v4681
  %v4730 = vmul.f32 %v4515, %v4682
  %v4731 = vmul.f32 %v4517, %v4683
  %v4732 = vmul.f32 %v4519, %v4684
  %v4733 = vmul.f32 %v4521, %v4685
  %v4734 = vmul.f32 %v4523, %v4686
  %v4735 = vmul.f32 %v4525, %v4687
  %v4736 = vmul.f32 %v4527, %v4688
  %v4737 = vmul.f32 %v4529, %v4689
  %v4738 = vmul.f32 %v4722, %v147
  %v4739 = vmul.f32 %v4723, %v150
  %v4740 = vmul.f32 %v4724, %v155
  %v4741 = vmul.f32 %v4725, %v158
  %v4742 = vmul.f32 %v4726, %v163
  %v4743 = vmul.f32 %v4727, %v166
  %v4744 = vmul.f32 %v4728, %v171
  %v4745 = vmul.f32 %v4729, %v174
  %v4746 = vmul.f32 %v4730, %v179
  %v4747 = vmul.f32 %v4731, %v182
  %v4748 = vmul.f32 %v4732, %v187
  %v4749 = vmul.f32 %v4733, %v190
  %v4750 = vmul.f32 %v4734, %v195
  %v4751 = vmul.f32 %v4735, %v198
  %v4752 = vmul.f32 %v4736, %v203
  %v4753 = vmul.f32 %v4737, %v206
  %4770 = vrot.lane.b32.xlu0 %v4738, 120
  %v4771 = vpop.permute.xlu0 %4770
  %4772 = vrot.lane.b32.xlu0 %v4739, 120
  %v4773 = vpop.permute.xlu0 %4772
  %4774 = vrot.lane.b32.xlu0 %v4740, 120
  %v4775 = vpop.permute.xlu0 %4774
  %4776 = vrot.lane.b32.xlu0 %v4741, 120
  %v4777 = vpop.permute.xlu0 %4776
  %4778 = vrot.lane.b32.xlu0 %v4742, 120
  %v4779 = vpop.permute.xlu0 %4778
  %4780 = vrot.lane.b32.xlu0 %v4743, 120
  %v4781 = vpop.permute.xlu0 %4780
  %4782 = vrot.lane.b32.xlu0 %v4744, 120
  %v4783 = vpop.permute.xlu0 %4782
  %4784 = vrot.lane.b32.xlu0 %v4745, 120
  %v4785 = vpop.permute.xlu0 %4784
  %4786 = vrot.lane.b32.xlu0 %v4746, 120
  %v4787 = vpop.permute.xlu0 %4786
  %4788 = vrot.lane.b32.xlu0 %v4747, 120
  %v4789 = vpop.permute.xlu0 %4788
  %4790 = vrot.lane.b32.xlu0 %v4748, 120
  %v4791 = vpop.permute.xlu0 %4790
  %4792 = vrot.lane.b32.xlu0 %v4749, 120
  %v4793 = vpop.permute.xlu0 %4792
  %4794 = vrot.lane.b32.xlu0 %v4750, 120
  %v4795 = vpop.permute.xlu0 %4794
  %4796 = vrot.lane.b32.xlu0 %v4751, 120
  %v4797 = vpop.permute.xlu0 %4796
  %4798 = vrot.lane.b32.xlu0 %v4752, 120
  %v4799 = vpop.permute.xlu0 %4798
  %4800 = vrot.lane.b32.xlu0 %v4753, 120
  %v4801 = vpop.permute.xlu0 %4800
  %v4818 = vadd.f32 %v4706, %v4771
  %v4819 = vadd.f32 %v4707, %v4773
  %v4820 = vadd.f32 %v4708, %v4775
  %v4821 = vadd.f32 %v4709, %v4777
  %v4822 = vadd.f32 %v4710, %v4779
  %v4823 = vadd.f32 %v4711, %v4781
  %v4824 = vadd.f32 %v4712, %v4783
  %v4825 = vadd.f32 %v4713, %v4785
  %v4826 = vadd.f32 %v4714, %v4787
  %v4827 = vadd.f32 %v4715, %v4789
  %v4828 = vadd.f32 %v4716, %v4791
  %v4829 = vadd.f32 %v4717, %v4793
  %v4830 = vadd.f32 %v4718, %v4795
  %v4831 = vadd.f32 %v4719, %v4797
  %v4832 = vadd.f32 %v4720, %v4799
  %v4833 = vadd.f32 %v4721, %v4801
  %v4834 = vmul.f32 %v4547, %v4674
  %v4835 = vmul.f32 %v4549, %v4675
  %v4836 = vmul.f32 %v4551, %v4676
  %v4837 = vmul.f32 %v4553, %v4677
  %v4838 = vmul.f32 %v4555, %v4678
  %v4839 = vmul.f32 %v4557, %v4679
  %v4840 = vmul.f32 %v4559, %v4680
  %v4841 = vmul.f32 %v4561, %v4681
  %v4842 = vmul.f32 %v4563, %v4682
  %v4843 = vmul.f32 %v4565, %v4683
  %v4844 = vmul.f32 %v4567, %v4684
  %v4845 = vmul.f32 %v4569, %v4685
  %v4846 = vmul.f32 %v4571, %v4686
  %v4847 = vmul.f32 %v4573, %v4687
  %v4848 = vmul.f32 %v4575, %v4688
  %v4849 = vmul.f32 %v4577, %v4689
  %v4850 = vmul.f32 %v4834, %v147
  %v4851 = vmul.f32 %v4835, %v150
  %v4852 = vmul.f32 %v4836, %v155
  %v4853 = vmul.f32 %v4837, %v158
  %v4854 = vmul.f32 %v4838, %v163
  %v4855 = vmul.f32 %v4839, %v166
  %v4856 = vmul.f32 %v4840, %v171
  %v4857 = vmul.f32 %v4841, %v174
  %v4858 = vmul.f32 %v4842, %v179
  %v4859 = vmul.f32 %v4843, %v182
  %v4860 = vmul.f32 %v4844, %v187
  %v4861 = vmul.f32 %v4845, %v190
  %v4862 = vmul.f32 %v4846, %v195
  %v4863 = vmul.f32 %v4847, %v198
  %v4864 = vmul.f32 %v4848, %v203
  %v4865 = vmul.f32 %v4849, %v206
  %4882 = vrot.lane.b32.xlu0 %v4850, 112
  %v4883 = vpop.permute.xlu0 %4882
  %4884 = vrot.lane.b32.xlu0 %v4851, 112
  %v4885 = vpop.permute.xlu0 %4884
  %4886 = vrot.lane.b32.xlu0 %v4852, 112
  %v4887 = vpop.permute.xlu0 %4886
  %4888 = vrot.lane.b32.xlu0 %v4853, 112
  %v4889 = vpop.permute.xlu0 %4888
  %4890 = vrot.lane.b32.xlu0 %v4854, 112
  %v4891 = vpop.permute.xlu0 %4890
  %4892 = vrot.lane.b32.xlu0 %v4855, 112
  %v4893 = vpop.permute.xlu0 %4892
  %4894 = vrot.lane.b32.xlu0 %v4856, 112
  %v4895 = vpop.permute.xlu0 %4894
  %4896 = vrot.lane.b32.xlu0 %v4857, 112
  %v4897 = vpop.permute.xlu0 %4896
  %4898 = vrot.lane.b32.xlu0 %v4858, 112
  %v4899 = vpop.permute.xlu0 %4898
  %4900 = vrot.lane.b32.xlu0 %v4859, 112
  %v4901 = vpop.permute.xlu0 %4900
  %4902 = vrot.lane.b32.xlu0 %v4860, 112
  %v4903 = vpop.permute.xlu0 %4902
  %4904 = vrot.lane.b32.xlu0 %v4861, 112
  %v4905 = vpop.permute.xlu0 %4904
  %4906 = vrot.lane.b32.xlu0 %v4862, 112
  %v4907 = vpop.permute.xlu0 %4906
  %4908 = vrot.lane.b32.xlu0 %v4863, 112
  %v4909 = vpop.permute.xlu0 %4908
  %4910 = vrot.lane.b32.xlu0 %v4864, 112
  %v4911 = vpop.permute.xlu0 %4910
  %4912 = vrot.lane.b32.xlu0 %v4865, 112
  %v4913 = vpop.permute.xlu0 %4912
  %v4930 = vadd.f32 %v4818, %v4883
  %v4931 = vadd.f32 %v4819, %v4885
  %v4932 = vadd.f32 %v4820, %v4887
  %v4933 = vadd.f32 %v4821, %v4889
  %v4934 = vadd.f32 %v4822, %v4891
  %v4935 = vadd.f32 %v4823, %v4893
  %v4936 = vadd.f32 %v4824, %v4895
  %v4937 = vadd.f32 %v4825, %v4897
  %v4938 = vadd.f32 %v4826, %v4899
  %v4939 = vadd.f32 %v4827, %v4901
  %v4940 = vadd.f32 %v4828, %v4903
  %v4941 = vadd.f32 %v4829, %v4905
  %v4942 = vadd.f32 %v4830, %v4907
  %v4943 = vadd.f32 %v4831, %v4909
  %v4944 = vadd.f32 %v4832, %v4911
  %v4945 = vadd.f32 %v4833, %v4913
  %v4946 = vmul.f32 %v4595, %v4674
  %v4947 = vmul.f32 %v4597, %v4675
  %v4948 = vmul.f32 %v4599, %v4676
  %v4949 = vmul.f32 %v4601, %v4677
  %v4950 = vmul.f32 %v4603, %v4678
  %v4951 = vmul.f32 %v4605, %v4679
  %v4952 = vmul.f32 %v4607, %v4680
  %v4953 = vmul.f32 %v4609, %v4681
  %v4954 = vmul.f32 %v4611, %v4682
  %v4955 = vmul.f32 %v4613, %v4683
  %v4956 = vmul.f32 %v4615, %v4684
  %v4957 = vmul.f32 %v4617, %v4685
  %v4958 = vmul.f32 %v4619, %v4686
  %v4959 = vmul.f32 %v4621, %v4687
  %v4960 = vmul.f32 %v4623, %v4688
  %v4961 = vmul.f32 %v4625, %v4689
  %v4962 = vmul.f32 %v4946, %v147
  %v4963 = vmul.f32 %v4947, %v150
  %v4964 = vmul.f32 %v4948, %v155
  %v4965 = vmul.f32 %v4949, %v158
  %v4966 = vmul.f32 %v4950, %v163
  %v4967 = vmul.f32 %v4951, %v166
  %v4968 = vmul.f32 %v4952, %v171
  %v4969 = vmul.f32 %v4953, %v174
  %v4970 = vmul.f32 %v4954, %v179
  %v4971 = vmul.f32 %v4955, %v182
  %v4972 = vmul.f32 %v4956, %v187
  %v4973 = vmul.f32 %v4957, %v190
  %v4974 = vmul.f32 %v4958, %v195
  %v4975 = vmul.f32 %v4959, %v198
  %v4976 = vmul.f32 %v4960, %v203
  %v4977 = vmul.f32 %v4961, %v206
  %4994 = vrot.lane.b32.xlu0 %v4962, 104
  %v4995 = vpop.permute.xlu0 %4994
  %4996 = vrot.lane.b32.xlu0 %v4963, 104
  %v4997 = vpop.permute.xlu0 %4996
  %4998 = vrot.lane.b32.xlu0 %v4964, 104
  %v4999 = vpop.permute.xlu0 %4998
  %5000 = vrot.lane.b32.xlu0 %v4965, 104
  %v5001 = vpop.permute.xlu0 %5000
  %5002 = vrot.lane.b32.xlu0 %v4966, 104
  %v5003 = vpop.permute.xlu0 %5002
  %5004 = vrot.lane.b32.xlu0 %v4967, 104
  %v5005 = vpop.permute.xlu0 %5004
  %5006 = vrot.lane.b32.xlu0 %v4968, 104
  %v5007 = vpop.permute.xlu0 %5006
  %5008 = vrot.lane.b32.xlu0 %v4969, 104
  %v5009 = vpop.permute.xlu0 %5008
  %5010 = vrot.lane.b32.xlu0 %v4970, 104
  %v5011 = vpop.permute.xlu0 %5010
  %5012 = vrot.lane.b32.xlu0 %v4971, 104
  %v5013 = vpop.permute.xlu0 %5012
  %5014 = vrot.lane.b32.xlu0 %v4972, 104
  %v5015 = vpop.permute.xlu0 %5014
  %5016 = vrot.lane.b32.xlu0 %v4973, 104
  %v5017 = vpop.permute.xlu0 %5016
  %5018 = vrot.lane.b32.xlu0 %v4974, 104
  %v5019 = vpop.permute.xlu0 %5018
  %5020 = vrot.lane.b32.xlu0 %v4975, 104
  %v5021 = vpop.permute.xlu0 %5020
  %5022 = vrot.lane.b32.xlu0 %v4976, 104
  %v5023 = vpop.permute.xlu0 %5022
  %5024 = vrot.lane.b32.xlu0 %v4977, 104
  %v5025 = vpop.permute.xlu0 %5024
  %v5042 = vadd.f32 %v4930, %v4995
  %v5043 = vadd.f32 %v4931, %v4997
  %v5044 = vadd.f32 %v4932, %v4999
  %v5045 = vadd.f32 %v4933, %v5001
  %v5046 = vadd.f32 %v4934, %v5003
  %v5047 = vadd.f32 %v4935, %v5005
  %v5048 = vadd.f32 %v4936, %v5007
  %v5049 = vadd.f32 %v4937, %v5009
  %v5050 = vadd.f32 %v4938, %v5011
  %v5051 = vadd.f32 %v4939, %v5013
  %v5052 = vadd.f32 %v4940, %v5015
  %v5053 = vadd.f32 %v4941, %v5017
  %v5054 = vadd.f32 %v4942, %v5019
  %v5055 = vadd.f32 %v4943, %v5021
  %v5056 = vadd.f32 %v4944, %v5023
  %v5057 = vadd.f32 %v4945, %v5025
  %5074 = vrot.lane.b32.xlu0 %v1394, 64
  %v5075 = vpop.permute.xlu0 %5074
  %5076 = vrot.lane.b32.xlu0 %v1395, 64
  %v5077 = vpop.permute.xlu0 %5076
  %5078 = vrot.lane.b32.xlu0 %v1396, 64
  %v5079 = vpop.permute.xlu0 %5078
  %5080 = vrot.lane.b32.xlu0 %v1397, 64
  %v5081 = vpop.permute.xlu0 %5080
  %5082 = vrot.lane.b32.xlu0 %v1398, 64
  %v5083 = vpop.permute.xlu0 %5082
  %5084 = vrot.lane.b32.xlu0 %v1399, 64
  %v5085 = vpop.permute.xlu0 %5084
  %5086 = vrot.lane.b32.xlu0 %v1400, 64
  %v5087 = vpop.permute.xlu0 %5086
  %5088 = vrot.lane.b32.xlu0 %v1401, 64
  %v5089 = vpop.permute.xlu0 %5088
  %5090 = vrot.lane.b32.xlu0 %v1402, 64
  %v5091 = vpop.permute.xlu0 %5090
  %5092 = vrot.lane.b32.xlu0 %v1403, 64
  %v5093 = vpop.permute.xlu0 %5092
  %5094 = vrot.lane.b32.xlu0 %v1404, 64
  %v5095 = vpop.permute.xlu0 %5094
  %5096 = vrot.lane.b32.xlu0 %v1405, 64
  %v5097 = vpop.permute.xlu0 %5096
  %5098 = vrot.lane.b32.xlu0 %v1406, 64
  %v5099 = vpop.permute.xlu0 %5098
  %5100 = vrot.lane.b32.xlu0 %v1407, 64
  %v5101 = vpop.permute.xlu0 %5100
  %5102 = vrot.lane.b32.xlu0 %v1408, 64
  %v5103 = vpop.permute.xlu0 %5102
  %5104 = vrot.lane.b32.xlu0 %v1409, 64
  %v5105 = vpop.permute.xlu0 %5104
  %5138 = vrot.lane.b32.xlu0 %v2642, 72
  %v5139 = vpop.permute.xlu0 %5138
  %5140 = vrot.lane.b32.xlu0 %v2643, 72
  %v5141 = vpop.permute.xlu0 %5140
  %5142 = vrot.lane.b32.xlu0 %v2644, 72
  %v5143 = vpop.permute.xlu0 %5142
  %5144 = vrot.lane.b32.xlu0 %v2645, 72
  %v5145 = vpop.permute.xlu0 %5144
  %5146 = vrot.lane.b32.xlu0 %v2646, 72
  %v5147 = vpop.permute.xlu0 %5146
  %5148 = vrot.lane.b32.xlu0 %v2647, 72
  %v5149 = vpop.permute.xlu0 %5148
  %5150 = vrot.lane.b32.xlu0 %v2648, 72
  %v5151 = vpop.permute.xlu0 %5150
  %5152 = vrot.lane.b32.xlu0 %v2649, 72
  %v5153 = vpop.permute.xlu0 %5152
  %5154 = vrot.lane.b32.xlu0 %v2650, 72
  %v5155 = vpop.permute.xlu0 %5154
  %5156 = vrot.lane.b32.xlu0 %v2651, 72
  %v5157 = vpop.permute.xlu0 %5156
  %5158 = vrot.lane.b32.xlu0 %v2652, 72
  %v5159 = vpop.permute.xlu0 %5158
  %5160 = vrot.lane.b32.xlu0 %v2653, 72
  %v5161 = vpop.permute.xlu0 %5160
  %5162 = vrot.lane.b32.xlu0 %v2654, 72
  %v5163 = vpop.permute.xlu0 %5162
  %5164 = vrot.lane.b32.xlu0 %v2655, 72
  %v5165 = vpop.permute.xlu0 %5164
  %5166 = vrot.lane.b32.xlu0 %v2656, 72
  %v5167 = vpop.permute.xlu0 %5166
  %5168 = vrot.lane.b32.xlu0 %v2657, 72
  %v5169 = vpop.permute.xlu0 %5168
  %5202 = vrot.lane.b32.xlu0 %v3842, 80
  %v5203 = vpop.permute.xlu0 %5202
  %5204 = vrot.lane.b32.xlu0 %v3843, 80
  %v5205 = vpop.permute.xlu0 %5204
  %5206 = vrot.lane.b32.xlu0 %v3844, 80
  %v5207 = vpop.permute.xlu0 %5206
  %5208 = vrot.lane.b32.xlu0 %v3845, 80
  %v5209 = vpop.permute.xlu0 %5208
  %5210 = vrot.lane.b32.xlu0 %v3846, 80
  %v5211 = vpop.permute.xlu0 %5210
  %5212 = vrot.lane.b32.xlu0 %v3847, 80
  %v5213 = vpop.permute.xlu0 %5212
  %5214 = vrot.lane.b32.xlu0 %v3848, 80
  %v5215 = vpop.permute.xlu0 %5214
  %5216 = vrot.lane.b32.xlu0 %v3849, 80
  %v5217 = vpop.permute.xlu0 %5216
  %5218 = vrot.lane.b32.xlu0 %v3850, 80
  %v5219 = vpop.permute.xlu0 %5218
  %5220 = vrot.lane.b32.xlu0 %v3851, 80
  %v5221 = vpop.permute.xlu0 %5220
  %5222 = vrot.lane.b32.xlu0 %v3852, 80
  %v5223 = vpop.permute.xlu0 %5222
  %5224 = vrot.lane.b32.xlu0 %v3853, 80
  %v5225 = vpop.permute.xlu0 %5224
  %5226 = vrot.lane.b32.xlu0 %v3854, 80
  %v5227 = vpop.permute.xlu0 %5226
  %5228 = vrot.lane.b32.xlu0 %v3855, 80
  %v5229 = vpop.permute.xlu0 %5228
  %5230 = vrot.lane.b32.xlu0 %v3856, 80
  %v5231 = vpop.permute.xlu0 %5230
  %5232 = vrot.lane.b32.xlu0 %v3857, 80
  %v5233 = vpop.permute.xlu0 %5232
  %5266 = vrot.lane.b32.xlu0 %v5042, 88
  %v5267 = vpop.permute.xlu0 %5266
  %5268 = vrot.lane.b32.xlu0 %v5043, 88
  %v5269 = vpop.permute.xlu0 %5268
  %5270 = vrot.lane.b32.xlu0 %v5044, 88
  %v5271 = vpop.permute.xlu0 %5270
  %5272 = vrot.lane.b32.xlu0 %v5045, 88
  %v5273 = vpop.permute.xlu0 %5272
  %5274 = vrot.lane.b32.xlu0 %v5046, 88
  %v5275 = vpop.permute.xlu0 %5274
  %5276 = vrot.lane.b32.xlu0 %v5047, 88
  %v5277 = vpop.permute.xlu0 %5276
  %5278 = vrot.lane.b32.xlu0 %v5048, 88
  %v5279 = vpop.permute.xlu0 %5278
  %5280 = vrot.lane.b32.xlu0 %v5049, 88
  %v5281 = vpop.permute.xlu0 %5280
  %5282 = vrot.lane.b32.xlu0 %v5050, 88
  %v5283 = vpop.permute.xlu0 %5282
  %5284 = vrot.lane.b32.xlu0 %v5051, 88
  %v5285 = vpop.permute.xlu0 %5284
  %5286 = vrot.lane.b32.xlu0 %v5052, 88
  %v5287 = vpop.permute.xlu0 %5286
  %5288 = vrot.lane.b32.xlu0 %v5053, 88
  %v5289 = vpop.permute.xlu0 %5288
  %5290 = vrot.lane.b32.xlu0 %v5054, 88
  %v5291 = vpop.permute.xlu0 %5290
  %5292 = vrot.lane.b32.xlu0 %v5055, 88
  %v5293 = vpop.permute.xlu0 %5292
  %5294 = vrot.lane.b32.xlu0 %v5056, 88
  %v5295 = vpop.permute.xlu0 %5294
  %5296 = vrot.lane.b32.xlu0 %v5057, 88
  %v5297 = vpop.permute.xlu0 %5296
  %v5314 = vsel %vm289, %v5075, %v5139
  %v5315 = vsel %vm289, %v5077, %v5141
  %v5316 = vsel %vm289, %v5079, %v5143
  %v5317 = vsel %vm289, %v5081, %v5145
  %v5318 = vsel %vm289, %v5083, %v5147
  %v5319 = vsel %vm289, %v5085, %v5149
  %v5320 = vsel %vm289, %v5087, %v5151
  %v5321 = vsel %vm289, %v5089, %v5153
  %v5322 = vsel %vm289, %v5091, %v5155
  %v5323 = vsel %vm289, %v5093, %v5157
  %v5324 = vsel %vm289, %v5095, %v5159
  %v5325 = vsel %vm289, %v5097, %v5161
  %v5326 = vsel %vm289, %v5099, %v5163
  %v5327 = vsel %vm289, %v5101, %v5165
  %v5328 = vsel %vm289, %v5103, %v5167
  %v5329 = vsel %vm289, %v5105, %v5169
  %vm5330 = vcmask 130048
  %v5331 = vsel %vm5330, %v5314, %v5203
  %v5332 = vsel %vm5330, %v5315, %v5205
  %v5333 = vsel %vm5330, %v5316, %v5207
  %v5334 = vsel %vm5330, %v5317, %v5209
  %v5335 = vsel %vm5330, %v5318, %v5211
  %v5336 = vsel %vm5330, %v5319, %v5213
  %v5337 = vsel %vm5330, %v5320, %v5215
  %v5338 = vsel %vm5330, %v5321, %v5217
  %v5339 = vsel %vm5330, %v5322, %v5219
  %v5340 = vsel %vm5330, %v5323, %v5221
  %v5341 = vsel %vm5330, %v5324, %v5223
  %v5342 = vsel %vm5330, %v5325, %v5225
  %v5343 = vsel %vm5330, %v5326, %v5227
  %v5344 = vsel %vm5330, %v5327, %v5229
  %v5345 = vsel %vm5330, %v5328, %v5231
  %v5346 = vsel %vm5330, %v5329, %v5233
  %vm5347 = vcmask 195584
  %v5348 = vsel %vm5347, %v5331, %v5267
  %v5349 = vsel %vm5347, %v5332, %v5269
  %v5350 = vsel %vm5347, %v5333, %v5271
  %v5351 = vsel %vm5347, %v5334, %v5273
  %v5352 = vsel %vm5347, %v5335, %v5275
  %v5353 = vsel %vm5347, %v5336, %v5277
  %v5354 = vsel %vm5347, %v5337, %v5279
  %v5355 = vsel %vm5347, %v5338, %v5281
  %v5356 = vsel %vm5347, %v5339, %v5283
  %v5357 = vsel %vm5347, %v5340, %v5285
  %v5358 = vsel %vm5347, %v5341, %v5287
  %v5359 = vsel %vm5347, %v5342, %v5289
  %v5360 = vsel %vm5347, %v5343, %v5291
  %v5361 = vsel %vm5347, %v5344, %v5293
  %v5362 = vsel %vm5347, %v5345, %v5295
  %v5363 = vsel %vm5347, %v5346, %v5297
  %v5364 = vpack.c.bf16 %v5349, %v5348
  %v5365 = vpack.c.bf16 %v5351, %v5350
  %v5366 = vpack.c.bf16 %v5353, %v5352
  %v5367 = vpack.c.bf16 %v5355, %v5354
  %v5368 = vpack.c.bf16 %v5357, %v5356
  %v5369 = vpack.c.bf16 %v5359, %v5358
  %v5370 = vpack.c.bf16 %v5361, %v5360
  %v5371 = vpack.c.bf16 %v5363, %v5362
  %v5372 = vld [vmem:[%s2] sm:$0xf]
  %v5373 = vld [vmem:[%s2 + $0x4] sm:$0xf]
  %v5374 = vld [vmem:[%s2 + $0x8] sm:$0xf]
  %v5375 = vld [vmem:[%s2 + $0xc] sm:$0xf]
  %v5380 = vunpack.c.l.b16 %v5372
  %v5381 = vunpack.c.l.b16 %v5373
  %v5382 = vunpack.c.l.b16 %v5374
  %v5383 = vunpack.c.l.b16 %v5375
  %v5384 = vpack.c.b16 %v5381, %v5380
  %v5385 = vpack.c.b16 %v5383, %v5382
  %v5389 = vsel %vm87, %v5364, 0
  %v5392 = vsel %vm87, %v5365, 0
  %v5395 = vsel %vm87, %v5366, 0
  %v5398 = vsel %vm87, %v5367, 0
  %v5401 = vsel %vm87, %v5368, 0
  %v5404 = vsel %vm87, %v5369, 0
  %v5407 = vsel %vm87, %v5370, 0
  %v5410 = vsel %vm87, %v5371, 0
  %5412 = vmatprep.subr.bf16.mxu0 0
  %5413 = vmatpush1.bf16.msra.mxu0 %v5384
  %5414 = vmatprep.subr.bf16.mxu0 0
  %5415 = vmatpush1.bf16.msra.mxu0 %v5385
  %5416 = vmatprep.subr.bf16.mxu0 0
  %5417 = vmatpush1.bf16.msra.mxu0 0
  %5418 = vmatprep.subr.bf16.mxu0 0
  %5419 = vmatpush1.bf16.msra.mxu0 0
  %5420 = vmatprep.subr.bf16.mxu0 0
  %5421 = vmatpush1.bf16.msra.mxu0 0
  %5422 = vmatprep.subr.bf16.mxu0 0
  %5423 = vmatpush1.bf16.msra.mxu0 0
  %5424 = vmatprep.subr.bf16.mxu0 0
  %5425 = vmatpush1.bf16.msra.mxu0 0
  %5426 = vmatprep.subr.bf16.mxu0 0
  %5427 = vmatpush1.bf16.msra.mxu0 0
  %5428 = vmatprep.subr.bf16.mxu0 0
  %5429 = vmatpush1.bf16.msra.mxu0 0
  %5430 = vmatprep.subr.bf16.mxu0 0
  %5431 = vmatpush1.bf16.msra.mxu0 0
  %5432 = vmatprep.subr.bf16.mxu0 0
  %5433 = vmatpush1.bf16.msra.mxu0 0
  %5434 = vmatprep.subr.bf16.mxu0 0
  %5435 = vmatpush1.bf16.msra.mxu0 0
  %5436 = vmatprep.subr.bf16.mxu0 0
  %5437 = vmatpush1.bf16.msra.mxu0 0
  %5438 = vmatprep.subr.bf16.mxu0 0
  %5439 = vmatpush1.bf16.msra.mxu0 0
  %5440 = vmatprep.subr.bf16.mxu0 0
  %5441 = vmatpush1.bf16.msra.mxu0 0
  %5442 = vmatprep.subr.bf16.mxu0 0
  %5443 = vmatpush1.bf16.msra.mxu0 0
  %5444 = vmatprep.mubr.bf16.mxu0 0
  %5445 = vmatmul.mubr.bf16.gmra.mrb[0].mxu0 %v5389
  %v5446 = vpop.f32.mrb[0].mxu0
  %v5447 = vadd.f32 0.0, %v5446
  %v5448 = vpop.f32.mrb[0].mxu0
  %v5449 = vpop.f32.mrb[0].mxu0
  %v5450 = vadd.f32 0.0, %v5449
  %v5451 = vpop.f32.mrb[0].mxu0
  %5452 = vmatprep.mubr.bf16.mxu0 0
  %5453 = vmatmul.mubr.bf16.gmra.mrb[0].mxu0 %v5392
  %v5454 = vpop.f32.mrb[0].mxu0
  %v5455 = vadd.f32 0.0, %v5454
  %v5456 = vpop.f32.mrb[0].mxu0
  %v5457 = vpop.f32.mrb[0].mxu0
  %v5458 = vadd.f32 0.0, %v5457
  %v5459 = vpop.f32.mrb[0].mxu0
  %5460 = vmatprep.mubr.bf16.mxu0 0
  %5461 = vmatmul.mubr.bf16.gmra.mrb[0].mxu0 %v5395
  %v5462 = vpop.f32.mrb[0].mxu0
  %v5463 = vadd.f32 0.0, %v5462
  %v5464 = vpop.f32.mrb[0].mxu0
  %v5465 = vpop.f32.mrb[0].mxu0
  %v5466 = vadd.f32 0.0, %v5465
  %v5467 = vpop.f32.mrb[0].mxu0
  %5468 = vmatprep.mubr.bf16.mxu0 0
  %5469 = vmatmul.mubr.bf16.gmra.mrb[0].mxu0 %v5398
  %v5470 = vpop.f32.mrb[0].mxu0
  %v5471 = vadd.f32 0.0, %v5470
  %v5472 = vpop.f32.mrb[0].mxu0
  %v5473 = vpop.f32.mrb[0].mxu0
  %v5474 = vadd.f32 0.0, %v5473
  %v5475 = vpop.f32.mrb[0].mxu0
  %5476 = vmatprep.mubr.bf16.mxu0 0
  %5477 = vmatmul.mubr.bf16.gmra.mrb[0].mxu0 %v5401
  %v5478 = vpop.f32.mrb[0].mxu0
  %v5479 = vadd.f32 0.0, %v5478
  %v5480 = vpop.f32.mrb[0].mxu0
  %v5481 = vpop.f32.mrb[0].mxu0
  %v5482 = vadd.f32 0.0, %v5481
  %v5483 = vpop.f32.mrb[0].mxu0
  %5484 = vmatprep.mubr.bf16.mxu0 0
  %5485 = vmatmul.mubr.bf16.gmra.mrb[0].mxu0 %v5404
  %v5486 = vpop.f32.mrb[0].mxu0
  %v5487 = vadd.f32 0.0, %v5486
  %v5488 = vpop.f32.mrb[0].mxu0
  %v5489 = vpop.f32.mrb[0].mxu0
  %v5490 = vadd.f32 0.0, %v5489
  %v5491 = vpop.f32.mrb[0].mxu0
  %5492 = vmatprep.mubr.bf16.mxu0 0
  %5493 = vmatmul.mubr.bf16.gmra.mrb[0].mxu0 %v5407
  %v5494 = vpop.f32.mrb[0].mxu0
  %v5495 = vadd.f32 0.0, %v5494
  %v5496 = vpop.f32.mrb[0].mxu0
  %v5497 = vpop.f32.mrb[0].mxu0
  %v5498 = vadd.f32 0.0, %v5497
  %v5499 = vpop.f32.mrb[0].mxu0
  %5500 = vmatprep.mubr.bf16.mxu0 0
  %5501 = vmatmul.mubr.bf16.gmra.mrb[0].mxu0 %v5410
  %v5502 = vpop.f32.mrb[0].mxu0
  %v5503 = vadd.f32 0.0, %v5502
  %v5504 = vpop.f32.mrb[0].mxu0
  %v5505 = vpop.f32.mrb[0].mxu0
  %v5506 = vadd.f32 0.0, %v5505
  %v5507 = vpop.f32.mrb[0].mxu0
  %5508 = vdwg.mxu0
  %5509 = vst.msk [vmem:[%s3] sm:$0xff] %vm87, %v5447
  %5510 = vst.msk [vmem:[%s3 + $0x8] sm:$0xff] %vm87, %v5450
  %5511 = vst.msk [vmem:[%s3 + $0x10] sm:$0xff] %vm87, %v5455
  %5512 = vst.msk [vmem:[%s3 + $0x18] sm:$0xff] %vm87, %v5458
  %5513 = vst.msk [vmem:[%s3 + $0x20] sm:$0xff] %vm87, %v5463
  %5514 = vst.msk [vmem:[%s3 + $0x28] sm:$0xff] %vm87, %v5466
  %5515 = vst.msk [vmem:[%s3 + $0x30] sm:$0xff] %vm87, %v5471
  %5516 = vst.msk [vmem:[%s3 + $0x38] sm:$0xff] %vm87, %v5474
  %5517 = vst.msk [vmem:[%s3 + $0x40] sm:$0xff] %vm87, %v5479
  %5518 = vst.msk [vmem:[%s3 + $0x48] sm:$0xff] %vm87, %v5482
  %5519 = vst.msk [vmem:[%s3 + $0x50] sm:$0xff] %vm87, %v5487
  %5520 = vst.msk [vmem:[%s3 + $0x58] sm:$0xff] %vm87, %v5490
  %5521 = vst.msk [vmem:[%s3 + $0x60] sm:$0xff] %vm87, %v5495
  %5522 = vst.msk [vmem:[%s3 + $0x68] sm:$0xff] %vm87, %v5498
  %5523 = vst.msk [vmem:[%s3 + $0x70] sm:$0xff] %vm87, %v5503
  %5524 = vst.msk [vmem:[%s3 + $0x78] sm:$0xff] %vm87, %v5506
  // Predicated region
  $region14: #{tpu_custom_call.1} parent=0 // pred_check
    _
  $region15: #{tpu_custom_call.1} parent=0 // pred_check_branch
    %5526 = sbr.rel (0) target = $region17
  $region16: #{tpu_custom_call.1} parent=0 // pred_region
    _
  $region17: #{tpu_custom_call.1} parent=0 // pred_fallthru
    _
  // Predicated region
  $region18: #{tpu_custom_call.1} parent=0 // pred_check
    _
  $region19: #{tpu_custom_call.1} parent=0 // pred_check_branch
    %5528 = sbr.rel (0) target = $region21
  $region20: #{tpu_custom_call.1} parent=0 // pred_region
    _
  $region21: #{tpu_custom_call.1} parent=0 // pred_fallthru
    _

</llo_original>
